<compile_context>
chip_gen: v7x
topology: tpu7x:2x2x1
jax: 0.10.0
libtpu: 0.0.40
codegen_flags: <defaults>
</compile_context>

<pallas_src>
import numpy as np
import jax
import jax.numpy as jnp
from jax import lax
from jax.experimental import pallas as pl
from jax.experimental.pallas import tpu as pltpu


def _round_up(x, m):
    return (x + m - 1) // m * m


def _pick_batch_block(n):
    # Keep >= 2 "parallel" grid steps (v7x has 2 TensorCores); fold the rest of
    # the batch into the lane axis for lane density.
    if n <= 2:
        return 1
    if n % 2 == 0:
        return n // 2
    return 1


def _frame_geometry(H, W, nb):
    """Padded-flat frame geometry for nb images of size (H, W)."""
    Wp = W + 2
    stride = (H + 2) * Wp                            # padded-flat size of one image
    Lp = _round_up(nb * stride + 2 * Wp + 2, 128)    # + tap-read slack, lane aligned
    return Wp, stride, Lp


# ----------------------------------------------------------------------------
# Fused whole-encoder kernel (one grid step == one batch block)
# ----------------------------------------------------------------------------
def _make_encoder_kernel(cfgs):
    """cfgs: tuple of (Wp, Lp, cout) per level."""
    n_levels = len(cfgs)

    def conv3x3_bias_relu(x_f32, w_ref, b_ref, mask, Wp, Lp, base_shift):
        # x_f32: (cin, Lp) padded-flat activation (f32 value, zero borders/tail).
        # w_ref: (9, cout, cin) bf16 per-tap weights, b_ref: (cout, 1) f32.
        # Returns relu(conv + b) (optionally * mask) as a (cout, Lp) f32 value.
        acc = None
        for t in range(9):
            ky, kx = divmod(t, 3)
            shift = (base_shift - (ky * Wp + kx)) % Lp
            tap = pltpu.roll(x_f32, shift, 1) if shift else x_f32     # XLU lane roll
            part = jnp.dot(w_ref[t], tap.astype(jnp.bfloat16),
                           preferred_element_type=jnp.float32)        # MXU GEMM
            acc = part if acc is None else acc + part
        out = jnp.maximum(acc + b_ref[...], 0.0)                      # f32 epilogue
        return out if mask is None else out * mask

    def kernel(*refs):
        x_ref = refs[0]
        lev = [refs[1 + 6 * l: 1 + 6 * (l + 1)] for l in range(n_levels)]
        skip_refs = refs[1 + 6 * n_levels: 1 + 7 * n_levels]
        final_ref = refs[1 + 7 * n_levels]

        src = x_ref[...]                                              # (cin, Lp0) f32
        for l, (Wp, Lp, cout) in enumerate(cfgs):
            w1_ref, b1_ref, w2_ref, b2_ref, mask_ref, sel_ref = lev[l]
            mask = mask_ref[...]                                      # (1, Lp) 0/1 f32

            # conv1 + ReLU; garbage columns masked to zero so that they become
            # conv2's horizontal zero padding (the +(Wp+1) frame shift is folded
            # into conv2's tap shifts -> no padded scratch buffer, no zero fills).
            ext1 = conv3x3_bias_relu(src, w1_ref, b1_ref, mask, Wp, Lp, 0)

            # conv2 + ReLU (no mask needed: pooling / skip never read garbage cols)
            ext2 = conv3x3_bias_relu(ext1, w2_ref, b2_ref, None, Wp, Lp, Wp + 1)

            # skip connection: lane-dense, unmasked full-block store
            skip_refs[l][...] = ext2

            # 2x2 stride-2 max-pool: roll + max (no strided loads), then a 0/1
            # selection GEMM compacts the strided maxima into the next level's
            # padded-flat frame (or the dense final layout) with zero borders.
            colmax = jnp.maximum(ext2, pltpu.roll(ext2, Lp - 1, 1))
            rowmax = jnp.maximum(colmax, pltpu.roll(colmax, Lp - Wp, 1))
            pooled = jnp.dot(rowmax.astype(jnp.bfloat16), sel_ref[...],
                             preferred_element_type=jnp.float32)
            if l + 1 < n_levels:
                src = pooled                          # next level's padded-flat input
            else:
                final_ref[...] = pooled

    return kernel


# ----------------------------------------------------------------------------
# Public wrapper: NCHW in / NCHW out, mirrors Encoder.forward(return_outputs=True)
# ----------------------------------------------------------------------------
def encoder_forward(x_nchw, params):
    n, c0, h0, w0 = x_nchw.shape
    n_levels = len(params)
    nb = _pick_batch_block(n)
    num_steps = n // nb

    # ---------------- per-level sizes ----------------
    sizes = []
    H, W, cin = h0, w0, c0
    for (w1, b1, w2, b2) in params:
        cout = int(w1.shape[-1])
        if H % 2 or W % 2:
            raise ValueError("MaxPool2d(2) requires even spatial dims at every level")
        sizes.append((H, W, cin, cout))
        H, W, cin = H // 2, W // 2, cout
    Hf, Wf, cl = H, W, cin                            # final pooled dims / channels

    # ---------------- level-0 padded-flat input (channel-major, no transposes) --
    c0p = _round_up(c0, 8)
    Wp0, stride0, Lp0 = _frame_geometry(h0, w0, nb)
    xpad = jnp.pad(x_nchw.astype(jnp.float32),
                   ((0, 0), (0, c0p - c0), (1, 1), (1, 1)))       # (N, c0p, H+2, W+2)
    xflat = xpad.reshape(num_steps, nb, c0p, stride0)
    xflat = jnp.transpose(xflat, (0, 2, 1, 3)).reshape(num_steps, c0p, nb * stride0)
    xflat = jnp.pad(xflat, ((0, 0), (0, 0), (0, Lp0 - nb * stride0)))

    # ---------------- per-level constants (weights / masks / selection) --------
    in_specs = [pl.BlockSpec((None, c0p, Lp0), lambda i: (i, 0, 0))]
    const_inputs = []
    kcfgs = []
    cin_p = c0p
    flops = 0
    for l, (Hl, Wl, cin_l, cout) in enumerate(sizes):
        Wp, stride, Lp = _frame_geometry(Hl, Wl, nb)
        w1, b1, w2, b2 = params[l]
        # HWIO (3,3,cin,cout) -> per-tap (9, cout, cin_p) bf16
        w1t = jnp.transpose(w1.reshape(9, cin_l, cout), (0, 2, 1))
        w1t = jnp.pad(w1t, ((0, 0), (0, 0), (0, cin_p - cin_l))).astype(jnp.bfloat16)
        w2t = jnp.transpose(w2.reshape(9, cout, cout), (0, 2, 1)).astype(jnp.bfloat16)
        b1m = b1.reshape(cout, 1).astype(jnp.float32)
        b2m = b2.reshape(cout, 1).astype(jnp.float32)

        # valid-position mask: 1 at valid output columns, 0 at garbage/tail
        mask = np.zeros((1, Lp), np.float32)
        for k in range(nb):
            for oy in range(Hl):
                base = k * stride + oy * Wp
                mask[0, base:base + Wl] = 1.0
        mask = jnp.asarray(mask)

        # pooling selection matrix: 2x2-block-max position -> next frame position
        Ho, Wo = Hl // 2, Wl // 2
        if l + 1 < n_levels:
            Wp_n, stride_n, Lp_n = _frame_geometry(Ho, Wo, nb)
            sel = np.zeros((Lp, Lp_n), np.float32)
            for k in range(nb):
                for ry in range(Ho):
                    for rx in range(Wo):
                        src = k * stride + (2 * ry) * Wp + 2 * rx
                        dst = k * stride_n + (ry + 1) * Wp_n + (rx + 1)
                        sel[src, dst] = 1.0
        else:
            Lp_n = nb * Ho * Wo
            sel = np.zeros((Lp, Lp_n), np.float32)
            for k in range(nb):
                for ry in range(Ho):
                    for rx in range(Wo):
                        src = k * stride + (2 * ry) * Wp + 2 * rx
                        dst = k * Ho * Wo + ry * Wo + rx
                        sel[src, dst] = 1.0
        sel = jnp.asarray(sel, dtype=jnp.bfloat16)    # 0/1 are exact in bf16

        const_inputs += [w1t, b1m, w2t, b2m, mask, sel]
        for arr in (w1t, b1m, w2t, b2m, mask, sel):
            in_specs.append(pl.BlockSpec(arr.shape, lambda i, _r=arr.ndim: (0,) * _r))
        kcfgs.append((Wp, Lp, cout))
        flops += num_steps * (18 * cout * (cin_p + cout) * Lp + 2 * cout * Lp * Lp_n)
        cin_p = cout

    # ---------------- outputs ----------------
    out_shapes, out_specs = [], []
    for (Wp, Lp, cout) in kcfgs:                      # skip outputs (extended frame)
        out_shapes.append(jax.ShapeDtypeStruct((num_steps, cout, Lp), jnp.float32))
        out_specs.append(pl.BlockSpec((None, cout, Lp), lambda i: (i, 0, 0)))
    out_shapes.append(jax.ShapeDtypeStruct((num_steps, cl, nb * Hf * Wf), jnp.float32))
    out_specs.append(pl.BlockSpec((None, cl, nb * Hf * Wf), lambda i: (i, 0, 0)))

    bytes_accessed = int(xflat.size) * 4 \
        + sum(int(a.size) * a.dtype.itemsize for a in const_inputs) \
        + sum(int(np.prod(s.shape)) * 4 for s in out_shapes)

    outs = pl.pallas_call(
        _make_encoder_kernel(tuple(kcfgs)),
        out_shape=tuple(out_shapes),
        grid_spec=pltpu.PrefetchScalarGridSpec(
            num_scalar_prefetch=0,
            grid=(num_steps,),
            in_specs=in_specs,
            out_specs=tuple(out_specs)),
        compiler_params=pltpu.CompilerParams(dimension_semantics=("parallel",)),
        cost_estimate=pl.CostEstimate(flops=int(flops), transcendentals=0,
                                      bytes_accessed=int(bytes_accessed)),
    )(xflat, *const_inputs)

    # ---------------- unpack: strip frame padding, restore NCHW ----------------
    skips = []
    for (Hl, Wl, _, cout), (Wp, Lp, _) in zip(sizes, kcfgs):
        stride = (Hl + 2) * Wp
        raw = outs[len(skips)]
        s = raw[:, :, :nb * stride].reshape(num_steps, cout, nb, Hl + 2, Wp)
        s = s[:, :, :, :Hl, :Wl]
        s = jnp.transpose(s, (0, 2, 1, 3, 4)).reshape(n, cout, Hl, Wl)
        skips.append(s)
    fin = outs[n_levels].reshape(num_steps, cl, nb, Hf, Wf)
    fin = jnp.transpose(fin, (0, 2, 1, 3, 4)).reshape(n, cl, Hf, Wf)
    return fin, skips


# ----------------------------------------------------------------------------
# Parameter init (uniform(-1/sqrt(fan_in), 1/sqrt(fan_in)) like nn.Conv2d)
# ----------------------------------------------------------------------------
def init_encoder_params(features, key):
    params = []
    for inc, outc in zip(features[:-1], features[1:]):
        key, k1, k2, k3, k4 = jax.random.split(key, 5)
        bound1 = 1.0 / jnp.sqrt(jnp.float32(inc * 9))
        bound2 = 1.0 / jnp.sqrt(jnp.float32(outc * 9))
        w1 = jax.random.uniform(k1, (3, 3, inc, outc), jnp.float32, -bound1, bound1)
        b1 = jax.random.uniform(k2, (outc,), jnp.float32, -bound1, bound1)
        w2 = jax.random.uniform(k3, (3, 3, outc, outc), jnp.float32, -bound2, bound2)
        b2 = jax.random.uniform(k4, (outc,), jnp.float32, -bound2, bound2)
        params.append((w1, b1, w2, b2))
    return params


# ----------------------------------------------------------------------------
# Plain-XLA reference (f32) for a numerical sanity check
# ----------------------------------------------------------------------------
def _reference_encoder(x_nchw, params):
    x = jnp.transpose(x_nchw, (0, 2, 3, 1))
    skips = []
    for (w1, b1, w2, b2) in params:
        for (w, b) in ((w1, b1), (w2, b2)):
            x = lax.conv_general_dilated(
                x, w, window_strides=(1, 1), padding="SAME",
                dimension_numbers=("NHWC", "HWIO", "NHWC"),
                precision=lax.Precision.HIGHEST)
            x = jnp.maximum(x + b, 0.0)
        skips.append(jnp.transpose(x, (0, 3, 1, 2)))
        x = lax.reduce_window(x, -jnp.inf, lax.max,
                              window_dimensions=(1, 2, 2, 1),
                              window_strides=(1, 2, 2, 1), padding="VALID")
    return jnp.transpose(x, (0, 3, 1, 2)), skips


if __name__ == "__main__":
    key = jax.random.PRNGKey(0)
    kx, kp = jax.random.split(key)

    features = [4, 8, 16]        # in_channels=4, out_channels=16
    scale_factors = [2, 2]       # two MaxPool2d(2) poolers
    assert len(features) == len(scale_factors) + 1

    # input: N=2, C=4, H=W=16 (NCHW, matching the PyTorch reference)
    x = jax.random.normal(kx, (2, 4, 16, 16), jnp.float32)
    params = init_encoder_params(features, kp)

    fwd = jax.jit(encoder_forward)
    out, enc_outs = fwd(x, params)
    jax.block_until_ready(out)
    for e in enc_outs:
        jax.block_until_ready(e)

    # shape sanity: out is post-pool of the last block, enc_outs are pre-pool
    assert out.shape == (2, 16, 4, 4)
    assert enc_outs[0].shape == (2, 8, 16, 16)
    assert enc_outs[1].shape == (2, 16, 8, 8)

    # numerical sanity vs plain-XLA f32 reference (loose tol: bf16 MXU inputs,
    # intentional - the conv GEMMs run with bf16 operands and f32 accumulation)
    ref_out, ref_skips = _reference_encoder(x, params)
    err = max(
        float(jnp.max(jnp.abs(out - ref_out))),
        *[float(jnp.max(jnp.abs(a - b))) for a, b in zip(enc_outs, ref_skips)],
    )
    assert err < 1e-1, f"max abs error vs reference too large: {err}"

    print("KERNEL_OK")
</pallas_src>

<mosaic_0001>
module attributes {stable_mosaic.version = 11 : i64} {
  func.func @kernel(%arg0: i32, %arg1: memref<1x8x384xf32, #tpu.memory_space<vmem>>, %arg2: memref<9x8x8xbf16, #tpu.memory_space<vmem>>, %arg3: memref<8x1xf32, #tpu.memory_space<vmem>>, %arg4: memref<9x8x8xbf16, #tpu.memory_space<vmem>>, %arg5: memref<8x1xf32, #tpu.memory_space<vmem>>, %arg6: memref<1x384xf32, #tpu.memory_space<vmem>>, %arg7: memref<384x128xbf16, #tpu.memory_space<vmem>>, %arg8: memref<9x16x8xbf16, #tpu.memory_space<vmem>>, %arg9: memref<16x1xf32, #tpu.memory_space<vmem>>, %arg10: memref<9x16x16xbf16, #tpu.memory_space<vmem>>, %arg11: memref<16x1xf32, #tpu.memory_space<vmem>>, %arg12: memref<1x128xf32, #tpu.memory_space<vmem>>, %arg13: memref<128x16xbf16, #tpu.memory_space<vmem>>, %arg14: memref<1x8x384xf32, #tpu.memory_space<vmem>>, %arg15: memref<1x16x128xf32, #tpu.memory_space<vmem>>, %arg16: memref<1x16x16xf32, #tpu.memory_space<vmem>>) attributes {dimension_semantics = [#tpu.dimension_semantics<parallel>], iteration_bounds = array<i64: 2>, scalar_prefetch = 0 : i64, scratch_operands = 0 : i64, tpu.core_type = #tpu.core_type<tc>, window_params = [{transform_indices = @transform_0, window_bounds = array<i64: 1, 8, 384>}, {pipeline_mode = #tpu.pipeline_mode<synchronous>, transform_indices = @transform_1, window_bounds = array<i64: 9, 8, 8>}, {pipeline_mode = #tpu.pipeline_mode<synchronous>, transform_indices = @transform_2, window_bounds = array<i64: 8, 1>}, {pipeline_mode = #tpu.pipeline_mode<synchronous>, transform_indices = @transform_3, window_bounds = array<i64: 9, 8, 8>}, {pipeline_mode = #tpu.pipeline_mode<synchronous>, transform_indices = @transform_4, window_bounds = array<i64: 8, 1>}, {pipeline_mode = #tpu.pipeline_mode<synchronous>, transform_indices = @transform_5, window_bounds = array<i64: 1, 384>}, {pipeline_mode = #tpu.pipeline_mode<synchronous>, transform_indices = @transform_6, window_bounds = array<i64: 384, 128>}, {pipeline_mode = #tpu.pipeline_mode<synchronous>, transform_indices = @transform_7, window_bounds = array<i64: 9, 16, 8>}, {pipeline_mode = #tpu.pipeline_mode<synchronous>, transform_indices = @transform_8, window_bounds = array<i64: 16, 1>}, {pipeline_mode = #tpu.pipeline_mode<synchronous>, transform_indices = @transform_9, window_bounds = array<i64: 9, 16, 16>}, {pipeline_mode = #tpu.pipeline_mode<synchronous>, transform_indices = @transform_10, window_bounds = array<i64: 16, 1>}, {pipeline_mode = #tpu.pipeline_mode<synchronous>, transform_indices = @transform_11, window_bounds = array<i64: 1, 128>}, {pipeline_mode = #tpu.pipeline_mode<synchronous>, transform_indices = @transform_12, window_bounds = array<i64: 128, 16>}, {transform_indices = @transform_13, window_bounds = array<i64: 1, 8, 384>}, {transform_indices = @transform_14, window_bounds = array<i64: 1, 16, 128>}, {transform_indices = @transform_15, window_bounds = array<i64: 1, 16, 16>}]} {
    %c0 = arith.constant 0 : index
    %c0_0 = arith.constant 0 : index
    %c0_1 = arith.constant 0 : index
    %0 = vector.load %arg1[%c0, %c0_0, %c0_1] : memref<1x8x384xf32, #tpu.memory_space<vmem>>, vector<1x8x384xf32>
    %1 = vector.shape_cast %0 : vector<1x8x384xf32> to vector<8x384xf32>
    %c0_2 = arith.constant 0 : index
    %c0_3 = arith.constant 0 : index
    %2 = vector.load %arg6[%c0_2, %c0_3] : memref<1x384xf32, #tpu.memory_space<vmem>>, vector<1x384xf32>
    %c0_4 = arith.constant 0 : index
    %c0_5 = arith.constant 0 : index
    %c0_6 = arith.constant 0 : index
    %3 = vector.load %arg2[%c0_4, %c0_5, %c0_6] : memref<9x8x8xbf16, #tpu.memory_space<vmem>>, vector<1x8x8xbf16>
    %4 = vector.shape_cast %3 : vector<1x8x8xbf16> to vector<8x8xbf16>
    %5 = arith.truncf %1 : vector<8x384xf32> to vector<8x384xbf16>
    %cst = arith.constant dense<0.000000e+00> : vector<8x384xf32>
    %6 = tpu.matmul %4, %5, %cst {dimension_numbers = #tpu.dot_dimension_numbers<[1], [0], [0], [1], [0, 0, 1, 1], [], []>} : vector<8x8xbf16>, vector<8x384xbf16>, vector<8x384xf32> -> vector<8x384xf32>
    %c383_i32 = arith.constant 383 : i32
    %7 = tpu.dynamic_rotate %1 by %c383_i32 dim 1 : vector<8x384xf32>, i32 -> vector<8x384xf32>
    %c1 = arith.constant 1 : index
    %c0_7 = arith.constant 0 : index
    %c0_8 = arith.constant 0 : index
    %8 = vector.load %arg2[%c1, %c0_7, %c0_8] : memref<9x8x8xbf16, #tpu.memory_space<vmem>>, vector<1x8x8xbf16>
    %9 = vector.shape_cast %8 : vector<1x8x8xbf16> to vector<8x8xbf16>
    %10 = arith.truncf %7 : vector<8x384xf32> to vector<8x384xbf16>
    %cst_9 = arith.constant dense<0.000000e+00> : vector<8x384xf32>
    %11 = tpu.matmul %9, %10, %cst_9 {dimension_numbers = #tpu.dot_dimension_numbers<[1], [0], [0], [1], [0, 0, 1, 1], [], []>} : vector<8x8xbf16>, vector<8x384xbf16>, vector<8x384xf32> -> vector<8x384xf32>
    %12 = arith.addf %6, %11 : vector<8x384xf32>
    %c382_i32 = arith.constant 382 : i32
    %13 = tpu.dynamic_rotate %1 by %c382_i32 dim 1 : vector<8x384xf32>, i32 -> vector<8x384xf32>
    %c2 = arith.constant 2 : index
    %c0_10 = arith.constant 0 : index
    %c0_11 = arith.constant 0 : index
    %14 = vector.load %arg2[%c2, %c0_10, %c0_11] : memref<9x8x8xbf16, #tpu.memory_space<vmem>>, vector<1x8x8xbf16>
    %15 = vector.shape_cast %14 : vector<1x8x8xbf16> to vector<8x8xbf16>
    %16 = arith.truncf %13 : vector<8x384xf32> to vector<8x384xbf16>
    %cst_12 = arith.constant dense<0.000000e+00> : vector<8x384xf32>
    %17 = tpu.matmul %15, %16, %cst_12 {dimension_numbers = #tpu.dot_dimension_numbers<[1], [0], [0], [1], [0, 0, 1, 1], [], []>} : vector<8x8xbf16>, vector<8x384xbf16>, vector<8x384xf32> -> vector<8x384xf32>
    %18 = arith.addf %12, %17 : vector<8x384xf32>
    %c366_i32 = arith.constant 366 : i32
    %19 = tpu.dynamic_rotate %1 by %c366_i32 dim 1 : vector<8x384xf32>, i32 -> vector<8x384xf32>
    %c3 = arith.constant 3 : index
    %c0_13 = arith.constant 0 : index
    %c0_14 = arith.constant 0 : index
    %20 = vector.load %arg2[%c3, %c0_13, %c0_14] : memref<9x8x8xbf16, #tpu.memory_space<vmem>>, vector<1x8x8xbf16>
    %21 = vector.shape_cast %20 : vector<1x8x8xbf16> to vector<8x8xbf16>
    %22 = arith.truncf %19 : vector<8x384xf32> to vector<8x384xbf16>
    %cst_15 = arith.constant dense<0.000000e+00> : vector<8x384xf32>
    %23 = tpu.matmul %21, %22, %cst_15 {dimension_numbers = #tpu.dot_dimension_numbers<[1], [0], [0], [1], [0, 0, 1, 1], [], []>} : vector<8x8xbf16>, vector<8x384xbf16>, vector<8x384xf32> -> vector<8x384xf32>
    %24 = arith.addf %18, %23 : vector<8x384xf32>
    %c365_i32 = arith.constant 365 : i32
    %25 = tpu.dynamic_rotate %1 by %c365_i32 dim 1 : vector<8x384xf32>, i32 -> vector<8x384xf32>
    %c4 = arith.constant 4 : index
    %c0_16 = arith.constant 0 : index
    %c0_17 = arith.constant 0 : index
    %26 = vector.load %arg2[%c4, %c0_16, %c0_17] : memref<9x8x8xbf16, #tpu.memory_space<vmem>>, vector<1x8x8xbf16>
    %27 = vector.shape_cast %26 : vector<1x8x8xbf16> to vector<8x8xbf16>
    %28 = arith.truncf %25 : vector<8x384xf32> to vector<8x384xbf16>
    %cst_18 = arith.constant dense<0.000000e+00> : vector<8x384xf32>
    %29 = tpu.matmul %27, %28, %cst_18 {dimension_numbers = #tpu.dot_dimension_numbers<[1], [0], [0], [1], [0, 0, 1, 1], [], []>} : vector<8x8xbf16>, vector<8x384xbf16>, vector<8x384xf32> -> vector<8x384xf32>
    %30 = arith.addf %24, %29 : vector<8x384xf32>
    %c364_i32 = arith.constant 364 : i32
    %31 = tpu.dynamic_rotate %1 by %c364_i32 dim 1 : vector<8x384xf32>, i32 -> vector<8x384xf32>
    %c5 = arith.constant 5 : index
    %c0_19 = arith.constant 0 : index
    %c0_20 = arith.constant 0 : index
    %32 = vector.load %arg2[%c5, %c0_19, %c0_20] : memref<9x8x8xbf16, #tpu.memory_space<vmem>>, vector<1x8x8xbf16>
    %33 = vector.shape_cast %32 : vector<1x8x8xbf16> to vector<8x8xbf16>
    %34 = arith.truncf %31 : vector<8x384xf32> to vector<8x384xbf16>
    %cst_21 = arith.constant dense<0.000000e+00> : vector<8x384xf32>
    %35 = tpu.matmul %33, %34, %cst_21 {dimension_numbers = #tpu.dot_dimension_numbers<[1], [0], [0], [1], [0, 0, 1, 1], [], []>} : vector<8x8xbf16>, vector<8x384xbf16>, vector<8x384xf32> -> vector<8x384xf32>
    %36 = arith.addf %30, %35 : vector<8x384xf32>
    %c348_i32 = arith.constant 348 : i32
    %37 = tpu.dynamic_rotate %1 by %c348_i32 dim 1 : vector<8x384xf32>, i32 -> vector<8x384xf32>
    %c6 = arith.constant 6 : index
    %c0_22 = arith.constant 0 : index
    %c0_23 = arith.constant 0 : index
    %38 = vector.load %arg2[%c6, %c0_22, %c0_23] : memref<9x8x8xbf16, #tpu.memory_space<vmem>>, vector<1x8x8xbf16>
    %39 = vector.shape_cast %38 : vector<1x8x8xbf16> to vector<8x8xbf16>
    %40 = arith.truncf %37 : vector<8x384xf32> to vector<8x384xbf16>
    %cst_24 = arith.constant dense<0.000000e+00> : vector<8x384xf32>
    %41 = tpu.matmul %39, %40, %cst_24 {dimension_numbers = #tpu.dot_dimension_numbers<[1], [0], [0], [1], [0, 0, 1, 1], [], []>} : vector<8x8xbf16>, vector<8x384xbf16>, vector<8x384xf32> -> vector<8x384xf32>
    %42 = arith.addf %36, %41 : vector<8x384xf32>
    %c347_i32 = arith.constant 347 : i32
    %43 = tpu.dynamic_rotate %1 by %c347_i32 dim 1 : vector<8x384xf32>, i32 -> vector<8x384xf32>
    %c7 = arith.constant 7 : index
    %c0_25 = arith.constant 0 : index
    %c0_26 = arith.constant 0 : index
    %44 = vector.load %arg2[%c7, %c0_25, %c0_26] : memref<9x8x8xbf16, #tpu.memory_space<vmem>>, vector<1x8x8xbf16>
    %45 = vector.shape_cast %44 : vector<1x8x8xbf16> to vector<8x8xbf16>
    %46 = arith.truncf %43 : vector<8x384xf32> to vector<8x384xbf16>
    %cst_27 = arith.constant dense<0.000000e+00> : vector<8x384xf32>
    %47 = tpu.matmul %45, %46, %cst_27 {dimension_numbers = #tpu.dot_dimension_numbers<[1], [0], [0], [1], [0, 0, 1, 1], [], []>} : vector<8x8xbf16>, vector<8x384xbf16>, vector<8x384xf32> -> vector<8x384xf32>
    %48 = arith.addf %42, %47 : vector<8x384xf32>
    %c346_i32 = arith.constant 346 : i32
    %49 = tpu.dynamic_rotate %1 by %c346_i32 dim 1 : vector<8x384xf32>, i32 -> vector<8x384xf32>
    %c8 = arith.constant 8 : index
    %c0_28 = arith.constant 0 : index
    %c0_29 = arith.constant 0 : index
    %50 = vector.load %arg2[%c8, %c0_28, %c0_29] : memref<9x8x8xbf16, #tpu.memory_space<vmem>>, vector<1x8x8xbf16>
    %51 = vector.shape_cast %50 : vector<1x8x8xbf16> to vector<8x8xbf16>
    %52 = arith.truncf %49 : vector<8x384xf32> to vector<8x384xbf16>
    %cst_30 = arith.constant dense<0.000000e+00> : vector<8x384xf32>
    %53 = tpu.matmul %51, %52, %cst_30 {dimension_numbers = #tpu.dot_dimension_numbers<[1], [0], [0], [1], [0, 0, 1, 1], [], []>} : vector<8x8xbf16>, vector<8x384xbf16>, vector<8x384xf32> -> vector<8x384xf32>
    %54 = arith.addf %48, %53 : vector<8x384xf32>
    %c0_31 = arith.constant 0 : index
    %c0_32 = arith.constant 0 : index
    %55 = vector.load %arg3[%c0_31, %c0_32] : memref<8x1xf32, #tpu.memory_space<vmem>>, vector<8x1xf32>
    %56 = vector.broadcast %55 : vector<8x1xf32> to vector<8x384xf32>
    %57 = arith.addf %54, %56 : vector<8x384xf32>
    %cst_33 = arith.constant 0.000000e+00 : f32
    %58 = vector.broadcast %cst_33 : f32 to vector<8x384xf32>
    %59 = arith.maximumf %57, %58 : vector<8x384xf32>
    %60 = vector.broadcast %2 : vector<1x384xf32> to vector<8x384xf32>
    %61 = arith.mulf %59, %60 : vector<8x384xf32>
    %c19_i32 = arith.constant 19 : i32
    %62 = tpu.dynamic_rotate %61 by %c19_i32 dim 1 : vector<8x384xf32>, i32 -> vector<8x384xf32>
    %c0_34 = arith.constant 0 : index
    %c0_35 = arith.constant 0 : index
    %c0_36 = arith.constant 0 : index
    %63 = vector.load %arg4[%c0_34, %c0_35, %c0_36] : memref<9x8x8xbf16, #tpu.memory_space<vmem>>, vector<1x8x8xbf16>
    %64 = vector.shape_cast %63 : vector<1x8x8xbf16> to vector<8x8xbf16>
    %65 = arith.truncf %62 : vector<8x384xf32> to vector<8x384xbf16>
    %cst_37 = arith.constant dense<0.000000e+00> : vector<8x384xf32>
    %66 = tpu.matmul %64, %65, %cst_37 {dimension_numbers = #tpu.dot_dimension_numbers<[1], [0], [0], [1], [0, 0, 1, 1], [], []>} : vector<8x8xbf16>, vector<8x384xbf16>, vector<8x384xf32> -> vector<8x384xf32>
    %c18_i32 = arith.constant 18 : i32
    %67 = tpu.dynamic_rotate %61 by %c18_i32 dim 1 : vector<8x384xf32>, i32 -> vector<8x384xf32>
    %c1_38 = arith.constant 1 : index
    %c0_39 = arith.constant 0 : index
    %c0_40 = arith.constant 0 : index
    %68 = vector.load %arg4[%c1_38, %c0_39, %c0_40] : memref<9x8x8xbf16, #tpu.memory_space<vmem>>, vector<1x8x8xbf16>
    %69 = vector.shape_cast %68 : vector<1x8x8xbf16> to vector<8x8xbf16>
    %70 = arith.truncf %67 : vector<8x384xf32> to vector<8x384xbf16>
    %cst_41 = arith.constant dense<0.000000e+00> : vector<8x384xf32>
    %71 = tpu.matmul %69, %70, %cst_41 {dimension_numbers = #tpu.dot_dimension_numbers<[1], [0], [0], [1], [0, 0, 1, 1], [], []>} : vector<8x8xbf16>, vector<8x384xbf16>, vector<8x384xf32> -> vector<8x384xf32>
    %72 = arith.addf %66, %71 : vector<8x384xf32>
    %c17_i32 = arith.constant 17 : i32
    %73 = tpu.dynamic_rotate %61 by %c17_i32 dim 1 : vector<8x384xf32>, i32 -> vector<8x384xf32>
    %c2_42 = arith.constant 2 : index
    %c0_43 = arith.constant 0 : index
    %c0_44 = arith.constant 0 : index
    %74 = vector.load %arg4[%c2_42, %c0_43, %c0_44] : memref<9x8x8xbf16, #tpu.memory_space<vmem>>, vector<1x8x8xbf16>
    %75 = vector.shape_cast %74 : vector<1x8x8xbf16> to vector<8x8xbf16>
    %76 = arith.truncf %73 : vector<8x384xf32> to vector<8x384xbf16>
    %cst_45 = arith.constant dense<0.000000e+00> : vector<8x384xf32>
    %77 = tpu.matmul %75, %76, %cst_45 {dimension_numbers = #tpu.dot_dimension_numbers<[1], [0], [0], [1], [0, 0, 1, 1], [], []>} : vector<8x8xbf16>, vector<8x384xbf16>, vector<8x384xf32> -> vector<8x384xf32>
    %78 = arith.addf %72, %77 : vector<8x384xf32>
    %c1_i32 = arith.constant 1 : i32
    %79 = tpu.dynamic_rotate %61 by %c1_i32 dim 1 : vector<8x384xf32>, i32 -> vector<8x384xf32>
    %c3_46 = arith.constant 3 : index
    %c0_47 = arith.constant 0 : index
    %c0_48 = arith.constant 0 : index
    %80 = vector.load %arg4[%c3_46, %c0_47, %c0_48] : memref<9x8x8xbf16, #tpu.memory_space<vmem>>, vector<1x8x8xbf16>
    %81 = vector.shape_cast %80 : vector<1x8x8xbf16> to vector<8x8xbf16>
    %82 = arith.truncf %79 : vector<8x384xf32> to vector<8x384xbf16>
    %cst_49 = arith.constant dense<0.000000e+00> : vector<8x384xf32>
    %83 = tpu.matmul %81, %82, %cst_49 {dimension_numbers = #tpu.dot_dimension_numbers<[1], [0], [0], [1], [0, 0, 1, 1], [], []>} : vector<8x8xbf16>, vector<8x384xbf16>, vector<8x384xf32> -> vector<8x384xf32>
    %84 = arith.addf %78, %83 : vector<8x384xf32>
    %c4_50 = arith.constant 4 : index
    %c0_51 = arith.constant 0 : index
    %c0_52 = arith.constant 0 : index
    %85 = vector.load %arg4[%c4_50, %c0_51, %c0_52] : memref<9x8x8xbf16, #tpu.memory_space<vmem>>, vector<1x8x8xbf16>
    %86 = vector.shape_cast %85 : vector<1x8x8xbf16> to vector<8x8xbf16>
    %87 = arith.truncf %61 : vector<8x384xf32> to vector<8x384xbf16>
    %cst_53 = arith.constant dense<0.000000e+00> : vector<8x384xf32>
    %88 = tpu.matmul %86, %87, %cst_53 {dimension_numbers = #tpu.dot_dimension_numbers<[1], [0], [0], [1], [0, 0, 1, 1], [], []>} : vector<8x8xbf16>, vector<8x384xbf16>, vector<8x384xf32> -> vector<8x384xf32>
    %89 = arith.addf %84, %88 : vector<8x384xf32>
    %c383_i32_54 = arith.constant 383 : i32
    %90 = tpu.dynamic_rotate %61 by %c383_i32_54 dim 1 : vector<8x384xf32>, i32 -> vector<8x384xf32>
    %c5_55 = arith.constant 5 : index
    %c0_56 = arith.constant 0 : index
    %c0_57 = arith.constant 0 : index
    %91 = vector.load %arg4[%c5_55, %c0_56, %c0_57] : memref<9x8x8xbf16, #tpu.memory_space<vmem>>, vector<1x8x8xbf16>
    %92 = vector.shape_cast %91 : vector<1x8x8xbf16> to vector<8x8xbf16>
    %93 = arith.truncf %90 : vector<8x384xf32> to vector<8x384xbf16>
    %cst_58 = arith.constant dense<0.000000e+00> : vector<8x384xf32>
    %94 = tpu.matmul %92, %93, %cst_58 {dimension_numbers = #tpu.dot_dimension_numbers<[1], [0], [0], [1], [0, 0, 1, 1], [], []>} : vector<8x8xbf16>, vector<8x384xbf16>, vector<8x384xf32> -> vector<8x384xf32>
    %95 = arith.addf %89, %94 : vector<8x384xf32>
    %c367_i32 = arith.constant 367 : i32
    %96 = tpu.dynamic_rotate %61 by %c367_i32 dim 1 : vector<8x384xf32>, i32 -> vector<8x384xf32>
    %c6_59 = arith.constant 6 : index
    %c0_60 = arith.constant 0 : index
    %c0_61 = arith.constant 0 : index
    %97 = vector.load %arg4[%c6_59, %c0_60, %c0_61] : memref<9x8x8xbf16, #tpu.memory_space<vmem>>, vector<1x8x8xbf16>
    %98 = vector.shape_cast %97 : vector<1x8x8xbf16> to vector<8x8xbf16>
    %99 = arith.truncf %96 : vector<8x384xf32> to vector<8x384xbf16>
    %cst_62 = arith.constant dense<0.000000e+00> : vector<8x384xf32>
    %100 = tpu.matmul %98, %99, %cst_62 {dimension_numbers = #tpu.dot_dimension_numbers<[1], [0], [0], [1], [0, 0, 1, 1], [], []>} : vector<8x8xbf16>, vector<8x384xbf16>, vector<8x384xf32> -> vector<8x384xf32>
    %101 = arith.addf %95, %100 : vector<8x384xf32>
    %c366_i32_63 = arith.constant 366 : i32
    %102 = tpu.dynamic_rotate %61 by %c366_i32_63 dim 1 : vector<8x384xf32>, i32 -> vector<8x384xf32>
    %c7_64 = arith.constant 7 : index
    %c0_65 = arith.constant 0 : index
    %c0_66 = arith.constant 0 : index
    %103 = vector.load %arg4[%c7_64, %c0_65, %c0_66] : memref<9x8x8xbf16, #tpu.memory_space<vmem>>, vector<1x8x8xbf16>
    %104 = vector.shape_cast %103 : vector<1x8x8xbf16> to vector<8x8xbf16>
    %105 = arith.truncf %102 : vector<8x384xf32> to vector<8x384xbf16>
    %cst_67 = arith.constant dense<0.000000e+00> : vector<8x384xf32>
    %106 = tpu.matmul %104, %105, %cst_67 {dimension_numbers = #tpu.dot_dimension_numbers<[1], [0], [0], [1], [0, 0, 1, 1], [], []>} : vector<8x8xbf16>, vector<8x384xbf16>, vector<8x384xf32> -> vector<8x384xf32>
    %107 = arith.addf %101, %106 : vector<8x384xf32>
    %c365_i32_68 = arith.constant 365 : i32
    %108 = tpu.dynamic_rotate %61 by %c365_i32_68 dim 1 : vector<8x384xf32>, i32 -> vector<8x384xf32>
    %c8_69 = arith.constant 8 : index
    %c0_70 = arith.constant 0 : index
    %c0_71 = arith.constant 0 : index
    %109 = vector.load %arg4[%c8_69, %c0_70, %c0_71] : memref<9x8x8xbf16, #tpu.memory_space<vmem>>, vector<1x8x8xbf16>
    %110 = vector.shape_cast %109 : vector<1x8x8xbf16> to vector<8x8xbf16>
    %111 = arith.truncf %108 : vector<8x384xf32> to vector<8x384xbf16>
    %cst_72 = arith.constant dense<0.000000e+00> : vector<8x384xf32>
    %112 = tpu.matmul %110, %111, %cst_72 {dimension_numbers = #tpu.dot_dimension_numbers<[1], [0], [0], [1], [0, 0, 1, 1], [], []>} : vector<8x8xbf16>, vector<8x384xbf16>, vector<8x384xf32> -> vector<8x384xf32>
    %113 = arith.addf %107, %112 : vector<8x384xf32>
    %c0_73 = arith.constant 0 : index
    %c0_74 = arith.constant 0 : index
    %114 = vector.load %arg5[%c0_73, %c0_74] : memref<8x1xf32, #tpu.memory_space<vmem>>, vector<8x1xf32>
    %115 = vector.broadcast %114 : vector<8x1xf32> to vector<8x384xf32>
    %116 = arith.addf %113, %115 : vector<8x384xf32>
    %cst_75 = arith.constant 0.000000e+00 : f32
    %117 = vector.broadcast %cst_75 : f32 to vector<8x384xf32>
    %118 = arith.maximumf %116, %117 : vector<8x384xf32>
    %c0_76 = arith.constant 0 : index
    %c0_77 = arith.constant 0 : index
    %c0_78 = arith.constant 0 : index
    %119 = vector.load %arg14[%c0_76, %c0_77, %c0_78] : memref<1x8x384xf32, #tpu.memory_space<vmem>>, vector<1x8x384xf32>
    %120 = vector.shape_cast %119 : vector<1x8x384xf32> to vector<8x384xf32>
    %121 = vector.shape_cast %118 : vector<8x384xf32> to vector<1x8x384xf32>
    tpu.vector_store %arg14[%c0_76, %c0_77, %c0_78], %121 {strides = array<i32>} : memref<1x8x384xf32, #tpu.memory_space<vmem>>, vector<1x8x384xf32>,
    %c383_i32_79 = arith.constant 383 : i32
    %122 = tpu.dynamic_rotate %118 by %c383_i32_79 dim 1 : vector<8x384xf32>, i32 -> vector<8x384xf32>
    %123 = arith.maximumf %118, %122 : vector<8x384xf32>
    %c366_i32_80 = arith.constant 366 : i32
    %124 = tpu.dynamic_rotate %123 by %c366_i32_80 dim 1 : vector<8x384xf32>, i32 -> vector<8x384xf32>
    %125 = arith.maximumf %123, %124 : vector<8x384xf32>
    %126 = arith.truncf %125 : vector<8x384xf32> to vector<8x384xbf16>
    %c0_81 = arith.constant 0 : index
    %c0_82 = arith.constant 0 : index
    %127 = vector.load %arg7[%c0_81, %c0_82] : memref<384x128xbf16, #tpu.memory_space<vmem>>, vector<384x128xbf16>
    %cst_83 = arith.constant dense<0.000000e+00> : vector<8x128xf32>
    %128 = tpu.matmul %126, %127, %cst_83 {dimension_numbers = #tpu.dot_dimension_numbers<[1], [0], [0], [1], [0, 0, 1, 1], [], []>} : vector<8x384xbf16>, vector<384x128xbf16>, vector<8x128xf32> -> vector<8x128xf32>
    %c0_84 = arith.constant 0 : index
    %c0_85 = arith.constant 0 : index
    %129 = vector.load %arg12[%c0_84, %c0_85] : memref<1x128xf32, #tpu.memory_space<vmem>>, vector<1x128xf32>
    %c0_86 = arith.constant 0 : index
    %c0_87 = arith.constant 0 : index
    %c0_88 = arith.constant 0 : index
    %130 = vector.load %arg8[%c0_86, %c0_87, %c0_88] : memref<9x16x8xbf16, #tpu.memory_space<vmem>>, vector<1x16x8xbf16>
    %131 = vector.shape_cast %130 : vector<1x16x8xbf16> to vector<16x8xbf16>
    %132 = arith.truncf %128 : vector<8x128xf32> to vector<8x128xbf16>
    %cst_89 = arith.constant dense<0.000000e+00> : vector<16x128xf32>
    %133 = tpu.matmul %131, %132, %cst_89 {dimension_numbers = #tpu.dot_dimension_numbers<[1], [0], [0], [1], [0, 0, 1, 1], [], []>} : vector<16x8xbf16>, vector<8x128xbf16>, vector<16x128xf32> -> vector<16x128xf32>
    %c127_i32 = arith.constant 127 : i32
    %134 = tpu.dynamic_rotate %128 by %c127_i32 dim 1 : vector<8x128xf32>, i32 -> vector<8x128xf32>
    %c1_90 = arith.constant 1 : index
    %c0_91 = arith.constant 0 : index
    %c0_92 = arith.constant 0 : index
    %135 = vector.load %arg8[%c1_90, %c0_91, %c0_92] : memref<9x16x8xbf16, #tpu.memory_space<vmem>>, vector<1x16x8xbf16>
    %136 = vector.shape_cast %135 : vector<1x16x8xbf16> to vector<16x8xbf16>
    %137 = arith.truncf %134 : vector<8x128xf32> to vector<8x128xbf16>
    %cst_93 = arith.constant dense<0.000000e+00> : vector<16x128xf32>
    %138 = tpu.matmul %136, %137, %cst_93 {dimension_numbers = #tpu.dot_dimension_numbers<[1], [0], [0], [1], [0, 0, 1, 1], [], []>} : vector<16x8xbf16>, vector<8x128xbf16>, vector<16x128xf32> -> vector<16x128xf32>
    %139 = arith.addf %133, %138 : vector<16x128xf32>
    %c126_i32 = arith.constant 126 : i32
    %140 = tpu.dynamic_rotate %128 by %c126_i32 dim 1 : vector<8x128xf32>, i32 -> vector<8x128xf32>
    %c2_94 = arith.constant 2 : index
    %c0_95 = arith.constant 0 : index
    %c0_96 = arith.constant 0 : index
    %141 = vector.load %arg8[%c2_94, %c0_95, %c0_96] : memref<9x16x8xbf16, #tpu.memory_space<vmem>>, vector<1x16x8xbf16>
    %142 = vector.shape_cast %141 : vector<1x16x8xbf16> to vector<16x8xbf16>
    %143 = arith.truncf %140 : vector<8x128xf32> to vector<8x128xbf16>
    %cst_97 = arith.constant dense<0.000000e+00> : vector<16x128xf32>
    %144 = tpu.matmul %142, %143, %cst_97 {dimension_numbers = #tpu.dot_dimension_numbers<[1], [0], [0], [1], [0, 0, 1, 1], [], []>} : vector<16x8xbf16>, vector<8x128xbf16>, vector<16x128xf32> -> vector<16x128xf32>
    %145 = arith.addf %139, %144 : vector<16x128xf32>
    %c118_i32 = arith.constant 118 : i32
    %146 = tpu.dynamic_rotate %128 by %c118_i32 dim 1 : vector<8x128xf32>, i32 -> vector<8x128xf32>
    %c3_98 = arith.constant 3 : index
    %c0_99 = arith.constant 0 : index
    %c0_100 = arith.constant 0 : index
    %147 = vector.load %arg8[%c3_98, %c0_99, %c0_100] : memref<9x16x8xbf16, #tpu.memory_space<vmem>>, vector<1x16x8xbf16>
    %148 = vector.shape_cast %147 : vector<1x16x8xbf16> to vector<16x8xbf16>
    %149 = arith.truncf %146 : vector<8x128xf32> to vector<8x128xbf16>
    %cst_101 = arith.constant dense<0.000000e+00> : vector<16x128xf32>
    %150 = tpu.matmul %148, %149, %cst_101 {dimension_numbers = #tpu.dot_dimension_numbers<[1], [0], [0], [1], [0, 0, 1, 1], [], []>} : vector<16x8xbf16>, vector<8x128xbf16>, vector<16x128xf32> -> vector<16x128xf32>
    %151 = arith.addf %145, %150 : vector<16x128xf32>
    %c117_i32 = arith.constant 117 : i32
    %152 = tpu.dynamic_rotate %128 by %c117_i32 dim 1 : vector<8x128xf32>, i32 -> vector<8x128xf32>
    %c4_102 = arith.constant 4 : index
    %c0_103 = arith.constant 0 : index
    %c0_104 = arith.constant 0 : index
    %153 = vector.load %arg8[%c4_102, %c0_103, %c0_104] : memref<9x16x8xbf16, #tpu.memory_space<vmem>>, vector<1x16x8xbf16>
    %154 = vector.shape_cast %153 : vector<1x16x8xbf16> to vector<16x8xbf16>
    %155 = arith.truncf %152 : vector<8x128xf32> to vector<8x128xbf16>
    %cst_105 = arith.constant dense<0.000000e+00> : vector<16x128xf32>
    %156 = tpu.matmul %154, %155, %cst_105 {dimension_numbers = #tpu.dot_dimension_numbers<[1], [0], [0], [1], [0, 0, 1, 1], [], []>} : vector<16x8xbf16>, vector<8x128xbf16>, vector<16x128xf32> -> vector<16x128xf32>
    %157 = arith.addf %151, %156 : vector<16x128xf32>
    %c116_i32 = arith.constant 116 : i32
    %158 = tpu.dynamic_rotate %128 by %c116_i32 dim 1 : vector<8x128xf32>, i32 -> vector<8x128xf32>
    %c5_106 = arith.constant 5 : index
    %c0_107 = arith.constant 0 : index
    %c0_108 = arith.constant 0 : index
    %159 = vector.load %arg8[%c5_106, %c0_107, %c0_108] : memref<9x16x8xbf16, #tpu.memory_space<vmem>>, vector<1x16x8xbf16>
    %160 = vector.shape_cast %159 : vector<1x16x8xbf16> to vector<16x8xbf16>
    %161 = arith.truncf %158 : vector<8x128xf32> to vector<8x128xbf16>
    %cst_109 = arith.constant dense<0.000000e+00> : vector<16x128xf32>
    %162 = tpu.matmul %160, %161, %cst_109 {dimension_numbers = #tpu.dot_dimension_numbers<[1], [0], [0], [1], [0, 0, 1, 1], [], []>} : vector<16x8xbf16>, vector<8x128xbf16>, vector<16x128xf32> -> vector<16x128xf32>
    %163 = arith.addf %157, %162 : vector<16x128xf32>
    %c108_i32 = arith.constant 108 : i32
    %164 = tpu.dynamic_rotate %128 by %c108_i32 dim 1 : vector<8x128xf32>, i32 -> vector<8x128xf32>
    %c6_110 = arith.constant 6 : index
    %c0_111 = arith.constant 0 : index
    %c0_112 = arith.constant 0 : index
    %165 = vector.load %arg8[%c6_110, %c0_111, %c0_112] : memref<9x16x8xbf16, #tpu.memory_space<vmem>>, vector<1x16x8xbf16>
    %166 = vector.shape_cast %165 : vector<1x16x8xbf16> to vector<16x8xbf16>
    %167 = arith.truncf %164 : vector<8x128xf32> to vector<8x128xbf16>
    %cst_113 = arith.constant dense<0.000000e+00> : vector<16x128xf32>
    %168 = tpu.matmul %166, %167, %cst_113 {dimension_numbers = #tpu.dot_dimension_numbers<[1], [0], [0], [1], [0, 0, 1, 1], [], []>} : vector<16x8xbf16>, vector<8x128xbf16>, vector<16x128xf32> -> vector<16x128xf32>
    %169 = arith.addf %163, %168 : vector<16x128xf32>
    %c107_i32 = arith.constant 107 : i32
    %170 = tpu.dynamic_rotate %128 by %c107_i32 dim 1 : vector<8x128xf32>, i32 -> vector<8x128xf32>
    %c7_114 = arith.constant 7 : index
    %c0_115 = arith.constant 0 : index
    %c0_116 = arith.constant 0 : index
    %171 = vector.load %arg8[%c7_114, %c0_115, %c0_116] : memref<9x16x8xbf16, #tpu.memory_space<vmem>>, vector<1x16x8xbf16>
    %172 = vector.shape_cast %171 : vector<1x16x8xbf16> to vector<16x8xbf16>
    %173 = arith.truncf %170 : vector<8x128xf32> to vector<8x128xbf16>
    %cst_117 = arith.constant dense<0.000000e+00> : vector<16x128xf32>
    %174 = tpu.matmul %172, %173, %cst_117 {dimension_numbers = #tpu.dot_dimension_numbers<[1], [0], [0], [1], [0, 0, 1, 1], [], []>} : vector<16x8xbf16>, vector<8x128xbf16>, vector<16x128xf32> -> vector<16x128xf32>
    %175 = arith.addf %169, %174 : vector<16x128xf32>
    %c106_i32 = arith.constant 106 : i32
    %176 = tpu.dynamic_rotate %128 by %c106_i32 dim 1 : vector<8x128xf32>, i32 -> vector<8x128xf32>
    %c8_118 = arith.constant 8 : index
    %c0_119 = arith.constant 0 : index
    %c0_120 = arith.constant 0 : index
    %177 = vector.load %arg8[%c8_118, %c0_119, %c0_120] : memref<9x16x8xbf16, #tpu.memory_space<vmem>>, vector<1x16x8xbf16>
    %178 = vector.shape_cast %177 : vector<1x16x8xbf16> to vector<16x8xbf16>
    %179 = arith.truncf %176 : vector<8x128xf32> to vector<8x128xbf16>
    %cst_121 = arith.constant dense<0.000000e+00> : vector<16x128xf32>
    %180 = tpu.matmul %178, %179, %cst_121 {dimension_numbers = #tpu.dot_dimension_numbers<[1], [0], [0], [1], [0, 0, 1, 1], [], []>} : vector<16x8xbf16>, vector<8x128xbf16>, vector<16x128xf32> -> vector<16x128xf32>
    %181 = arith.addf %175, %180 : vector<16x128xf32>
    %c0_122 = arith.constant 0 : index
    %c0_123 = arith.constant 0 : index
    %182 = vector.load %arg9[%c0_122, %c0_123] : memref<16x1xf32, #tpu.memory_space<vmem>>, vector<16x1xf32>
    %183 = vector.broadcast %182 : vector<16x1xf32> to vector<16x128xf32>
    %184 = arith.addf %181, %183 : vector<16x128xf32>
    %cst_124 = arith.constant 0.000000e+00 : f32
    %185 = vector.broadcast %cst_124 : f32 to vector<16x128xf32>
    %186 = arith.maximumf %184, %185 : vector<16x128xf32>
    %187 = vector.broadcast %129 : vector<1x128xf32> to vector<16x128xf32>
    %188 = arith.mulf %186, %187 : vector<16x128xf32>
    %c11_i32 = arith.constant 11 : i32
    %189 = tpu.dynamic_rotate %188 by %c11_i32 dim 1 : vector<16x128xf32>, i32 -> vector<16x128xf32>
    %c0_125 = arith.constant 0 : index
    %c0_126 = arith.constant 0 : index
    %c0_127 = arith.constant 0 : index
    %190 = vector.load %arg10[%c0_125, %c0_126, %c0_127] : memref<9x16x16xbf16, #tpu.memory_space<vmem>>, vector<1x16x16xbf16>
    %191 = vector.shape_cast %190 : vector<1x16x16xbf16> to vector<16x16xbf16>
    %192 = arith.truncf %189 : vector<16x128xf32> to vector<16x128xbf16>
    %cst_128 = arith.constant dense<0.000000e+00> : vector<16x128xf32>
    %193 = tpu.matmul %191, %192, %cst_128 {dimension_numbers = #tpu.dot_dimension_numbers<[1], [0], [0], [1], [0, 0, 1, 1], [], []>} : vector<16x16xbf16>, vector<16x128xbf16>, vector<16x128xf32> -> vector<16x128xf32>
    %c10_i32 = arith.constant 10 : i32
    %194 = tpu.dynamic_rotate %188 by %c10_i32 dim 1 : vector<16x128xf32>, i32 -> vector<16x128xf32>
    %c1_129 = arith.constant 1 : index
    %c0_130 = arith.constant 0 : index
    %c0_131 = arith.constant 0 : index
    %195 = vector.load %arg10[%c1_129, %c0_130, %c0_131] : memref<9x16x16xbf16, #tpu.memory_space<vmem>>, vector<1x16x16xbf16>
    %196 = vector.shape_cast %195 : vector<1x16x16xbf16> to vector<16x16xbf16>
    %197 = arith.truncf %194 : vector<16x128xf32> to vector<16x128xbf16>
    %cst_132 = arith.constant dense<0.000000e+00> : vector<16x128xf32>
    %198 = tpu.matmul %196, %197, %cst_132 {dimension_numbers = #tpu.dot_dimension_numbers<[1], [0], [0], [1], [0, 0, 1, 1], [], []>} : vector<16x16xbf16>, vector<16x128xbf16>, vector<16x128xf32> -> vector<16x128xf32>
    %199 = arith.addf %193, %198 : vector<16x128xf32>
    %c9_i32 = arith.constant 9 : i32
    %200 = tpu.dynamic_rotate %188 by %c9_i32 dim 1 : vector<16x128xf32>, i32 -> vector<16x128xf32>
    %c2_133 = arith.constant 2 : index
    %c0_134 = arith.constant 0 : index
    %c0_135 = arith.constant 0 : index
    %201 = vector.load %arg10[%c2_133, %c0_134, %c0_135] : memref<9x16x16xbf16, #tpu.memory_space<vmem>>, vector<1x16x16xbf16>
    %202 = vector.shape_cast %201 : vector<1x16x16xbf16> to vector<16x16xbf16>
    %203 = arith.truncf %200 : vector<16x128xf32> to vector<16x128xbf16>
    %cst_136 = arith.constant dense<0.000000e+00> : vector<16x128xf32>
    %204 = tpu.matmul %202, %203, %cst_136 {dimension_numbers = #tpu.dot_dimension_numbers<[1], [0], [0], [1], [0, 0, 1, 1], [], []>} : vector<16x16xbf16>, vector<16x128xbf16>, vector<16x128xf32> -> vector<16x128xf32>
    %205 = arith.addf %199, %204 : vector<16x128xf32>
    %c1_i32_137 = arith.constant 1 : i32
    %206 = tpu.dynamic_rotate %188 by %c1_i32_137 dim 1 : vector<16x128xf32>, i32 -> vector<16x128xf32>
    %c3_138 = arith.constant 3 : index
    %c0_139 = arith.constant 0 : index
    %c0_140 = arith.constant 0 : index
    %207 = vector.load %arg10[%c3_138, %c0_139, %c0_140] : memref<9x16x16xbf16, #tpu.memory_space<vmem>>, vector<1x16x16xbf16>
    %208 = vector.shape_cast %207 : vector<1x16x16xbf16> to vector<16x16xbf16>
    %209 = arith.truncf %206 : vector<16x128xf32> to vector<16x128xbf16>
    %cst_141 = arith.constant dense<0.000000e+00> : vector<16x128xf32>
    %210 = tpu.matmul %208, %209, %cst_141 {dimension_numbers = #tpu.dot_dimension_numbers<[1], [0], [0], [1], [0, 0, 1, 1], [], []>} : vector<16x16xbf16>, vector<16x128xbf16>, vector<16x128xf32> -> vector<16x128xf32>
    %211 = arith.addf %205, %210 : vector<16x128xf32>
    %c4_142 = arith.constant 4 : index
    %c0_143 = arith.constant 0 : index
    %c0_144 = arith.constant 0 : index
    %212 = vector.load %arg10[%c4_142, %c0_143, %c0_144] : memref<9x16x16xbf16, #tpu.memory_space<vmem>>, vector<1x16x16xbf16>
    %213 = vector.shape_cast %212 : vector<1x16x16xbf16> to vector<16x16xbf16>
    %214 = arith.truncf %188 : vector<16x128xf32> to vector<16x128xbf16>
    %cst_145 = arith.constant dense<0.000000e+00> : vector<16x128xf32>
    %215 = tpu.matmul %213, %214, %cst_145 {dimension_numbers = #tpu.dot_dimension_numbers<[1], [0], [0], [1], [0, 0, 1, 1], [], []>} : vector<16x16xbf16>, vector<16x128xbf16>, vector<16x128xf32> -> vector<16x128xf32>
    %216 = arith.addf %211, %215 : vector<16x128xf32>
    %c127_i32_146 = arith.constant 127 : i32
    %217 = tpu.dynamic_rotate %188 by %c127_i32_146 dim 1 : vector<16x128xf32>, i32 -> vector<16x128xf32>
    %c5_147 = arith.constant 5 : index
    %c0_148 = arith.constant 0 : index
    %c0_149 = arith.constant 0 : index
    %218 = vector.load %arg10[%c5_147, %c0_148, %c0_149] : memref<9x16x16xbf16, #tpu.memory_space<vmem>>, vector<1x16x16xbf16>
    %219 = vector.shape_cast %218 : vector<1x16x16xbf16> to vector<16x16xbf16>
    %220 = arith.truncf %217 : vector<16x128xf32> to vector<16x128xbf16>
    %cst_150 = arith.constant dense<0.000000e+00> : vector<16x128xf32>
    %221 = tpu.matmul %219, %220, %cst_150 {dimension_numbers = #tpu.dot_dimension_numbers<[1], [0], [0], [1], [0, 0, 1, 1], [], []>} : vector<16x16xbf16>, vector<16x128xbf16>, vector<16x128xf32> -> vector<16x128xf32>
    %222 = arith.addf %216, %221 : vector<16x128xf32>
    %c119_i32 = arith.constant 119 : i32
    %223 = tpu.dynamic_rotate %188 by %c119_i32 dim 1 : vector<16x128xf32>, i32 -> vector<16x128xf32>
    %c6_151 = arith.constant 6 : index
    %c0_152 = arith.constant 0 : index
    %c0_153 = arith.constant 0 : index
    %224 = vector.load %arg10[%c6_151, %c0_152, %c0_153] : memref<9x16x16xbf16, #tpu.memory_space<vmem>>, vector<1x16x16xbf16>
    %225 = vector.shape_cast %224 : vector<1x16x16xbf16> to vector<16x16xbf16>
    %226 = arith.truncf %223 : vector<16x128xf32> to vector<16x128xbf16>
    %cst_154 = arith.constant dense<0.000000e+00> : vector<16x128xf32>
    %227 = tpu.matmul %225, %226, %cst_154 {dimension_numbers = #tpu.dot_dimension_numbers<[1], [0], [0], [1], [0, 0, 1, 1], [], []>} : vector<16x16xbf16>, vector<16x128xbf16>, vector<16x128xf32> -> vector<16x128xf32>
    %228 = arith.addf %222, %227 : vector<16x128xf32>
    %c118_i32_155 = arith.constant 118 : i32
    %229 = tpu.dynamic_rotate %188 by %c118_i32_155 dim 1 : vector<16x128xf32>, i32 -> vector<16x128xf32>
    %c7_156 = arith.constant 7 : index
    %c0_157 = arith.constant 0 : index
    %c0_158 = arith.constant 0 : index
    %230 = vector.load %arg10[%c7_156, %c0_157, %c0_158] : memref<9x16x16xbf16, #tpu.memory_space<vmem>>, vector<1x16x16xbf16>
    %231 = vector.shape_cast %230 : vector<1x16x16xbf16> to vector<16x16xbf16>
    %232 = arith.truncf %229 : vector<16x128xf32> to vector<16x128xbf16>
    %cst_159 = arith.constant dense<0.000000e+00> : vector<16x128xf32>
    %233 = tpu.matmul %231, %232, %cst_159 {dimension_numbers = #tpu.dot_dimension_numbers<[1], [0], [0], [1], [0, 0, 1, 1], [], []>} : vector<16x16xbf16>, vector<16x128xbf16>, vector<16x128xf32> -> vector<16x128xf32>
    %234 = arith.addf %228, %233 : vector<16x128xf32>
    %c117_i32_160 = arith.constant 117 : i32
    %235 = tpu.dynamic_rotate %188 by %c117_i32_160 dim 1 : vector<16x128xf32>, i32 -> vector<16x128xf32>
    %c8_161 = arith.constant 8 : index
    %c0_162 = arith.constant 0 : index
    %c0_163 = arith.constant 0 : index
    %236 = vector.load %arg10[%c8_161, %c0_162, %c0_163] : memref<9x16x16xbf16, #tpu.memory_space<vmem>>, vector<1x16x16xbf16>
    %237 = vector.shape_cast %236 : vector<1x16x16xbf16> to vector<16x16xbf16>
    %238 = arith.truncf %235 : vector<16x128xf32> to vector<16x128xbf16>
    %cst_164 = arith.constant dense<0.000000e+00> : vector<16x128xf32>
    %239 = tpu.matmul %237, %238, %cst_164 {dimension_numbers = #tpu.dot_dimension_numbers<[1], [0], [0], [1], [0, 0, 1, 1], [], []>} : vector<16x16xbf16>, vector<16x128xbf16>, vector<16x128xf32> -> vector<16x128xf32>
    %240 = arith.addf %234, %239 : vector<16x128xf32>
    %c0_165 = arith.constant 0 : index
    %c0_166 = arith.constant 0 : index
    %241 = vector.load %arg11[%c0_165, %c0_166] : memref<16x1xf32, #tpu.memory_space<vmem>>, vector<16x1xf32>
    %242 = vector.broadcast %241 : vector<16x1xf32> to vector<16x128xf32>
    %243 = arith.addf %240, %242 : vector<16x128xf32>
    %cst_167 = arith.constant 0.000000e+00 : f32
    %244 = vector.broadcast %cst_167 : f32 to vector<16x128xf32>
    %245 = arith.maximumf %243, %244 : vector<16x128xf32>
    %c0_168 = arith.constant 0 : index
    %c0_169 = arith.constant 0 : index
    %c0_170 = arith.constant 0 : index
    %246 = vector.load %arg15[%c0_168, %c0_169, %c0_170] : memref<1x16x128xf32, #tpu.memory_space<vmem>>, vector<1x16x128xf32>
    %247 = vector.shape_cast %246 : vector<1x16x128xf32> to vector<16x128xf32>
    %248 = vector.shape_cast %245 : vector<16x128xf32> to vector<1x16x128xf32>
    tpu.vector_store %arg15[%c0_168, %c0_169, %c0_170], %248 {strides = array<i32>} : memref<1x16x128xf32, #tpu.memory_space<vmem>>, vector<1x16x128xf32>,
    %c127_i32_171 = arith.constant 127 : i32
    %249 = tpu.dynamic_rotate %245 by %c127_i32_171 dim 1 : vector<16x128xf32>, i32 -> vector<16x128xf32>
    %250 = arith.maximumf %245, %249 : vector<16x128xf32>
    %c118_i32_172 = arith.constant 118 : i32
    %251 = tpu.dynamic_rotate %250 by %c118_i32_172 dim 1 : vector<16x128xf32>, i32 -> vector<16x128xf32>
    %252 = arith.maximumf %250, %251 : vector<16x128xf32>
    %253 = arith.truncf %252 : vector<16x128xf32> to vector<16x128xbf16>
    %c0_173 = arith.constant 0 : index
    %c0_174 = arith.constant 0 : index
    %254 = vector.load %arg13[%c0_173, %c0_174] : memref<128x16xbf16, #tpu.memory_space<vmem>>, vector<128x16xbf16>
    %cst_175 = arith.constant dense<0.000000e+00> : vector<16x16xf32>
    %255 = tpu.matmul %253, %254, %cst_175 {dimension_numbers = #tpu.dot_dimension_numbers<[1], [0], [0], [1], [0, 0, 1, 1], [], []>} : vector<16x128xbf16>, vector<128x16xbf16>, vector<16x16xf32> -> vector<16x16xf32>
    %c0_176 = arith.constant 0 : index
    %c0_177 = arith.constant 0 : index
    %c0_178 = arith.constant 0 : index
    %256 = vector.load %arg16[%c0_176, %c0_177, %c0_178] : memref<1x16x16xf32, #tpu.memory_space<vmem>>, vector<1x16x16xf32>
    %257 = vector.shape_cast %256 : vector<1x16x16xf32> to vector<16x16xf32>
    %258 = vector.shape_cast %255 : vector<16x16xf32> to vector<1x16x16xf32>
    tpu.vector_store %arg16[%c0_176, %c0_177, %c0_178], %258 {strides = array<i32>} : memref<1x16x16xf32, #tpu.memory_space<vmem>>, vector<1x16x16xf32>,
    return
  }
  func.func @transform_0(%arg0: i32) -> (i32, i32, i32) {
    %c0_i32 = arith.constant 0 : i32
    %c0_i32_0 = arith.constant 0 : i32
    %c0_i32_1 = arith.constant 0 : i32
    return %arg0, %c0_i32, %c0_i32_0 : i32, i32, i32
  }
  func.func @transform_1(%arg0: i32) -> (i32, i32, i32) {
    %c0_i32 = arith.constant 0 : i32
    %c0_i32_0 = arith.constant 0 : i32
    %c0_i32_1 = arith.constant 0 : i32
    %c0_i32_2 = arith.constant 0 : i32
    return %c0_i32, %c0_i32_0, %c0_i32_1 : i32, i32, i32
  }
  func.func @transform_2(%arg0: i32) -> (i32, i32) {
    %c0_i32 = arith.constant 0 : i32
    %c0_i32_0 = arith.constant 0 : i32
    %c0_i32_1 = arith.constant 0 : i32
    return %c0_i32, %c0_i32_0 : i32, i32
  }
  func.func @transform_3(%arg0: i32) -> (i32, i32, i32) {
    %c0_i32 = arith.constant 0 : i32
    %c0_i32_0 = arith.constant 0 : i32
    %c0_i32_1 = arith.constant 0 : i32
    %c0_i32_2 = arith.constant 0 : i32
    return %c0_i32, %c0_i32_0, %c0_i32_1 : i32, i32, i32
  }
  func.func @transform_4(%arg0: i32) -> (i32, i32) {
    %c0_i32 = arith.constant 0 : i32
    %c0_i32_0 = arith.constant 0 : i32
    %c0_i32_1 = arith.constant 0 : i32
    return %c0_i32, %c0_i32_0 : i32, i32
  }
  func.func @transform_5(%arg0: i32) -> (i32, i32) {
    %c0_i32 = arith.constant 0 : i32
    %c0_i32_0 = arith.constant 0 : i32
    %c0_i32_1 = arith.constant 0 : i32
    return %c0_i32, %c0_i32_0 : i32, i32
  }
  func.func @transform_6(%arg0: i32) -> (i32, i32) {
    %c0_i32 = arith.constant 0 : i32
    %c0_i32_0 = arith.constant 0 : i32
    %c0_i32_1 = arith.constant 0 : i32
    return %c0_i32, %c0_i32_0 : i32, i32
  }
  func.func @transform_7(%arg0: i32) -> (i32, i32, i32) {
    %c0_i32 = arith.constant 0 : i32
    %c0_i32_0 = arith.constant 0 : i32
    %c0_i32_1 = arith.constant 0 : i32
    %c0_i32_2 = arith.constant 0 : i32
    return %c0_i32, %c0_i32_0, %c0_i32_1 : i32, i32, i32
  }
  func.func @transform_8(%arg0: i32) -> (i32, i32) {
    %c0_i32 = arith.constant 0 : i32
    %c0_i32_0 = arith.constant 0 : i32
    %c0_i32_1 = arith.constant 0 : i32
    return %c0_i32, %c0_i32_0 : i32, i32
  }
  func.func @transform_9(%arg0: i32) -> (i32, i32, i32) {
    %c0_i32 = arith.constant 0 : i32
    %c0_i32_0 = arith.constant 0 : i32
    %c0_i32_1 = arith.constant 0 : i32
    %c0_i32_2 = arith.constant 0 : i32
    return %c0_i32, %c0_i32_0, %c0_i32_1 : i32, i32, i32
  }
  func.func @transform_10(%arg0: i32) -> (i32, i32) {
    %c0_i32 = arith.constant 0 : i32
    %c0_i32_0 = arith.constant 0 : i32
    %c0_i32_1 = arith.constant 0 : i32
    return %c0_i32, %c0_i32_0 : i32, i32
  }
  func.func @transform_11(%arg0: i32) -> (i32, i32) {
    %c0_i32 = arith.constant 0 : i32
    %c0_i32_0 = arith.constant 0 : i32
    %c0_i32_1 = arith.constant 0 : i32
    return %c0_i32, %c0_i32_0 : i32, i32
  }
  func.func @transform_12(%arg0: i32) -> (i32, i32) {
    %c0_i32 = arith.constant 0 : i32
    %c0_i32_0 = arith.constant 0 : i32
    %c0_i32_1 = arith.constant 0 : i32
    return %c0_i32, %c0_i32_0 : i32, i32
  }
  func.func @transform_13(%arg0: i32) -> (i32, i32, i32) {
    %c0_i32 = arith.constant 0 : i32
    %c0_i32_0 = arith.constant 0 : i32
    %c0_i32_1 = arith.constant 0 : i32
    return %arg0, %c0_i32, %c0_i32_0 : i32, i32, i32
  }
  func.func @transform_14(%arg0: i32) -> (i32, i32, i32) {
    %c0_i32 = arith.constant 0 : i32
    %c0_i32_0 = arith.constant 0 : i32
    %c0_i32_1 = arith.constant 0 : i32
    return %arg0, %c0_i32, %c0_i32_0 : i32, i32, i32
  }
  func.func @transform_15(%arg0: i32) -> (i32, i32, i32) {
    %c0_i32 = arith.constant 0 : i32
    %c0_i32_0 = arith.constant 0 : i32
    %c0_i32_1 = arith.constant 0 : i32
    return %arg0, %c0_i32, %c0_i32_0 : i32, i32, i32
  }
}

</mosaic_0001>

<llo_original>
// kernel: encoder_forward.1
$region0: #{encoder_forward.1}
  #allocation0 [shape = 'u32[]', space=smem, size = 0x4, offset = 0x4, fixed_abs, tag = 'smem constant byte address 0x4 - core index']
  #allocation1 [shape = 'u32[144,128]{1,0:T(1,128)}', space=vmem, size = 0x12000, scoped, tag = 'internal scratch']
  %s0 = inlined_call_operand.vmem [shape: f32[2,8,384], index: 0, kind: input, shape index: {}]
  %s1 = inlined_call_operand.vmem [shape: bf16[9,8,8], index: 1, kind: input, shape index: {}]
  %s2 = inlined_call_operand.vmem [shape: f32[8,1], index: 2, kind: input, shape index: {}]
  %s3 = inlined_call_operand.vmem [shape: bf16[9,8,8], index: 3, kind: input, shape index: {}]
  %s4 = inlined_call_operand.vmem [shape: f32[8,1], index: 4, kind: input, shape index: {}]
  %s5 = inlined_call_operand.vmem [shape: f32[1,384], index: 5, kind: input, shape index: {}]
  %s6 = inlined_call_operand.vmem [shape: bf16[384,128], index: 6, kind: input, shape index: {}]
  %s7 = inlined_call_operand.vmem [shape: bf16[9,16,8], index: 7, kind: input, shape index: {}]
  %s8 = inlined_call_operand.vmem [shape: f32[16,1], index: 8, kind: input, shape index: {}]
  %s9 = inlined_call_operand.vmem [shape: bf16[9,16,16], index: 9, kind: input, shape index: {}]
  %s10 = inlined_call_operand.vmem [shape: f32[16,1], index: 10, kind: input, shape index: {}]
  %s11 = inlined_call_operand.vmem [shape: f32[1,128], index: 11, kind: input, shape index: {}]
  %s12 = inlined_call_operand.vmem [shape: bf16[128,16], index: 12, kind: input, shape index: {}]
  %s13 = inlined_call_operand.vmem [shape: f32[2,8,384], index: 13, kind: output, shape index: {0}]
  %s14 = inlined_call_operand.vmem [shape: f32[2,16,128], index: 14, kind: output, shape index: {1}]
  %s15 = inlined_call_operand.vmem [shape: f32[2,16,16], index: 15, kind: output, shape index: {2}]
  %16 = xla_tuple %s13, %s14, %s15
  %s17 = sld [smem:[#allocation0]]
  $region101: #{encoder_forward.1} parent=0
    _
  %s19 = ssub.s32 1, %s17
  %s20 = scalar_select 0, %s19, %s17
  loop: start=0, step=1, limit=4
  $region2: #{encoder_forward.1} parent=0 // loop_pre_header
    _
  $region3: #{encoder_forward.1} parent=0 // loop_header
    %s22 = sphi 0, %s26
    %p23 = scmp.ge.s32.totalorder %s22, 4
    %s32 = sphi 0, %s34
    %s35 = sphi 0, %s32
    %s36 = sphi 0, %s35
    %s52 = sphi 0, %s36
    %s56 = sphi 0, %s56
    %s58 = sphi 0, %s56
    %s59 = sphi 0, %s58
    %s73 = sphi 0, %s59
    %s77 = sphi 0, %s77
    %s79 = sphi 0, %s77
    %s80 = sphi 0, %s79
    %s94 = sphi 0, %s80
    %s98 = sphi 0, %s98
    %s100 = sphi 0, %s98
    %s101 = sphi 0, %s100
    %s115 = sphi 0, %s101
    %s119 = sphi 0, %s119
    %s121 = sphi 0, %s119
    %s122 = sphi 0, %s121
    %s136 = sphi 0, %s122
    %s140 = sphi 0, %s140
    %s142 = sphi 0, %s140
    %s143 = sphi 0, %s142
    %s157 = sphi 0, %s143
    %s161 = sphi 0, %s161
    %s163 = sphi 0, %s161
    %s164 = sphi 0, %s163
    %s178 = sphi 0, %s164
    %s182 = sphi 0, %s182
    %s184 = sphi 0, %s182
    %s185 = sphi 0, %s184
    %s199 = sphi 0, %s185
    %s203 = sphi 0, %s203
    %s205 = sphi 0, %s203
    %s206 = sphi 0, %s205
    %s220 = sphi 0, %s206
    %s224 = sphi 0, %s224
    %s226 = sphi 0, %s224
    %s227 = sphi 0, %s226
    %s241 = sphi 0, %s227
    %s245 = sphi 0, %s245
    %s247 = sphi 0, %s245
    %s248 = sphi 0, %s247
    %s262 = sphi 0, %s248
    %s266 = sphi 0, %s266
    %s268 = sphi 0, %s266
    %s269 = sphi 0, %s268
    %s283 = sphi 0, %s269
    %s287 = sphi 0, %s287
    %s289 = sphi 0, %s287
    %s290 = sphi 0, %s289
    %s304 = sphi 0, %s290
    %s310 = sphi 0, %s312
    %s313 = sphi 0, %s310
    %s314 = sphi 0, %s313
    %s330 = sphi 0, %s314
    %s336 = sphi 0, %s338
    %s339 = sphi 0, %s336
    %s340 = sphi 0, %s339
    %s356 = sphi 0, %s340
    %s362 = sphi 0, %s364
    %s365 = sphi 0, %s362
    %s366 = sphi 0, %s365
    %s382 = sphi 0, %s366
  $region4: #{encoder_forward.1} parent=0 // loop_header_branch
    %25 = sbr.rel (%p23) target = $region8
  $region5: #{encoder_forward.1} parent=0 // loop_body
    %s27 = ssub.s32 %s22, 1
    %s28 = ssub.s32 %s22, 2
    %s29 = sadd.s32 %s22, 1
    %s30 = ssub.s32 %s22, %s29
    %p31 = scmp.eq.s32.totalorder %s30, 0
    %s33 = sadd.s32 %s32, 1
    %s34 = scalar_select %p31, %s32, %s33
    %p37 = pneg %p31
    %p38 = scmp.eq.s32.totalorder %s22, 1
    %p39 = por %p37, %p38
    %p40 = scmp.ne.s32.totalorder %s32, %s35
    %p41 = scmp.eq.s32.totalorder %s22, 0
    %p42 = por %p40, %p41
    %p43 = scmp.ne.s32.totalorder %s32, %s35
    %p44 = scmp.eq.s32.totalorder %s27, 1
    %p45 = por %p43, %p44
    %p46 = scmp.ne.s32.totalorder %s35, %s36
    %p47 = scmp.eq.s32.totalorder %s27, 0
    %p48 = por %p46, %p47
    %p49 = scmp.ne.s32.totalorder %s35, %s36
    %p50 = scmp.eq.s32.totalorder %s28, 1
    %p51 = por %p49, %p50
    %p53 = scmp.ne.s32.totalorder %s36, %s52
    %p54 = scmp.eq.s32.totalorder %s28, 0
    %p55 = por %p53, %p54
    %s57 = sadd.s32 %s56, 1
    %p60 = scmp.eq.s32.totalorder %s22, 1
    %p61 = scmp.ne.s32.totalorder %s56, %s58
    %p62 = scmp.eq.s32.totalorder %s22, 0
    %p63 = por %p61, %p62
    %p64 = scmp.ne.s32.totalorder %s56, %s58
    %p65 = scmp.eq.s32.totalorder %s27, 1
    %p66 = por %p64, %p65
    %p67 = scmp.ne.s32.totalorder %s58, %s59
    %p68 = scmp.eq.s32.totalorder %s27, 0
    %p69 = por %p67, %p68
    %p70 = scmp.ne.s32.totalorder %s58, %s59
    %p71 = scmp.eq.s32.totalorder %s28, 1
    %p72 = por %p70, %p71
    %p74 = scmp.ne.s32.totalorder %s59, %s73
    %p75 = scmp.eq.s32.totalorder %s28, 0
    %p76 = por %p74, %p75
    %s78 = sadd.s32 %s77, 1
    %p81 = scmp.eq.s32.totalorder %s22, 1
    %p82 = scmp.ne.s32.totalorder %s77, %s79
    %p83 = scmp.eq.s32.totalorder %s22, 0
    %p84 = por %p82, %p83
    %p85 = scmp.ne.s32.totalorder %s77, %s79
    %p86 = scmp.eq.s32.totalorder %s27, 1
    %p87 = por %p85, %p86
    %p88 = scmp.ne.s32.totalorder %s79, %s80
    %p89 = scmp.eq.s32.totalorder %s27, 0
    %p90 = por %p88, %p89
    %p91 = scmp.ne.s32.totalorder %s79, %s80
    %p92 = scmp.eq.s32.totalorder %s28, 1
    %p93 = por %p91, %p92
    %p95 = scmp.ne.s32.totalorder %s80, %s94
    %p96 = scmp.eq.s32.totalorder %s28, 0
    %p97 = por %p95, %p96
    %s99 = sadd.s32 %s98, 1
    %p102 = scmp.eq.s32.totalorder %s22, 1
    %p103 = scmp.ne.s32.totalorder %s98, %s100
    %p104 = scmp.eq.s32.totalorder %s22, 0
    %p105 = por %p103, %p104
    %p106 = scmp.ne.s32.totalorder %s98, %s100
    %p107 = scmp.eq.s32.totalorder %s27, 1
    %p108 = por %p106, %p107
    %p109 = scmp.ne.s32.totalorder %s100, %s101
    %p110 = scmp.eq.s32.totalorder %s27, 0
    %p111 = por %p109, %p110
    %p112 = scmp.ne.s32.totalorder %s100, %s101
    %p113 = scmp.eq.s32.totalorder %s28, 1
    %p114 = por %p112, %p113
    %p116 = scmp.ne.s32.totalorder %s101, %s115
    %p117 = scmp.eq.s32.totalorder %s28, 0
    %p118 = por %p116, %p117
    %s120 = sadd.s32 %s119, 1
    %p123 = scmp.eq.s32.totalorder %s22, 1
    %p124 = scmp.ne.s32.totalorder %s119, %s121
    %p125 = scmp.eq.s32.totalorder %s22, 0
    %p126 = por %p124, %p125
    %p127 = scmp.ne.s32.totalorder %s119, %s121
    %p128 = scmp.eq.s32.totalorder %s27, 1
    %p129 = por %p127, %p128
    %p130 = scmp.ne.s32.totalorder %s121, %s122
    %p131 = scmp.eq.s32.totalorder %s27, 0
    %p132 = por %p130, %p131
    %p133 = scmp.ne.s32.totalorder %s121, %s122
    %p134 = scmp.eq.s32.totalorder %s28, 1
    %p135 = por %p133, %p134
    %p137 = scmp.ne.s32.totalorder %s122, %s136
    %p138 = scmp.eq.s32.totalorder %s28, 0
    %p139 = por %p137, %p138
    %s141 = sadd.s32 %s140, 1
    %p144 = scmp.eq.s32.totalorder %s22, 1
    %p145 = scmp.ne.s32.totalorder %s140, %s142
    %p146 = scmp.eq.s32.totalorder %s22, 0
    %p147 = por %p145, %p146
    %p148 = scmp.ne.s32.totalorder %s140, %s142
    %p149 = scmp.eq.s32.totalorder %s27, 1
    %p150 = por %p148, %p149
    %p151 = scmp.ne.s32.totalorder %s142, %s143
    %p152 = scmp.eq.s32.totalorder %s27, 0
    %p153 = por %p151, %p152
    %p154 = scmp.ne.s32.totalorder %s142, %s143
    %p155 = scmp.eq.s32.totalorder %s28, 1
    %p156 = por %p154, %p155
    %p158 = scmp.ne.s32.totalorder %s143, %s157
    %p159 = scmp.eq.s32.totalorder %s28, 0
    %p160 = por %p158, %p159
    %s162 = sadd.s32 %s161, 1
    %p165 = scmp.eq.s32.totalorder %s22, 1
    %p166 = scmp.ne.s32.totalorder %s161, %s163
    %p167 = scmp.eq.s32.totalorder %s22, 0
    %p168 = por %p166, %p167
    %p169 = scmp.ne.s32.totalorder %s161, %s163
    %p170 = scmp.eq.s32.totalorder %s27, 1
    %p171 = por %p169, %p170
    %p172 = scmp.ne.s32.totalorder %s163, %s164
    %p173 = scmp.eq.s32.totalorder %s27, 0
    %p174 = por %p172, %p173
    %p175 = scmp.ne.s32.totalorder %s163, %s164
    %p176 = scmp.eq.s32.totalorder %s28, 1
    %p177 = por %p175, %p176
    %p179 = scmp.ne.s32.totalorder %s164, %s178
    %p180 = scmp.eq.s32.totalorder %s28, 0
    %p181 = por %p179, %p180
    %s183 = sadd.s32 %s182, 1
    %p186 = scmp.eq.s32.totalorder %s22, 1
    %p187 = scmp.ne.s32.totalorder %s182, %s184
    %p188 = scmp.eq.s32.totalorder %s22, 0
    %p189 = por %p187, %p188
    %p190 = scmp.ne.s32.totalorder %s182, %s184
    %p191 = scmp.eq.s32.totalorder %s27, 1
    %p192 = por %p190, %p191
    %p193 = scmp.ne.s32.totalorder %s184, %s185
    %p194 = scmp.eq.s32.totalorder %s27, 0
    %p195 = por %p193, %p194
    %p196 = scmp.ne.s32.totalorder %s184, %s185
    %p197 = scmp.eq.s32.totalorder %s28, 1
    %p198 = por %p196, %p197
    %p200 = scmp.ne.s32.totalorder %s185, %s199
    %p201 = scmp.eq.s32.totalorder %s28, 0
    %p202 = por %p200, %p201
    %s204 = sadd.s32 %s203, 1
    %p207 = scmp.eq.s32.totalorder %s22, 1
    %p208 = scmp.ne.s32.totalorder %s203, %s205
    %p209 = scmp.eq.s32.totalorder %s22, 0
    %p210 = por %p208, %p209
    %p211 = scmp.ne.s32.totalorder %s203, %s205
    %p212 = scmp.eq.s32.totalorder %s27, 1
    %p213 = por %p211, %p212
    %p214 = scmp.ne.s32.totalorder %s205, %s206
    %p215 = scmp.eq.s32.totalorder %s27, 0
    %p216 = por %p214, %p215
    %p217 = scmp.ne.s32.totalorder %s205, %s206
    %p218 = scmp.eq.s32.totalorder %s28, 1
    %p219 = por %p217, %p218
    %p221 = scmp.ne.s32.totalorder %s206, %s220
    %p222 = scmp.eq.s32.totalorder %s28, 0
    %p223 = por %p221, %p222
    %s225 = sadd.s32 %s224, 1
    %p228 = scmp.eq.s32.totalorder %s22, 1
    %p229 = scmp.ne.s32.totalorder %s224, %s226
    %p230 = scmp.eq.s32.totalorder %s22, 0
    %p231 = por %p229, %p230
    %p232 = scmp.ne.s32.totalorder %s224, %s226
    %p233 = scmp.eq.s32.totalorder %s27, 1
    %p234 = por %p232, %p233
    %p235 = scmp.ne.s32.totalorder %s226, %s227
    %p236 = scmp.eq.s32.totalorder %s27, 0
    %p237 = por %p235, %p236
    %p238 = scmp.ne.s32.totalorder %s226, %s227
    %p239 = scmp.eq.s32.totalorder %s28, 1
    %p240 = por %p238, %p239
    %p242 = scmp.ne.s32.totalorder %s227, %s241
    %p243 = scmp.eq.s32.totalorder %s28, 0
    %p244 = por %p242, %p243
    %s246 = sadd.s32 %s245, 1
    %p249 = scmp.eq.s32.totalorder %s22, 1
    %p250 = scmp.ne.s32.totalorder %s245, %s247
    %p251 = scmp.eq.s32.totalorder %s22, 0
    %p252 = por %p250, %p251
    %p253 = scmp.ne.s32.totalorder %s245, %s247
    %p254 = scmp.eq.s32.totalorder %s27, 1
    %p255 = por %p253, %p254
    %p256 = scmp.ne.s32.totalorder %s247, %s248
    %p257 = scmp.eq.s32.totalorder %s27, 0
    %p258 = por %p256, %p257
    %p259 = scmp.ne.s32.totalorder %s247, %s248
    %p260 = scmp.eq.s32.totalorder %s28, 1
    %p261 = por %p259, %p260
    %p263 = scmp.ne.s32.totalorder %s248, %s262
    %p264 = scmp.eq.s32.totalorder %s28, 0
    %p265 = por %p263, %p264
    %s267 = sadd.s32 %s266, 1
    %p270 = scmp.eq.s32.totalorder %s22, 1
    %p271 = scmp.ne.s32.totalorder %s266, %s268
    %p272 = scmp.eq.s32.totalorder %s22, 0
    %p273 = por %p271, %p272
    %p274 = scmp.ne.s32.totalorder %s266, %s268
    %p275 = scmp.eq.s32.totalorder %s27, 1
    %p276 = por %p274, %p275
    %p277 = scmp.ne.s32.totalorder %s268, %s269
    %p278 = scmp.eq.s32.totalorder %s27, 0
    %p279 = por %p277, %p278
    %p280 = scmp.ne.s32.totalorder %s268, %s269
    %p281 = scmp.eq.s32.totalorder %s28, 1
    %p282 = por %p280, %p281
    %p284 = scmp.ne.s32.totalorder %s269, %s283
    %p285 = scmp.eq.s32.totalorder %s28, 0
    %p286 = por %p284, %p285
    %s288 = sadd.s32 %s287, 1
    %p291 = scmp.eq.s32.totalorder %s22, 1
    %p292 = scmp.ne.s32.totalorder %s287, %s289
    %p293 = scmp.eq.s32.totalorder %s22, 0
    %p294 = por %p292, %p293
    %p295 = scmp.ne.s32.totalorder %s287, %s289
    %p296 = scmp.eq.s32.totalorder %s27, 1
    %p297 = por %p295, %p296
    %p298 = scmp.ne.s32.totalorder %s289, %s290
    %p299 = scmp.eq.s32.totalorder %s27, 0
    %p300 = por %p298, %p299
    %p301 = scmp.ne.s32.totalorder %s289, %s290
    %p302 = scmp.eq.s32.totalorder %s28, 1
    %p303 = por %p301, %p302
    %p305 = scmp.ne.s32.totalorder %s290, %s304
    %p306 = scmp.eq.s32.totalorder %s28, 0
    %p307 = por %p305, %p306
    %s308 = ssub.s32 %s22, %s29
    %p309 = scmp.eq.s32.totalorder %s308, 0
    %s311 = sadd.s32 %s310, 1
    %s312 = scalar_select %p309, %s310, %s311
    %p315 = pneg %p309
    %p316 = scmp.eq.s32.totalorder %s22, 1
    %p317 = por %p315, %p316
    %p318 = scmp.ne.s32.totalorder %s310, %s313
    %p319 = scmp.eq.s32.totalorder %s22, 0
    %p320 = por %p318, %p319
    %p321 = scmp.ne.s32.totalorder %s310, %s313
    %p322 = scmp.eq.s32.totalorder %s27, 1
    %p323 = por %p321, %p322
    %p324 = scmp.ne.s32.totalorder %s313, %s314
    %p325 = scmp.eq.s32.totalorder %s27, 0
    %p326 = por %p324, %p325
    %p327 = scmp.ne.s32.totalorder %s313, %s314
    %p328 = scmp.eq.s32.totalorder %s28, 1
    %p329 = por %p327, %p328
    %p331 = scmp.ne.s32.totalorder %s314, %s330
    %p332 = scmp.eq.s32.totalorder %s28, 0
    %p333 = por %p331, %p332
    %s334 = ssub.s32 %s22, %s29
    %p335 = scmp.eq.s32.totalorder %s334, 0
    %s337 = sadd.s32 %s336, 1
    %s338 = scalar_select %p335, %s336, %s337
    %p341 = pneg %p335
    %p342 = scmp.eq.s32.totalorder %s22, 1
    %p343 = por %p341, %p342
    %p344 = scmp.ne.s32.totalorder %s336, %s339
    %p345 = scmp.eq.s32.totalorder %s22, 0
    %p346 = por %p344, %p345
    %p347 = scmp.ne.s32.totalorder %s336, %s339
    %p348 = scmp.eq.s32.totalorder %s27, 1
    %p349 = por %p347, %p348
    %p350 = scmp.ne.s32.totalorder %s339, %s340
    %p351 = scmp.eq.s32.totalorder %s27, 0
    %p352 = por %p350, %p351
    %p353 = scmp.ne.s32.totalorder %s339, %s340
    %p354 = scmp.eq.s32.totalorder %s28, 1
    %p355 = por %p353, %p354
    %p357 = scmp.ne.s32.totalorder %s340, %s356
    %p358 = scmp.eq.s32.totalorder %s28, 0
    %p359 = por %p357, %p358
    %s360 = ssub.s32 %s22, %s29
    %p361 = scmp.eq.s32.totalorder %s360, 0
    %s363 = sadd.s32 %s362, 1
    %s364 = scalar_select %p361, %s362, %s363
    %p367 = pneg %p361
    %p368 = scmp.eq.s32.totalorder %s22, 1
    %p369 = por %p367, %p368
    %p370 = scmp.ne.s32.totalorder %s362, %s365
    %p371 = scmp.eq.s32.totalorder %s22, 0
    %p372 = por %p370, %p371
    %p373 = scmp.ne.s32.totalorder %s362, %s365
    %p374 = scmp.eq.s32.totalorder %s27, 1
    %p375 = por %p373, %p374
    %p376 = scmp.ne.s32.totalorder %s365, %s366
    %p377 = scmp.eq.s32.totalorder %s27, 0
    %p378 = por %p376, %p377
    %p379 = scmp.ne.s32.totalorder %s365, %s366
    %p380 = scmp.eq.s32.totalorder %s28, 1
    %p381 = por %p379, %p380
    %p383 = scmp.ne.s32.totalorder %s366, %s382
    %p384 = scmp.eq.s32.totalorder %s28, 0
    %p385 = por %p383, %p384
    %p386 = scmp.le.s32.totalorder 1, %s22
    %p387 = scmp.lt.s32.totalorder %s22, 3
    %p388 = pnand %p386, %p387
    %p389 = pneg %p388
    // Predicated region
    $region9: #{encoder_forward.1} parent=5 // pred_check
      _
    $region10: #{encoder_forward.1} parent=5 // pred_check_branch
      %391 = sbr.rel (%p388) target = $region12
    $region11: #{encoder_forward.1} parent=5 // pred_region
      %s392 = ssub.s32 %s22, 1
      // Predicated region
      $region13: #{encoder_forward.1} parent=11 // pred_check
        %p393 = pneg %p69
      $region14: #{encoder_forward.1} parent=11 // pred_check_branch
        %395 = sbr.rel (%p393) target = $region16
      $region15: #{encoder_forward.1} parent=11 // pred_region
        _
      $region16: #{encoder_forward.1} parent=11 // pred_fallthru
        _
      // Predicated region
      $region17: #{encoder_forward.1} parent=11 // pred_check
        %p396 = pneg %p90
      $region18: #{encoder_forward.1} parent=11 // pred_check_branch
        %398 = sbr.rel (%p396) target = $region20
      $region19: #{encoder_forward.1} parent=11 // pred_region
        _
      $region20: #{encoder_forward.1} parent=11 // pred_fallthru
        _
      // Predicated region
      $region21: #{encoder_forward.1} parent=11 // pred_check
        %p399 = pneg %p111
      $region22: #{encoder_forward.1} parent=11 // pred_check_branch
        %401 = sbr.rel (%p399) target = $region24
      $region23: #{encoder_forward.1} parent=11 // pred_region
        _
      $region24: #{encoder_forward.1} parent=11 // pred_fallthru
        _
      // Predicated region
      $region25: #{encoder_forward.1} parent=11 // pred_check
        %p402 = pneg %p132
      $region26: #{encoder_forward.1} parent=11 // pred_check_branch
        %404 = sbr.rel (%p402) target = $region28
      $region27: #{encoder_forward.1} parent=11 // pred_region
        _
      $region28: #{encoder_forward.1} parent=11 // pred_fallthru
        _
      // Predicated region
      $region29: #{encoder_forward.1} parent=11 // pred_check
        %p405 = pneg %p153
      $region30: #{encoder_forward.1} parent=11 // pred_check_branch
        %407 = sbr.rel (%p405) target = $region32
      $region31: #{encoder_forward.1} parent=11 // pred_region
        _
      $region32: #{encoder_forward.1} parent=11 // pred_fallthru
        _
      // Predicated region
      $region33: #{encoder_forward.1} parent=11 // pred_check
        %p408 = pneg %p174
      $region34: #{encoder_forward.1} parent=11 // pred_check_branch
        %410 = sbr.rel (%p408) target = $region36
      $region35: #{encoder_forward.1} parent=11 // pred_region
        _
      $region36: #{encoder_forward.1} parent=11 // pred_fallthru
        _
      // Predicated region
      $region37: #{encoder_forward.1} parent=11 // pred_check
        %p411 = pneg %p195
      $region38: #{encoder_forward.1} parent=11 // pred_check_branch
        %413 = sbr.rel (%p411) target = $region40
      $region39: #{encoder_forward.1} parent=11 // pred_region
        _
      $region40: #{encoder_forward.1} parent=11 // pred_fallthru
        _
      // Predicated region
      $region41: #{encoder_forward.1} parent=11 // pred_check
        %p414 = pneg %p216
      $region42: #{encoder_forward.1} parent=11 // pred_check_branch
        %416 = sbr.rel (%p414) target = $region44
      $region43: #{encoder_forward.1} parent=11 // pred_region
        _
      $region44: #{encoder_forward.1} parent=11 // pred_fallthru
        _
      // Predicated region
      $region45: #{encoder_forward.1} parent=11 // pred_check
        %p417 = pneg %p237
      $region46: #{encoder_forward.1} parent=11 // pred_check_branch
        %419 = sbr.rel (%p417) target = $region48
      $region47: #{encoder_forward.1} parent=11 // pred_region
        _
      $region48: #{encoder_forward.1} parent=11 // pred_fallthru
        _
      // Predicated region
      $region49: #{encoder_forward.1} parent=11 // pred_check
        %p420 = pneg %p258
      $region50: #{encoder_forward.1} parent=11 // pred_check_branch
        %422 = sbr.rel (%p420) target = $region52
      $region51: #{encoder_forward.1} parent=11 // pred_region
        _
      $region52: #{encoder_forward.1} parent=11 // pred_fallthru
        _
      // Predicated region
      $region53: #{encoder_forward.1} parent=11 // pred_check
        %p423 = pneg %p279
      $region54: #{encoder_forward.1} parent=11 // pred_check_branch
        %425 = sbr.rel (%p423) target = $region56
      $region55: #{encoder_forward.1} parent=11 // pred_region
        _
      $region56: #{encoder_forward.1} parent=11 // pred_fallthru
        _
      // Predicated region
      $region57: #{encoder_forward.1} parent=11 // pred_check
        %p426 = pneg %p300
      $region58: #{encoder_forward.1} parent=11 // pred_check_branch
        %428 = sbr.rel (%p426) target = $region60
      $region59: #{encoder_forward.1} parent=11 // pred_region
        _
      $region60: #{encoder_forward.1} parent=11 // pred_fallthru
        _
    $region12: #{encoder_forward.1} parent=5 // pred_fallthru
      _
    %p429 = scmp.lt.s32.totalorder %s22, 2
    // Predicated region
    $region61: #{encoder_forward.1} parent=5 // pred_check
      %p430 = pneg %p429
    $region62: #{encoder_forward.1} parent=5 // pred_check_branch
      %432 = sbr.rel (%p430) target = $region64
    $region63: #{encoder_forward.1} parent=5 // pred_region
      // Predicated region
      $region65: #{encoder_forward.1} parent=63 // pred_check
        %p433 = pneg %p42
      $region66: #{encoder_forward.1} parent=63 // pred_check_branch
        %435 = sbr.rel (%p433) target = $region68
      $region67: #{encoder_forward.1} parent=63 // pred_region
        %p436 = scmp.lt.s32.totalorder %s22, 1
        %s437 = scalar_select %p436, %s22, 1
        %s438 = smul.addr %s437, 3
        %s439 = smul.addr %s438, 8
        %s440 = scalar_lea.vmem %s0, %s439
      $region68: #{encoder_forward.1} parent=63 // pred_fallthru
        _
    $region64: #{encoder_forward.1} parent=5 // pred_fallthru
      _
    %p441 = scmp.le.s32.totalorder 1, %s22
    %p442 = scmp.lt.s32.totalorder %s22, 3
    %p443 = pnand %p441, %p442
    %p444 = pneg %p443
    // Predicated region
    $region69: #{encoder_forward.1} parent=5 // pred_check
      _
    $region70: #{encoder_forward.1} parent=5 // pred_check_branch
      %446 = sbr.rel (%p443) target = $region72
    $region71: #{encoder_forward.1} parent=5 // pred_region
      %s447 = ssub.s32 %s22, 1
      %p448 = scmp.lt.s32.totalorder %s27, 1
      %s449 = scalar_select %p448, %s27, 1
      %s450 = smul.addr %s449, 3
      %s451 = smul.addr %s450, 8
      %s452 = scalar_lea.vmem %s0, %s451
      %p453 = pneg %p48
      %p454 = pneg %p45
      %p455 = pneg %p69
      %p456 = pneg %p66
      %p457 = pneg %p90
      %p458 = pneg %p87
      %p459 = pneg %p111
      %p460 = pneg %p108
      %p461 = pneg %p132
      %p462 = pneg %p129
      %p463 = pneg %p153
      %p464 = pneg %p150
      %p465 = pneg %p174
      %p466 = pneg %p171
      %p467 = pneg %p195
      %p468 = pneg %p192
      %p469 = pneg %p216
      %p470 = pneg %p213
      %p471 = pneg %p237
      %p472 = pneg %p234
      %p473 = pneg %p258
      %p474 = pneg %p255
      %p475 = pneg %p279
      %p476 = pneg %p276
      %p477 = pneg %p300
      %p478 = pneg %p297
      %p479 = pneg %p326
      %p480 = pneg %p323
      %p481 = scmp.lt.s32.totalorder %s27, 1
      %s482 = scalar_select %p481, %s27, 1
      %s483 = smul.addr %s482, 3
      %s484 = smul.addr %s483, 8
      %s485 = scalar_lea.vmem %s13, %s484
      %p486 = pneg %p352
      %p487 = pneg %p349
      %p488 = scmp.lt.s32.totalorder %s27, 1
      %s489 = scalar_select %p488, %s27, 1
      %s490 = smul.addr %s489, 2
      %s491 = smul.addr %s490, 8
      %s492 = scalar_lea.vmem %s14, %s491
      %p493 = pneg %p378
      %p494 = pneg %p375
      %p495 = scmp.lt.s32.totalorder %s27, 1
      %s496 = scalar_select %p495, %s27, 1
      %s497 = smul.addr %s496, 2
      %s498 = smul.addr %s497, 8
      %s499 = scalar_lea.vmem %s15, %s498
      %p500 = scmp.lt.s32.totalorder %s27, 1
      %s501 = scalar_select %p500, %s27, 1
      %s502 = smul.addr %s501, 3
      %s503 = smul.addr %s502, 8
      %s504 = scalar_lea.vmem %s0, %s503
      %p505 = scmp.lt.s32.totalorder %s27, 1
      %s506 = scalar_select %p505, %s27, 1
      %s507 = smul.addr %s506, 3
      %s508 = smul.addr %s507, 8
      %s509 = scalar_lea.vmem %s13, %s508
      %p510 = scmp.lt.s32.totalorder %s27, 1
      %s511 = scalar_select %p510, %s27, 1
      %s512 = smul.addr %s511, 2
      %s513 = smul.addr %s512, 8
      %s514 = scalar_lea.vmem %s14, %s513
      %p515 = scmp.lt.s32.totalorder %s27, 1
      %s516 = scalar_select %p515, %s27, 1
      %s517 = smul.addr %s516, 2
      %s518 = smul.addr %s517, 8
      %s519 = scalar_lea.vmem %s15, %s518
      %v521 = vld [vmem:[%s504] sm:$0xff]
      %v522 = vld [vmem:[%s504 + $0x8] sm:$0xff]
      %v523 = vld [vmem:[%s504 + $0x10] sm:$0xff]
      %v524 = vld [vmem:[%s5] sm:$0x7]
      %v525 = vld [vmem:[%s1] sm:$0xf]
      %v526 = vpack.c.bf16 %v521, %v521
      %v527 = vpack.c.bf16 %v522, %v522
      %v528 = vpack.c.bf16 %v523, %v523
      %529 = vrot.lane.b32.xlu0 %v521, 127
      %v530 = vpop.permute.xlu0 %529
      %531 = vrot.lane.b32.xlu0 %v522, 127
      %v532 = vpop.permute.xlu0 %531
      %533 = vrot.lane.b32.xlu0 %v523, 127
      %v534 = vpop.permute.xlu0 %533
      %v535 = vlaneseq
      %v536 = vand.u32 %v535, 127
      %vm537 = vcmp.lt.s32.totalorder %v536, 127
      %v538 = vsel %vm537, %v532, %v534
      %v539 = vsel %vm537, %v530, %v532
      %v540 = vsel %vm537, %v534, %v530
      %s541 = scalar_lea.vmem %s1, 4
      %v542 = vld [vmem:[%s541] sm:$0xf]
      %v543 = vpack.c.bf16 %v539, %v539
      %v544 = vpack.c.bf16 %v538, %v538
      %v545 = vpack.c.bf16 %v540, %v540
      %vm546 = vcmask 64512
      %v548 = vsel %vm546, %v542, 0
      %vm550 = vcmask 1043456
      %v552 = vsel %vm550, %v543, 0
      %v555 = vsel %vm550, %v544, 0
      %v558 = vsel %vm550, %v545, 0
      %560 = vmatprep.subr.bf16.mxu0 %v555
      %561 = vmatpush1.bf16.msra.mxu0 %v552
      %562 = vmatprep.subr.bf16.mxu0 0
      %563 = vmatpush1.bf16.msra.mxu0 0
      %564 = vmatprep.subr.bf16.mxu0 0
      %565 = vmatpush1.bf16.msra.mxu0 0
      %566 = vmatprep.subr.bf16.mxu0 0
      %567 = vmatpush1.bf16.msra.mxu0 0
      %568 = vmatprep.subr.bf16.mxu0 0
      %569 = vmatpush1.bf16.msra.mxu0 0
      %570 = vmatprep.subr.bf16.mxu0 0
      %571 = vmatpush1.bf16.msra.mxu0 0
      %572 = vmatprep.subr.bf16.mxu0 0
      %573 = vmatpush1.bf16.msra.mxu0 0
      %574 = vmatprep.subr.bf16.mxu0 0
      %575 = vmatpush1.bf16.msra.mxu0 0
      %576 = vmatprep.subr.bf16.mxu0 0
      %577 = vmatpush1.bf16.msra.mxu0 0
      %578 = vmatprep.subr.bf16.mxu0 0
      %579 = vmatpush1.bf16.msra.mxu0 0
      %580 = vmatprep.subr.bf16.mxu0 0
      %581 = vmatpush1.bf16.msra.mxu0 0
      %582 = vmatprep.subr.bf16.mxu0 0
      %583 = vmatpush1.bf16.msra.mxu0 0
      %584 = vmatprep.subr.bf16.mxu0 0
      %585 = vmatpush1.bf16.msra.mxu0 0
      %586 = vmatprep.subr.bf16.mxu0 0
      %587 = vmatpush1.bf16.msra.mxu0 0
      %588 = vmatprep.subr.bf16.mxu0 0
      %589 = vmatpush1.bf16.msra.mxu0 0
      %590 = vmatprep.subr.bf16.mxu0 0
      %591 = vmatpush1.bf16.msra.mxu0 0
      %592 = vmatprep.mubr.bf16.mxu0 0
      %593 = vmatmul.mubr.bf16.gmra.mrb[0].mxu0 %v548
      %v594 = vpop.f32.mrb[0].mxu0
      %v595 = vadd.f32 0.0, %v594
      %v596 = vpop.f32.mrb[0].mxu0
      %v597 = vadd.f32 0.0, %v596
      %v598 = vpop.f32.mrb[0].mxu0
      %v599 = vpop.f32.mrb[0].mxu0
      %600 = vdwg.mxu0
      %601 = vmatprep.subr.bf16.mxu0 0
      %602 = vmatpush1.bf16.msra.mxu0 %v558
      %603 = vmatprep.subr.bf16.mxu0 0
      %604 = vmatpush1.bf16.msra.mxu0 0
      %605 = vmatprep.subr.bf16.mxu0 0
      %606 = vmatpush1.bf16.msra.mxu0 0
      %607 = vmatprep.subr.bf16.mxu0 0
      %608 = vmatpush1.bf16.msra.mxu0 0
      %609 = vmatprep.subr.bf16.mxu0 0
      %610 = vmatpush1.bf16.msra.mxu0 0
      %611 = vmatprep.subr.bf16.mxu0 0
      %612 = vmatpush1.bf16.msra.mxu0 0
      %613 = vmatprep.subr.bf16.mxu0 0
      %614 = vmatpush1.bf16.msra.mxu0 0
      %615 = vmatprep.subr.bf16.mxu0 0
      %616 = vmatpush1.bf16.msra.mxu0 0
      %617 = vmatprep.subr.bf16.mxu0 0
      %618 = vmatpush1.bf16.msra.mxu0 0
      %619 = vmatprep.subr.bf16.mxu0 0
      %620 = vmatpush1.bf16.msra.mxu0 0
      %621 = vmatprep.subr.bf16.mxu0 0
      %622 = vmatpush1.bf16.msra.mxu0 0
      %623 = vmatprep.subr.bf16.mxu0 0
      %624 = vmatpush1.bf16.msra.mxu0 0
      %625 = vmatprep.subr.bf16.mxu0 0
      %626 = vmatpush1.bf16.msra.mxu0 0
      %627 = vmatprep.subr.bf16.mxu0 0
      %628 = vmatpush1.bf16.msra.mxu0 0
      %629 = vmatprep.subr.bf16.mxu0 0
      %630 = vmatpush1.bf16.msra.mxu0 0
      %631 = vmatprep.subr.bf16.mxu0 0
      %632 = vmatpush1.bf16.msra.mxu0 0
      %633 = vmatprep.mubr.bf16.mxu0 0
      %634 = vmatmul.mubr.bf16.gmra.mrb[0].mxu0 %v548
      %v635 = vpop.f32.mrb[0].mxu0
      %v636 = vadd.f32 0.0, %v635
      %v637 = vpop.f32.mrb[0].mxu0
      %v638 = vpop.f32.mrb[0].mxu0
      %v639 = vpop.f32.mrb[0].mxu0
      %640 = vdwg.mxu0
      %v642 = vsel %vm546, %v525, 0
      %v645 = vsel %vm550, %v526, 0
      %v648 = vsel %vm550, %v527, 0
      %v651 = vsel %vm550, %v528, 0
      %653 = vmatprep.subr.bf16.mxu0 %v648
      %654 = vmatpush1.bf16.msra.mxu0 %v645
      %655 = vmatprep.subr.bf16.mxu0 0
      %656 = vmatpush1.bf16.msra.mxu0 0
      %657 = vmatprep.subr.bf16.mxu0 0
      %658 = vmatpush1.bf16.msra.mxu0 0
      %659 = vmatprep.subr.bf16.mxu0 0
      %660 = vmatpush1.bf16.msra.mxu0 0
      %661 = vmatprep.subr.bf16.mxu0 0
      %662 = vmatpush1.bf16.msra.mxu0 0
      %663 = vmatprep.subr.bf16.mxu0 0
      %664 = vmatpush1.bf16.msra.mxu0 0
      %665 = vmatprep.subr.bf16.mxu0 0
      %666 = vmatpush1.bf16.msra.mxu0 0
      %667 = vmatprep.subr.bf16.mxu0 0
      %668 = vmatpush1.bf16.msra.mxu0 0
      %669 = vmatprep.subr.bf16.mxu0 0
      %670 = vmatpush1.bf16.msra.mxu0 0
      %671 = vmatprep.subr.bf16.mxu0 0
      %672 = vmatpush1.bf16.msra.mxu0 0
      %673 = vmatprep.subr.bf16.mxu0 0
      %674 = vmatpush1.bf16.msra.mxu0 0
      %675 = vmatprep.subr.bf16.mxu0 0
      %676 = vmatpush1.bf16.msra.mxu0 0
      %677 = vmatprep.subr.bf16.mxu0 0
      %678 = vmatpush1.bf16.msra.mxu0 0
      %679 = vmatprep.subr.bf16.mxu0 0
      %680 = vmatpush1.bf16.msra.mxu0 0
      %681 = vmatprep.subr.bf16.mxu0 0
      %682 = vmatpush1.bf16.msra.mxu0 0
      %683 = vmatprep.subr.bf16.mxu0 0
      %684 = vmatpush1.bf16.msra.mxu0 0
      %685 = vmatprep.mubr.bf16.mxu0 0
      %686 = vmatmul.mubr.bf16.gmra.mrb[0].mxu0 %v642
      %v687 = vpop.f32.mrb[0].mxu0
      %v688 = vadd.f32 %v595, %v687
      %v689 = vpop.f32.mrb[0].mxu0
      %v690 = vadd.f32 %v597, %v689
      %v691 = vpop.f32.mrb[0].mxu0
      %v692 = vpop.f32.mrb[0].mxu0
      %693 = vdwg.mxu0
      %694 = vmatprep.subr.bf16.mxu0 0
      %695 = vmatpush1.bf16.msra.mxu0 %v651
      %696 = vmatprep.subr.bf16.mxu0 0
      %697 = vmatpush1.bf16.msra.mxu0 0
      %698 = vmatprep.subr.bf16.mxu0 0
      %699 = vmatpush1.bf16.msra.mxu0 0
      %700 = vmatprep.subr.bf16.mxu0 0
      %701 = vmatpush1.bf16.msra.mxu0 0
      %702 = vmatprep.subr.bf16.mxu0 0
      %703 = vmatpush1.bf16.msra.mxu0 0
      %704 = vmatprep.subr.bf16.mxu0 0
      %705 = vmatpush1.bf16.msra.mxu0 0
      %706 = vmatprep.subr.bf16.mxu0 0
      %707 = vmatpush1.bf16.msra.mxu0 0
      %708 = vmatprep.subr.bf16.mxu0 0
      %709 = vmatpush1.bf16.msra.mxu0 0
      %710 = vmatprep.subr.bf16.mxu0 0
      %711 = vmatpush1.bf16.msra.mxu0 0
      %712 = vmatprep.subr.bf16.mxu0 0
      %713 = vmatpush1.bf16.msra.mxu0 0
      %714 = vmatprep.subr.bf16.mxu0 0
      %715 = vmatpush1.bf16.msra.mxu0 0
      %716 = vmatprep.subr.bf16.mxu0 0
      %717 = vmatpush1.bf16.msra.mxu0 0
      %718 = vmatprep.subr.bf16.mxu0 0
      %719 = vmatpush1.bf16.msra.mxu0 0
      %720 = vmatprep.subr.bf16.mxu0 0
      %721 = vmatpush1.bf16.msra.mxu0 0
      %722 = vmatprep.subr.bf16.mxu0 0
      %723 = vmatpush1.bf16.msra.mxu0 0
      %724 = vmatprep.subr.bf16.mxu0 0
      %725 = vmatpush1.bf16.msra.mxu0 0
      %726 = vmatprep.mubr.bf16.mxu0 0
      %727 = vmatmul.mubr.bf16.gmra.mrb[0].mxu0 %v642
      %v728 = vpop.f32.mrb[0].mxu0
      %v729 = vadd.f32 %v636, %v728
      %v730 = vpop.f32.mrb[0].mxu0
      %v731 = vpop.f32.mrb[0].mxu0
      %v732 = vpop.f32.mrb[0].mxu0
      %733 = vdwg.mxu0
      %734 = vrot.lane.b32.xlu0 %v521, 126
      %v735 = vpop.permute.xlu0 %734
      %736 = vrot.lane.b32.xlu0 %v522, 126
      %v737 = vpop.permute.xlu0 %736
      %738 = vrot.lane.b32.xlu0 %v523, 126
      %v739 = vpop.permute.xlu0 %738
      %vm740 = vcmp.lt.s32.totalorder %v536, 126
      %v741 = vsel %vm740, %v737, %v739
      %v742 = vsel %vm740, %v735, %v737
      %v743 = vsel %vm740, %v739, %v735
      %s744 = scalar_lea.vmem %s1, 8
      %v745 = vld [vmem:[%s744] sm:$0xf]
      %v746 = vpack.c.bf16 %v742, %v742
      %v747 = vpack.c.bf16 %v741, %v741
      %v748 = vpack.c.bf16 %v743, %v743
      %v750 = vsel %vm546, %v745, 0
      %v753 = vsel %vm550, %v746, 0
      %v756 = vsel %vm550, %v747, 0
      %v759 = vsel %vm550, %v748, 0
      %761 = vmatprep.subr.bf16.mxu0 %v756
      %762 = vmatpush1.bf16.msra.mxu0 %v753
      %763 = vmatprep.subr.bf16.mxu0 0
      %764 = vmatpush1.bf16.msra.mxu0 0
      %765 = vmatprep.subr.bf16.mxu0 0
      %766 = vmatpush1.bf16.msra.mxu0 0
      %767 = vmatprep.subr.bf16.mxu0 0
      %768 = vmatpush1.bf16.msra.mxu0 0
      %769 = vmatprep.subr.bf16.mxu0 0
      %770 = vmatpush1.bf16.msra.mxu0 0
      %771 = vmatprep.subr.bf16.mxu0 0
      %772 = vmatpush1.bf16.msra.mxu0 0
      %773 = vmatprep.subr.bf16.mxu0 0
      %774 = vmatpush1.bf16.msra.mxu0 0
      %775 = vmatprep.subr.bf16.mxu0 0
      %776 = vmatpush1.bf16.msra.mxu0 0
      %777 = vmatprep.subr.bf16.mxu0 0
      %778 = vmatpush1.bf16.msra.mxu0 0
      %779 = vmatprep.subr.bf16.mxu0 0
      %780 = vmatpush1.bf16.msra.mxu0 0
      %781 = vmatprep.subr.bf16.mxu0 0
      %782 = vmatpush1.bf16.msra.mxu0 0
      %783 = vmatprep.subr.bf16.mxu0 0
      %784 = vmatpush1.bf16.msra.mxu0 0
      %785 = vmatprep.subr.bf16.mxu0 0
      %786 = vmatpush1.bf16.msra.mxu0 0
      %787 = vmatprep.subr.bf16.mxu0 0
      %788 = vmatpush1.bf16.msra.mxu0 0
      %789 = vmatprep.subr.bf16.mxu0 0
      %790 = vmatpush1.bf16.msra.mxu0 0
      %791 = vmatprep.subr.bf16.mxu0 0
      %792 = vmatpush1.bf16.msra.mxu0 0
      %793 = vmatprep.mubr.bf16.mxu0 0
      %794 = vmatmul.mubr.bf16.gmra.mrb[0].mxu0 %v750
      %v795 = vpop.f32.mrb[0].mxu0
      %v796 = vadd.f32 0.0, %v795
      %v797 = vpop.f32.mrb[0].mxu0
      %v798 = vadd.f32 0.0, %v797
      %v799 = vpop.f32.mrb[0].mxu0
      %v800 = vpop.f32.mrb[0].mxu0
      %801 = vdwg.mxu0
      %802 = vmatprep.subr.bf16.mxu0 0
      %803 = vmatpush1.bf16.msra.mxu0 %v759
      %804 = vmatprep.subr.bf16.mxu0 0
      %805 = vmatpush1.bf16.msra.mxu0 0
      %806 = vmatprep.subr.bf16.mxu0 0
      %807 = vmatpush1.bf16.msra.mxu0 0
      %808 = vmatprep.subr.bf16.mxu0 0
      %809 = vmatpush1.bf16.msra.mxu0 0
      %810 = vmatprep.subr.bf16.mxu0 0
      %811 = vmatpush1.bf16.msra.mxu0 0
      %812 = vmatprep.subr.bf16.mxu0 0
      %813 = vmatpush1.bf16.msra.mxu0 0
      %814 = vmatprep.subr.bf16.mxu0 0
      %815 = vmatpush1.bf16.msra.mxu0 0
      %816 = vmatprep.subr.bf16.mxu0 0
      %817 = vmatpush1.bf16.msra.mxu0 0
      %818 = vmatprep.subr.bf16.mxu0 0
      %819 = vmatpush1.bf16.msra.mxu0 0
      %820 = vmatprep.subr.bf16.mxu0 0
      %821 = vmatpush1.bf16.msra.mxu0 0
      %822 = vmatprep.subr.bf16.mxu0 0
      %823 = vmatpush1.bf16.msra.mxu0 0
      %824 = vmatprep.subr.bf16.mxu0 0
      %825 = vmatpush1.bf16.msra.mxu0 0
      %826 = vmatprep.subr.bf16.mxu0 0
      %827 = vmatpush1.bf16.msra.mxu0 0
      %828 = vmatprep.subr.bf16.mxu0 0
      %829 = vmatpush1.bf16.msra.mxu0 0
      %830 = vmatprep.subr.bf16.mxu0 0
      %831 = vmatpush1.bf16.msra.mxu0 0
      %832 = vmatprep.subr.bf16.mxu0 0
      %833 = vmatpush1.bf16.msra.mxu0 0
      %834 = vmatprep.mubr.bf16.mxu0 0
      %835 = vmatmul.mubr.bf16.gmra.mrb[0].mxu0 %v750
      %v836 = vpop.f32.mrb[0].mxu0
      %v837 = vadd.f32 0.0, %v836
      %v838 = vpop.f32.mrb[0].mxu0
      %v839 = vpop.f32.mrb[0].mxu0
      %v840 = vpop.f32.mrb[0].mxu0
      %841 = vdwg.mxu0
      %v842 = vadd.f32 %v688, %v796
      %v843 = vadd.f32 %v690, %v798
      %v844 = vadd.f32 %v729, %v837
      %845 = vrot.lane.b32.xlu0 %v521, 110
      %v846 = vpop.permute.xlu0 %845
      %847 = vrot.lane.b32.xlu0 %v522, 110
      %v848 = vpop.permute.xlu0 %847
      %849 = vrot.lane.b32.xlu0 %v523, 110
      %v850 = vpop.permute.xlu0 %849
      %vm851 = vcmp.lt.s32.totalorder %v536, 110
      %v852 = vsel %vm851, %v848, %v850
      %v853 = vsel %vm851, %v846, %v848
      %v854 = vsel %vm851, %v850, %v846
      %s855 = scalar_lea.vmem %s1, 12
      %v856 = vld [vmem:[%s855] sm:$0xf]
      %v857 = vpack.c.bf16 %v853, %v853
      %v858 = vpack.c.bf16 %v852, %v852
      %v859 = vpack.c.bf16 %v854, %v854
      %v861 = vsel %vm546, %v856, 0
      %v864 = vsel %vm550, %v857, 0
      %v867 = vsel %vm550, %v858, 0
      %v870 = vsel %vm550, %v859, 0
      %872 = vmatprep.subr.bf16.mxu0 %v867
      %873 = vmatpush1.bf16.msra.mxu0 %v864
      %874 = vmatprep.subr.bf16.mxu0 0
      %875 = vmatpush1.bf16.msra.mxu0 0
      %876 = vmatprep.subr.bf16.mxu0 0
      %877 = vmatpush1.bf16.msra.mxu0 0
      %878 = vmatprep.subr.bf16.mxu0 0
      %879 = vmatpush1.bf16.msra.mxu0 0
      %880 = vmatprep.subr.bf16.mxu0 0
      %881 = vmatpush1.bf16.msra.mxu0 0
      %882 = vmatprep.subr.bf16.mxu0 0
      %883 = vmatpush1.bf16.msra.mxu0 0
      %884 = vmatprep.subr.bf16.mxu0 0
      %885 = vmatpush1.bf16.msra.mxu0 0
      %886 = vmatprep.subr.bf16.mxu0 0
      %887 = vmatpush1.bf16.msra.mxu0 0
      %888 = vmatprep.subr.bf16.mxu0 0
      %889 = vmatpush1.bf16.msra.mxu0 0
      %890 = vmatprep.subr.bf16.mxu0 0
      %891 = vmatpush1.bf16.msra.mxu0 0
      %892 = vmatprep.subr.bf16.mxu0 0
      %893 = vmatpush1.bf16.msra.mxu0 0
      %894 = vmatprep.subr.bf16.mxu0 0
      %895 = vmatpush1.bf16.msra.mxu0 0
      %896 = vmatprep.subr.bf16.mxu0 0
      %897 = vmatpush1.bf16.msra.mxu0 0
      %898 = vmatprep.subr.bf16.mxu0 0
      %899 = vmatpush1.bf16.msra.mxu0 0
      %900 = vmatprep.subr.bf16.mxu0 0
      %901 = vmatpush1.bf16.msra.mxu0 0
      %902 = vmatprep.subr.bf16.mxu0 0
      %903 = vmatpush1.bf16.msra.mxu0 0
      %904 = vmatprep.mubr.bf16.mxu0 0
      %905 = vmatmul.mubr.bf16.gmra.mrb[0].mxu0 %v861
      %v906 = vpop.f32.mrb[0].mxu0
      %v907 = vadd.f32 0.0, %v906
      %v908 = vpop.f32.mrb[0].mxu0
      %v909 = vadd.f32 0.0, %v908
      %v910 = vpop.f32.mrb[0].mxu0
      %v911 = vpop.f32.mrb[0].mxu0
      %912 = vdwg.mxu0
      %913 = vmatprep.subr.bf16.mxu0 0
      %914 = vmatpush1.bf16.msra.mxu0 %v870
      %915 = vmatprep.subr.bf16.mxu0 0
      %916 = vmatpush1.bf16.msra.mxu0 0
      %917 = vmatprep.subr.bf16.mxu0 0
      %918 = vmatpush1.bf16.msra.mxu0 0
      %919 = vmatprep.subr.bf16.mxu0 0
      %920 = vmatpush1.bf16.msra.mxu0 0
      %921 = vmatprep.subr.bf16.mxu0 0
      %922 = vmatpush1.bf16.msra.mxu0 0
      %923 = vmatprep.subr.bf16.mxu0 0
      %924 = vmatpush1.bf16.msra.mxu0 0
      %925 = vmatprep.subr.bf16.mxu0 0
      %926 = vmatpush1.bf16.msra.mxu0 0
      %927 = vmatprep.subr.bf16.mxu0 0
      %928 = vmatpush1.bf16.msra.mxu0 0
      %929 = vmatprep.subr.bf16.mxu0 0
      %930 = vmatpush1.bf16.msra.mxu0 0
      %931 = vmatprep.subr.bf16.mxu0 0
      %932 = vmatpush1.bf16.msra.mxu0 0
      %933 = vmatprep.subr.bf16.mxu0 0
      %934 = vmatpush1.bf16.msra.mxu0 0
      %935 = vmatprep.subr.bf16.mxu0 0
      %936 = vmatpush1.bf16.msra.mxu0 0
      %937 = vmatprep.subr.bf16.mxu0 0
      %938 = vmatpush1.bf16.msra.mxu0 0
      %939 = vmatprep.subr.bf16.mxu0 0
      %940 = vmatpush1.bf16.msra.mxu0 0
      %941 = vmatprep.subr.bf16.mxu0 0
      %942 = vmatpush1.bf16.msra.mxu0 0
      %943 = vmatprep.subr.bf16.mxu0 0
      %944 = vmatpush1.bf16.msra.mxu0 0
      %945 = vmatprep.mubr.bf16.mxu0 0
      %946 = vmatmul.mubr.bf16.gmra.mrb[0].mxu0 %v861
      %v947 = vpop.f32.mrb[0].mxu0
      %v948 = vadd.f32 0.0, %v947
      %v949 = vpop.f32.mrb[0].mxu0
      %v950 = vpop.f32.mrb[0].mxu0
      %v951 = vpop.f32.mrb[0].mxu0
      %952 = vdwg.mxu0
      %v953 = vadd.f32 %v842, %v907
      %v954 = vadd.f32 %v843, %v909
      %v955 = vadd.f32 %v844, %v948
      %956 = vrot.lane.b32.xlu0 %v521, 109
      %v957 = vpop.permute.xlu0 %956
      %958 = vrot.lane.b32.xlu0 %v522, 109
      %v959 = vpop.permute.xlu0 %958
      %960 = vrot.lane.b32.xlu0 %v523, 109
      %v961 = vpop.permute.xlu0 %960
      %vm962 = vcmp.lt.s32.totalorder %v536, 109
      %v963 = vsel %vm962, %v959, %v961
      %v964 = vsel %vm962, %v957, %v959
      %v965 = vsel %vm962, %v961, %v957
      %s966 = scalar_lea.vmem %s1, 16
      %v967 = vld [vmem:[%s966] sm:$0xf]
      %v968 = vpack.c.bf16 %v964, %v964
      %v969 = vpack.c.bf16 %v963, %v963
      %v970 = vpack.c.bf16 %v965, %v965
      %v972 = vsel %vm546, %v967, 0
      %v975 = vsel %vm550, %v968, 0
      %v978 = vsel %vm550, %v969, 0
      %v981 = vsel %vm550, %v970, 0
      %983 = vmatprep.subr.bf16.mxu0 %v978
      %984 = vmatpush1.bf16.msra.mxu0 %v975
      %985 = vmatprep.subr.bf16.mxu0 0
      %986 = vmatpush1.bf16.msra.mxu0 0
      %987 = vmatprep.subr.bf16.mxu0 0
      %988 = vmatpush1.bf16.msra.mxu0 0
      %989 = vmatprep.subr.bf16.mxu0 0
      %990 = vmatpush1.bf16.msra.mxu0 0
      %991 = vmatprep.subr.bf16.mxu0 0
      %992 = vmatpush1.bf16.msra.mxu0 0
      %993 = vmatprep.subr.bf16.mxu0 0
      %994 = vmatpush1.bf16.msra.mxu0 0
      %995 = vmatprep.subr.bf16.mxu0 0
      %996 = vmatpush1.bf16.msra.mxu0 0
      %997 = vmatprep.subr.bf16.mxu0 0
      %998 = vmatpush1.bf16.msra.mxu0 0
      %999 = vmatprep.subr.bf16.mxu0 0
      %1000 = vmatpush1.bf16.msra.mxu0 0
      %1001 = vmatprep.subr.bf16.mxu0 0
      %1002 = vmatpush1.bf16.msra.mxu0 0
      %1003 = vmatprep.subr.bf16.mxu0 0
      %1004 = vmatpush1.bf16.msra.mxu0 0
      %1005 = vmatprep.subr.bf16.mxu0 0
      %1006 = vmatpush1.bf16.msra.mxu0 0
      %1007 = vmatprep.subr.bf16.mxu0 0
      %1008 = vmatpush1.bf16.msra.mxu0 0
      %1009 = vmatprep.subr.bf16.mxu0 0
      %1010 = vmatpush1.bf16.msra.mxu0 0
      %1011 = vmatprep.subr.bf16.mxu0 0
      %1012 = vmatpush1.bf16.msra.mxu0 0
      %1013 = vmatprep.subr.bf16.mxu0 0
      %1014 = vmatpush1.bf16.msra.mxu0 0
      %1015 = vmatprep.mubr.bf16.mxu0 0
      %1016 = vmatmul.mubr.bf16.gmra.mrb[0].mxu0 %v972
      %v1017 = vpop.f32.mrb[0].mxu0
      %v1018 = vadd.f32 0.0, %v1017
      %v1019 = vpop.f32.mrb[0].mxu0
      %v1020 = vadd.f32 0.0, %v1019
      %v1021 = vpop.f32.mrb[0].mxu0
      %v1022 = vpop.f32.mrb[0].mxu0
      %1023 = vdwg.mxu0
      %1024 = vmatprep.subr.bf16.mxu0 0
      %1025 = vmatpush1.bf16.msra.mxu0 %v981
      %1026 = vmatprep.subr.bf16.mxu0 0
      %1027 = vmatpush1.bf16.msra.mxu0 0
      %1028 = vmatprep.subr.bf16.mxu0 0
      %1029 = vmatpush1.bf16.msra.mxu0 0
      %1030 = vmatprep.subr.bf16.mxu0 0
      %1031 = vmatpush1.bf16.msra.mxu0 0
      %1032 = vmatprep.subr.bf16.mxu0 0
      %1033 = vmatpush1.bf16.msra.mxu0 0
      %1034 = vmatprep.subr.bf16.mxu0 0
      %1035 = vmatpush1.bf16.msra.mxu0 0
      %1036 = vmatprep.subr.bf16.mxu0 0
      %1037 = vmatpush1.bf16.msra.mxu0 0
      %1038 = vmatprep.subr.bf16.mxu0 0
      %1039 = vmatpush1.bf16.msra.mxu0 0
      %1040 = vmatprep.subr.bf16.mxu0 0
      %1041 = vmatpush1.bf16.msra.mxu0 0
      %1042 = vmatprep.subr.bf16.mxu0 0
      %1043 = vmatpush1.bf16.msra.mxu0 0
      %1044 = vmatprep.subr.bf16.mxu0 0
      %1045 = vmatpush1.bf16.msra.mxu0 0
      %1046 = vmatprep.subr.bf16.mxu0 0
      %1047 = vmatpush1.bf16.msra.mxu0 0
      %1048 = vmatprep.subr.bf16.mxu0 0
      %1049 = vmatpush1.bf16.msra.mxu0 0
      %1050 = vmatprep.subr.bf16.mxu0 0
      %1051 = vmatpush1.bf16.msra.mxu0 0
      %1052 = vmatprep.subr.bf16.mxu0 0
      %1053 = vmatpush1.bf16.msra.mxu0 0
      %1054 = vmatprep.subr.bf16.mxu0 0
      %1055 = vmatpush1.bf16.msra.mxu0 0
      %1056 = vmatprep.mubr.bf16.mxu0 0
      %1057 = vmatmul.mubr.bf16.gmra.mrb[0].mxu0 %v972
      %v1058 = vpop.f32.mrb[0].mxu0
      %v1059 = vadd.f32 0.0, %v1058
      %v1060 = vpop.f32.mrb[0].mxu0
      %v1061 = vpop.f32.mrb[0].mxu0
      %v1062 = vpop.f32.mrb[0].mxu0
      %1063 = vdwg.mxu0
      %v1064 = vadd.f32 %v953, %v1018
      %v1065 = vadd.f32 %v954, %v1020
      %v1066 = vadd.f32 %v955, %v1059
      %1067 = vrot.lane.b32.xlu0 %v521, 108
      %v1068 = vpop.permute.xlu0 %1067
      %1069 = vrot.lane.b32.xlu0 %v522, 108
      %v1070 = vpop.permute.xlu0 %1069
      %1071 = vrot.lane.b32.xlu0 %v523, 108
      %v1072 = vpop.permute.xlu0 %1071
      %vm1073 = vcmp.lt.s32.totalorder %v536, 108
      %v1074 = vsel %vm1073, %v1070, %v1072
      %v1075 = vsel %vm1073, %v1068, %v1070
      %v1076 = vsel %vm1073, %v1072, %v1068
      %s1077 = scalar_lea.vmem %s1, 20
      %v1078 = vld [vmem:[%s1077] sm:$0xf]
      %v1079 = vpack.c.bf16 %v1075, %v1075
      %v1080 = vpack.c.bf16 %v1074, %v1074
      %v1081 = vpack.c.bf16 %v1076, %v1076
      %v1083 = vsel %vm546, %v1078, 0
      %v1086 = vsel %vm550, %v1079, 0
      %v1089 = vsel %vm550, %v1080, 0
      %v1092 = vsel %vm550, %v1081, 0
      %1094 = vmatprep.subr.bf16.mxu0 %v1089
      %1095 = vmatpush1.bf16.msra.mxu0 %v1086
      %1096 = vmatprep.subr.bf16.mxu0 0
      %1097 = vmatpush1.bf16.msra.mxu0 0
      %1098 = vmatprep.subr.bf16.mxu0 0
      %1099 = vmatpush1.bf16.msra.mxu0 0
      %1100 = vmatprep.subr.bf16.mxu0 0
      %1101 = vmatpush1.bf16.msra.mxu0 0
      %1102 = vmatprep.subr.bf16.mxu0 0
      %1103 = vmatpush1.bf16.msra.mxu0 0
      %1104 = vmatprep.subr.bf16.mxu0 0
      %1105 = vmatpush1.bf16.msra.mxu0 0
      %1106 = vmatprep.subr.bf16.mxu0 0
      %1107 = vmatpush1.bf16.msra.mxu0 0
      %1108 = vmatprep.subr.bf16.mxu0 0
      %1109 = vmatpush1.bf16.msra.mxu0 0
      %1110 = vmatprep.subr.bf16.mxu0 0
      %1111 = vmatpush1.bf16.msra.mxu0 0
      %1112 = vmatprep.subr.bf16.mxu0 0
      %1113 = vmatpush1.bf16.msra.mxu0 0
      %1114 = vmatprep.subr.bf16.mxu0 0
      %1115 = vmatpush1.bf16.msra.mxu0 0
      %1116 = vmatprep.subr.bf16.mxu0 0
      %1117 = vmatpush1.bf16.msra.mxu0 0
      %1118 = vmatprep.subr.bf16.mxu0 0
      %1119 = vmatpush1.bf16.msra.mxu0 0
      %1120 = vmatprep.subr.bf16.mxu0 0
      %1121 = vmatpush1.bf16.msra.mxu0 0
      %1122 = vmatprep.subr.bf16.mxu0 0
      %1123 = vmatpush1.bf16.msra.mxu0 0
      %1124 = vmatprep.subr.bf16.mxu0 0
      %1125 = vmatpush1.bf16.msra.mxu0 0
      %1126 = vmatprep.mubr.bf16.mxu0 0
      %1127 = vmatmul.mubr.bf16.gmra.mrb[0].mxu0 %v1083
      %v1128 = vpop.f32.mrb[0].mxu0
      %v1129 = vadd.f32 0.0, %v1128
      %v1130 = vpop.f32.mrb[0].mxu0
      %v1131 = vadd.f32 0.0, %v1130
      %v1132 = vpop.f32.mrb[0].mxu0
      %v1133 = vpop.f32.mrb[0].mxu0
      %1134 = vdwg.mxu0
      %1135 = vmatprep.subr.bf16.mxu0 0
      %1136 = vmatpush1.bf16.msra.mxu0 %v1092
      %1137 = vmatprep.subr.bf16.mxu0 0
      %1138 = vmatpush1.bf16.msra.mxu0 0
      %1139 = vmatprep.subr.bf16.mxu0 0
      %1140 = vmatpush1.bf16.msra.mxu0 0
      %1141 = vmatprep.subr.bf16.mxu0 0
      %1142 = vmatpush1.bf16.msra.mxu0 0
      %1143 = vmatprep.subr.bf16.mxu0 0
      %1144 = vmatpush1.bf16.msra.mxu0 0
      %1145 = vmatprep.subr.bf16.mxu0 0
      %1146 = vmatpush1.bf16.msra.mxu0 0
      %1147 = vmatprep.subr.bf16.mxu0 0
      %1148 = vmatpush1.bf16.msra.mxu0 0
      %1149 = vmatprep.subr.bf16.mxu0 0
      %1150 = vmatpush1.bf16.msra.mxu0 0
      %1151 = vmatprep.subr.bf16.mxu0 0
      %1152 = vmatpush1.bf16.msra.mxu0 0
      %1153 = vmatprep.subr.bf16.mxu0 0
      %1154 = vmatpush1.bf16.msra.mxu0 0
      %1155 = vmatprep.subr.bf16.mxu0 0
      %1156 = vmatpush1.bf16.msra.mxu0 0
      %1157 = vmatprep.subr.bf16.mxu0 0
      %1158 = vmatpush1.bf16.msra.mxu0 0
      %1159 = vmatprep.subr.bf16.mxu0 0
      %1160 = vmatpush1.bf16.msra.mxu0 0
      %1161 = vmatprep.subr.bf16.mxu0 0
      %1162 = vmatpush1.bf16.msra.mxu0 0
      %1163 = vmatprep.subr.bf16.mxu0 0
      %1164 = vmatpush1.bf16.msra.mxu0 0
      %1165 = vmatprep.subr.bf16.mxu0 0
      %1166 = vmatpush1.bf16.msra.mxu0 0
      %1167 = vmatprep.mubr.bf16.mxu0 0
      %1168 = vmatmul.mubr.bf16.gmra.mrb[0].mxu0 %v1083
      %v1169 = vpop.f32.mrb[0].mxu0
      %v1170 = vadd.f32 0.0, %v1169
      %v1171 = vpop.f32.mrb[0].mxu0
      %v1172 = vpop.f32.mrb[0].mxu0
      %v1173 = vpop.f32.mrb[0].mxu0
      %1174 = vdwg.mxu0
      %v1175 = vadd.f32 %v1064, %v1129
      %v1176 = vadd.f32 %v1065, %v1131
      %v1177 = vadd.f32 %v1066, %v1170
      %1178 = vrot.lane.b32.xlu0 %v521, 92
      %v1179 = vpop.permute.xlu0 %1178
      %1180 = vrot.lane.b32.xlu0 %v522, 92
      %v1181 = vpop.permute.xlu0 %1180
      %1182 = vrot.lane.b32.xlu0 %v523, 92
      %v1183 = vpop.permute.xlu0 %1182
      %vm1184 = vcmp.lt.s32.totalorder %v536, 92
      %v1185 = vsel %vm1184, %v1181, %v1183
      %v1186 = vsel %vm1184, %v1179, %v1181
      %v1187 = vsel %vm1184, %v1183, %v1179
      %s1188 = scalar_lea.vmem %s1, 24
      %v1189 = vld [vmem:[%s1188] sm:$0xf]
      %v1190 = vpack.c.bf16 %v1186, %v1186
      %v1191 = vpack.c.bf16 %v1185, %v1185
      %v1192 = vpack.c.bf16 %v1187, %v1187
      %v1194 = vsel %vm546, %v1189, 0
      %v1197 = vsel %vm550, %v1190, 0
      %v1200 = vsel %vm550, %v1191, 0
      %v1203 = vsel %vm550, %v1192, 0
      %1205 = vmatprep.subr.bf16.mxu0 %v1200
      %1206 = vmatpush1.bf16.msra.mxu0 %v1197
      %1207 = vmatprep.subr.bf16.mxu0 0
      %1208 = vmatpush1.bf16.msra.mxu0 0
      %1209 = vmatprep.subr.bf16.mxu0 0
      %1210 = vmatpush1.bf16.msra.mxu0 0
      %1211 = vmatprep.subr.bf16.mxu0 0
      %1212 = vmatpush1.bf16.msra.mxu0 0
      %1213 = vmatprep.subr.bf16.mxu0 0
      %1214 = vmatpush1.bf16.msra.mxu0 0
      %1215 = vmatprep.subr.bf16.mxu0 0
      %1216 = vmatpush1.bf16.msra.mxu0 0
      %1217 = vmatprep.subr.bf16.mxu0 0
      %1218 = vmatpush1.bf16.msra.mxu0 0
      %1219 = vmatprep.subr.bf16.mxu0 0
      %1220 = vmatpush1.bf16.msra.mxu0 0
      %1221 = vmatprep.subr.bf16.mxu0 0
      %1222 = vmatpush1.bf16.msra.mxu0 0
      %1223 = vmatprep.subr.bf16.mxu0 0
      %1224 = vmatpush1.bf16.msra.mxu0 0
      %1225 = vmatprep.subr.bf16.mxu0 0
      %1226 = vmatpush1.bf16.msra.mxu0 0
      %1227 = vmatprep.subr.bf16.mxu0 0
      %1228 = vmatpush1.bf16.msra.mxu0 0
      %1229 = vmatprep.subr.bf16.mxu0 0
      %1230 = vmatpush1.bf16.msra.mxu0 0
      %1231 = vmatprep.subr.bf16.mxu0 0
      %1232 = vmatpush1.bf16.msra.mxu0 0
      %1233 = vmatprep.subr.bf16.mxu0 0
      %1234 = vmatpush1.bf16.msra.mxu0 0
      %1235 = vmatprep.subr.bf16.mxu0 0
      %1236 = vmatpush1.bf16.msra.mxu0 0
      %1237 = vmatprep.mubr.bf16.mxu0 0
      %1238 = vmatmul.mubr.bf16.gmra.mrb[0].mxu0 %v1194
      %v1239 = vpop.f32.mrb[0].mxu0
      %v1240 = vadd.f32 0.0, %v1239
      %v1241 = vpop.f32.mrb[0].mxu0
      %v1242 = vadd.f32 0.0, %v1241
      %v1243 = vpop.f32.mrb[0].mxu0
      %v1244 = vpop.f32.mrb[0].mxu0
      %1245 = vdwg.mxu0
      %1246 = vmatprep.subr.bf16.mxu0 0
      %1247 = vmatpush1.bf16.msra.mxu0 %v1203
      %1248 = vmatprep.subr.bf16.mxu0 0
      %1249 = vmatpush1.bf16.msra.mxu0 0
      %1250 = vmatprep.subr.bf16.mxu0 0
      %1251 = vmatpush1.bf16.msra.mxu0 0
      %1252 = vmatprep.subr.bf16.mxu0 0
      %1253 = vmatpush1.bf16.msra.mxu0 0
      %1254 = vmatprep.subr.bf16.mxu0 0
      %1255 = vmatpush1.bf16.msra.mxu0 0
      %1256 = vmatprep.subr.bf16.mxu0 0
      %1257 = vmatpush1.bf16.msra.mxu0 0
      %1258 = vmatprep.subr.bf16.mxu0 0
      %1259 = vmatpush1.bf16.msra.mxu0 0
      %1260 = vmatprep.subr.bf16.mxu0 0
      %1261 = vmatpush1.bf16.msra.mxu0 0
      %1262 = vmatprep.subr.bf16.mxu0 0
      %1263 = vmatpush1.bf16.msra.mxu0 0
      %1264 = vmatprep.subr.bf16.mxu0 0
      %1265 = vmatpush1.bf16.msra.mxu0 0
      %1266 = vmatprep.subr.bf16.mxu0 0
      %1267 = vmatpush1.bf16.msra.mxu0 0
      %1268 = vmatprep.subr.bf16.mxu0 0
      %1269 = vmatpush1.bf16.msra.mxu0 0
      %1270 = vmatprep.subr.bf16.mxu0 0
      %1271 = vmatpush1.bf16.msra.mxu0 0
      %1272 = vmatprep.subr.bf16.mxu0 0
      %1273 = vmatpush1.bf16.msra.mxu0 0
      %1274 = vmatprep.subr.bf16.mxu0 0
      %1275 = vmatpush1.bf16.msra.mxu0 0
      %1276 = vmatprep.subr.bf16.mxu0 0
      %1277 = vmatpush1.bf16.msra.mxu0 0
      %1278 = vmatprep.mubr.bf16.mxu0 0
      %1279 = vmatmul.mubr.bf16.gmra.mrb[0].mxu0 %v1194
      %v1280 = vpop.f32.mrb[0].mxu0
      %v1281 = vadd.f32 0.0, %v1280
      %v1282 = vpop.f32.mrb[0].mxu0
      %v1283 = vpop.f32.mrb[0].mxu0
      %v1284 = vpop.f32.mrb[0].mxu0
      %1285 = vdwg.mxu0
      %v1286 = vadd.f32 %v1175, %v1240
      %v1287 = vadd.f32 %v1176, %v1242
      %v1288 = vadd.f32 %v1177, %v1281
      %1289 = vrot.lane.b32.xlu0 %v521, 91
      %v1290 = vpop.permute.xlu0 %1289
      %1291 = vrot.lane.b32.xlu0 %v522, 91
      %v1292 = vpop.permute.xlu0 %1291
      %1293 = vrot.lane.b32.xlu0 %v523, 91
      %v1294 = vpop.permute.xlu0 %1293
      %vm1295 = vcmp.lt.s32.totalorder %v536, 91
      %v1296 = vsel %vm1295, %v1292, %v1294
      %v1297 = vsel %vm1295, %v1290, %v1292
      %v1298 = vsel %vm1295, %v1294, %v1290
      %s1299 = scalar_lea.vmem %s1, 28
      %v1300 = vld [vmem:[%s1299] sm:$0xf]
      %v1301 = vpack.c.bf16 %v1297, %v1297
      %v1302 = vpack.c.bf16 %v1296, %v1296
      %v1303 = vpack.c.bf16 %v1298, %v1298
      %v1305 = vsel %vm546, %v1300, 0
      %v1308 = vsel %vm550, %v1301, 0
      %v1311 = vsel %vm550, %v1302, 0
      %v1314 = vsel %vm550, %v1303, 0
      %1316 = vmatprep.subr.bf16.mxu0 %v1311
      %1317 = vmatpush1.bf16.msra.mxu0 %v1308
      %1318 = vmatprep.subr.bf16.mxu0 0
      %1319 = vmatpush1.bf16.msra.mxu0 0
      %1320 = vmatprep.subr.bf16.mxu0 0
      %1321 = vmatpush1.bf16.msra.mxu0 0
      %1322 = vmatprep.subr.bf16.mxu0 0
      %1323 = vmatpush1.bf16.msra.mxu0 0
      %1324 = vmatprep.subr.bf16.mxu0 0
      %1325 = vmatpush1.bf16.msra.mxu0 0
      %1326 = vmatprep.subr.bf16.mxu0 0
      %1327 = vmatpush1.bf16.msra.mxu0 0
      %1328 = vmatprep.subr.bf16.mxu0 0
      %1329 = vmatpush1.bf16.msra.mxu0 0
      %1330 = vmatprep.subr.bf16.mxu0 0
      %1331 = vmatpush1.bf16.msra.mxu0 0
      %1332 = vmatprep.subr.bf16.mxu0 0
      %1333 = vmatpush1.bf16.msra.mxu0 0
      %1334 = vmatprep.subr.bf16.mxu0 0
      %1335 = vmatpush1.bf16.msra.mxu0 0
      %1336 = vmatprep.subr.bf16.mxu0 0
      %1337 = vmatpush1.bf16.msra.mxu0 0
      %1338 = vmatprep.subr.bf16.mxu0 0
      %1339 = vmatpush1.bf16.msra.mxu0 0
      %1340 = vmatprep.subr.bf16.mxu0 0
      %1341 = vmatpush1.bf16.msra.mxu0 0
      %1342 = vmatprep.subr.bf16.mxu0 0
      %1343 = vmatpush1.bf16.msra.mxu0 0
      %1344 = vmatprep.subr.bf16.mxu0 0
      %1345 = vmatpush1.bf16.msra.mxu0 0
      %1346 = vmatprep.subr.bf16.mxu0 0
      %1347 = vmatpush1.bf16.msra.mxu0 0
      %1348 = vmatprep.mubr.bf16.mxu0 0
      %1349 = vmatmul.mubr.bf16.gmra.mrb[0].mxu0 %v1305
      %v1350 = vpop.f32.mrb[0].mxu0
      %v1351 = vadd.f32 0.0, %v1350
      %v1352 = vpop.f32.mrb[0].mxu0
      %v1353 = vadd.f32 0.0, %v1352
      %v1354 = vpop.f32.mrb[0].mxu0
      %v1355 = vpop.f32.mrb[0].mxu0
      %1356 = vdwg.mxu0
      %1357 = vmatprep.subr.bf16.mxu0 0
      %1358 = vmatpush1.bf16.msra.mxu0 %v1314
      %1359 = vmatprep.subr.bf16.mxu0 0
      %1360 = vmatpush1.bf16.msra.mxu0 0
      %1361 = vmatprep.subr.bf16.mxu0 0
      %1362 = vmatpush1.bf16.msra.mxu0 0
      %1363 = vmatprep.subr.bf16.mxu0 0
      %1364 = vmatpush1.bf16.msra.mxu0 0
      %1365 = vmatprep.subr.bf16.mxu0 0
      %1366 = vmatpush1.bf16.msra.mxu0 0
      %1367 = vmatprep.subr.bf16.mxu0 0
      %1368 = vmatpush1.bf16.msra.mxu0 0
      %1369 = vmatprep.subr.bf16.mxu0 0
      %1370 = vmatpush1.bf16.msra.mxu0 0
      %1371 = vmatprep.subr.bf16.mxu0 0
      %1372 = vmatpush1.bf16.msra.mxu0 0
      %1373 = vmatprep.subr.bf16.mxu0 0
      %1374 = vmatpush1.bf16.msra.mxu0 0
      %1375 = vmatprep.subr.bf16.mxu0 0
      %1376 = vmatpush1.bf16.msra.mxu0 0
      %1377 = vmatprep.subr.bf16.mxu0 0
      %1378 = vmatpush1.bf16.msra.mxu0 0
      %1379 = vmatprep.subr.bf16.mxu0 0
      %1380 = vmatpush1.bf16.msra.mxu0 0
      %1381 = vmatprep.subr.bf16.mxu0 0
      %1382 = vmatpush1.bf16.msra.mxu0 0
      %1383 = vmatprep.subr.bf16.mxu0 0
      %1384 = vmatpush1.bf16.msra.mxu0 0
      %1385 = vmatprep.subr.bf16.mxu0 0
      %1386 = vmatpush1.bf16.msra.mxu0 0
      %1387 = vmatprep.subr.bf16.mxu0 0
      %1388 = vmatpush1.bf16.msra.mxu0 0
      %1389 = vmatprep.mubr.bf16.mxu0 0
      %1390 = vmatmul.mubr.bf16.gmra.mrb[0].mxu0 %v1305
      %v1391 = vpop.f32.mrb[0].mxu0
      %v1392 = vadd.f32 0.0, %v1391
      %v1393 = vpop.f32.mrb[0].mxu0
      %v1394 = vpop.f32.mrb[0].mxu0
      %v1395 = vpop.f32.mrb[0].mxu0
      %1396 = vdwg.mxu0
      %v1397 = vadd.f32 %v1286, %v1351
      %v1398 = vadd.f32 %v1287, %v1353
      %v1399 = vadd.f32 %v1288, %v1392
      %1400 = vrot.lane.b32.xlu0 %v521, 90
      %v1401 = vpop.permute.xlu0 %1400
      %1402 = vrot.lane.b32.xlu0 %v522, 90
      %v1403 = vpop.permute.xlu0 %1402
      %1404 = vrot.lane.b32.xlu0 %v523, 90
      %v1405 = vpop.permute.xlu0 %1404
      %vm1406 = vcmp.lt.s32.totalorder %v536, 90
      %v1407 = vsel %vm1406, %v1403, %v1405
      %v1408 = vsel %vm1406, %v1401, %v1403
      %v1409 = vsel %vm1406, %v1405, %v1401
      %s1410 = scalar_lea.vmem %s1, 32
      %v1411 = vld [vmem:[%s1410] sm:$0xf]
      %v1412 = vpack.c.bf16 %v1408, %v1408
      %v1413 = vpack.c.bf16 %v1407, %v1407
      %v1414 = vpack.c.bf16 %v1409, %v1409
      %v1416 = vsel %vm546, %v1411, 0
      %v1419 = vsel %vm550, %v1412, 0
      %v1422 = vsel %vm550, %v1413, 0
      %v1425 = vsel %vm550, %v1414, 0
      %1427 = vmatprep.subr.bf16.mxu0 %v1422
      %1428 = vmatpush1.bf16.msra.mxu0 %v1419
      %1429 = vmatprep.subr.bf16.mxu0 0
      %1430 = vmatpush1.bf16.msra.mxu0 0
      %1431 = vmatprep.subr.bf16.mxu0 0
      %1432 = vmatpush1.bf16.msra.mxu0 0
      %1433 = vmatprep.subr.bf16.mxu0 0
      %1434 = vmatpush1.bf16.msra.mxu0 0
      %1435 = vmatprep.subr.bf16.mxu0 0
      %1436 = vmatpush1.bf16.msra.mxu0 0
      %1437 = vmatprep.subr.bf16.mxu0 0
      %1438 = vmatpush1.bf16.msra.mxu0 0
      %1439 = vmatprep.subr.bf16.mxu0 0
      %1440 = vmatpush1.bf16.msra.mxu0 0
      %1441 = vmatprep.subr.bf16.mxu0 0
      %1442 = vmatpush1.bf16.msra.mxu0 0
      %1443 = vmatprep.subr.bf16.mxu0 0
      %1444 = vmatpush1.bf16.msra.mxu0 0
      %1445 = vmatprep.subr.bf16.mxu0 0
      %1446 = vmatpush1.bf16.msra.mxu0 0
      %1447 = vmatprep.subr.bf16.mxu0 0
      %1448 = vmatpush1.bf16.msra.mxu0 0
      %1449 = vmatprep.subr.bf16.mxu0 0
      %1450 = vmatpush1.bf16.msra.mxu0 0
      %1451 = vmatprep.subr.bf16.mxu0 0
      %1452 = vmatpush1.bf16.msra.mxu0 0
      %1453 = vmatprep.subr.bf16.mxu0 0
      %1454 = vmatpush1.bf16.msra.mxu0 0
      %1455 = vmatprep.subr.bf16.mxu0 0
      %1456 = vmatpush1.bf16.msra.mxu0 0
      %1457 = vmatprep.subr.bf16.mxu0 0
      %1458 = vmatpush1.bf16.msra.mxu0 0
      %1459 = vmatprep.mubr.bf16.mxu0 0
      %1460 = vmatmul.mubr.bf16.gmra.mrb[0].mxu0 %v1416
      %v1461 = vpop.f32.mrb[0].mxu0
      %v1462 = vadd.f32 0.0, %v1461
      %v1463 = vpop.f32.mrb[0].mxu0
      %v1464 = vadd.f32 0.0, %v1463
      %v1465 = vpop.f32.mrb[0].mxu0
      %v1466 = vpop.f32.mrb[0].mxu0
      %1467 = vdwg.mxu0
      %1468 = vmatprep.subr.bf16.mxu0 0
      %1469 = vmatpush1.bf16.msra.mxu0 %v1425
      %1470 = vmatprep.subr.bf16.mxu0 0
      %1471 = vmatpush1.bf16.msra.mxu0 0
      %1472 = vmatprep.subr.bf16.mxu0 0
      %1473 = vmatpush1.bf16.msra.mxu0 0
      %1474 = vmatprep.subr.bf16.mxu0 0
      %1475 = vmatpush1.bf16.msra.mxu0 0
      %1476 = vmatprep.subr.bf16.mxu0 0
      %1477 = vmatpush1.bf16.msra.mxu0 0
      %1478 = vmatprep.subr.bf16.mxu0 0
      %1479 = vmatpush1.bf16.msra.mxu0 0
      %1480 = vmatprep.subr.bf16.mxu0 0
      %1481 = vmatpush1.bf16.msra.mxu0 0
      %1482 = vmatprep.subr.bf16.mxu0 0
      %1483 = vmatpush1.bf16.msra.mxu0 0
      %1484 = vmatprep.subr.bf16.mxu0 0
      %1485 = vmatpush1.bf16.msra.mxu0 0
      %1486 = vmatprep.subr.bf16.mxu0 0
      %1487 = vmatpush1.bf16.msra.mxu0 0
      %1488 = vmatprep.subr.bf16.mxu0 0
      %1489 = vmatpush1.bf16.msra.mxu0 0
      %1490 = vmatprep.subr.bf16.mxu0 0
      %1491 = vmatpush1.bf16.msra.mxu0 0
      %1492 = vmatprep.subr.bf16.mxu0 0
      %1493 = vmatpush1.bf16.msra.mxu0 0
      %1494 = vmatprep.subr.bf16.mxu0 0
      %1495 = vmatpush1.bf16.msra.mxu0 0
      %1496 = vmatprep.subr.bf16.mxu0 0
      %1497 = vmatpush1.bf16.msra.mxu0 0
      %1498 = vmatprep.subr.bf16.mxu0 0
      %1499 = vmatpush1.bf16.msra.mxu0 0
      %1500 = vmatprep.mubr.bf16.mxu0 0
      %1501 = vmatmul.mubr.bf16.gmra.mrb[0].mxu0 %v1416
      %v1502 = vpop.f32.mrb[0].mxu0
      %v1503 = vadd.f32 0.0, %v1502
      %v1504 = vpop.f32.mrb[0].mxu0
      %v1505 = vpop.f32.mrb[0].mxu0
      %v1506 = vpop.f32.mrb[0].mxu0
      %1507 = vdwg.mxu0
      %v1508 = vadd.f32 %v1397, %v1462
      %v1509 = vadd.f32 %v1398, %v1464
      %v1510 = vadd.f32 %v1399, %v1503
      %v1511 = vld [vmem:[%s2] sm:$0xff]
      %1513 = vset.pattern.permute.xlu0 0
      %1514 = vperm.xlu0 %1513, %v1511
      %v1515 = vpop.permute.xlu0 %1514
      %v1517 = vadd.f32 %v1508, %v1515
      %v1518 = vadd.f32 %v1509, %v1515
      %v1519 = vadd.f32 %v1510, %v1515
      %v1520 = vmax.f32 %v1517, 0.0
      %v1521 = vmax.f32 %v1518, 0.0
      %v1522 = vmax.f32 %v1519, 0.0
      %v1524 = vlaneseq
      %v1525 = vshrl.u32 %v1524, 7
      %v1526 = vsub.s32 0, %v1525
      %v1527 = vrot.slane %v524, %v1526
      %v1528 = vlaneseq
      %v1529 = vshrl.u32 %v1528, 7
      %v1530 = vsub.s32 1, %v1529
      %v1531 = vrot.slane %v524, %v1530
      %v1532 = vlaneseq
      %v1533 = vshrl.u32 %v1532, 7
      %v1534 = vsub.s32 2, %v1533
      %v1535 = vrot.slane %v524, %v1534
      %v1539 = vmul.f32 %v1520, %v1527
      %v1540 = vmul.f32 %v1521, %v1531
      %v1541 = vmul.f32 %v1522, %v1535
      %1542 = vrot.lane.b32.xlu0 %v1539, 19
      %v1543 = vpop.permute.xlu0 %1542
      %1544 = vrot.lane.b32.xlu0 %v1540, 19
      %v1545 = vpop.permute.xlu0 %1544
      %1546 = vrot.lane.b32.xlu0 %v1541, 19
      %v1547 = vpop.permute.xlu0 %1546
      %vm1548 = vcmp.lt.s32.totalorder %v536, 19
      %v1549 = vsel %vm1548, %v1545, %v1547
      %v1550 = vsel %vm1548, %v1543, %v1545
      %v1551 = vsel %vm1548, %v1547, %v1543
      %v1552 = vld [vmem:[%s3] sm:$0xf]
      %v1553 = vpack.c.bf16 %v1551, %v1551
      %v1554 = vpack.c.bf16 %v1550, %v1550
      %v1555 = vpack.c.bf16 %v1549, %v1549
      %1556 = vrot.lane.b32.xlu0 %v1539, 18
      %v1557 = vpop.permute.xlu0 %1556
      %1558 = vrot.lane.b32.xlu0 %v1540, 18
      %v1559 = vpop.permute.xlu0 %1558
      %1560 = vrot.lane.b32.xlu0 %v1541, 18
      %v1561 = vpop.permute.xlu0 %1560
      %vm1562 = vcmp.lt.s32.totalorder %v536, 18
      %v1563 = vsel %vm1562, %v1559, %v1561
      %v1564 = vsel %vm1562, %v1557, %v1559
      %v1565 = vsel %vm1562, %v1561, %v1557
      %s1566 = scalar_lea.vmem %s3, 4
      %v1567 = vld [vmem:[%s1566] sm:$0xf]
      %v1568 = vpack.c.bf16 %v1565, %v1565
      %v1569 = vpack.c.bf16 %v1564, %v1564
      %v1570 = vpack.c.bf16 %v1563, %v1563
      %v1572 = vsel %vm546, %v1567, 0
      %v1575 = vsel %vm550, %v1568, 0
      %v1578 = vsel %vm550, %v1569, 0
      %v1581 = vsel %vm550, %v1570, 0
      %1583 = vmatprep.subr.bf16.mxu0 %v1578
      %1584 = vmatpush1.bf16.msra.mxu0 %v1575
      %1585 = vmatprep.subr.bf16.mxu0 0
      %1586 = vmatpush1.bf16.msra.mxu0 0
      %1587 = vmatprep.subr.bf16.mxu0 0
      %1588 = vmatpush1.bf16.msra.mxu0 0
      %1589 = vmatprep.subr.bf16.mxu0 0
      %1590 = vmatpush1.bf16.msra.mxu0 0
      %1591 = vmatprep.subr.bf16.mxu0 0
      %1592 = vmatpush1.bf16.msra.mxu0 0
      %1593 = vmatprep.subr.bf16.mxu0 0
      %1594 = vmatpush1.bf16.msra.mxu0 0
      %1595 = vmatprep.subr.bf16.mxu0 0
      %1596 = vmatpush1.bf16.msra.mxu0 0
      %1597 = vmatprep.subr.bf16.mxu0 0
      %1598 = vmatpush1.bf16.msra.mxu0 0
      %1599 = vmatprep.subr.bf16.mxu0 0
      %1600 = vmatpush1.bf16.msra.mxu0 0
      %1601 = vmatprep.subr.bf16.mxu0 0
      %1602 = vmatpush1.bf16.msra.mxu0 0
      %1603 = vmatprep.subr.bf16.mxu0 0
      %1604 = vmatpush1.bf16.msra.mxu0 0
      %1605 = vmatprep.subr.bf16.mxu0 0
      %1606 = vmatpush1.bf16.msra.mxu0 0
      %1607 = vmatprep.subr.bf16.mxu0 0
      %1608 = vmatpush1.bf16.msra.mxu0 0
      %1609 = vmatprep.subr.bf16.mxu0 0
      %1610 = vmatpush1.bf16.msra.mxu0 0
      %1611 = vmatprep.subr.bf16.mxu0 0
      %1612 = vmatpush1.bf16.msra.mxu0 0
      %1613 = vmatprep.subr.bf16.mxu0 0
      %1614 = vmatpush1.bf16.msra.mxu0 0
      %1615 = vmatprep.mubr.bf16.mxu0 0
      %1616 = vmatmul.mubr.bf16.gmra.mrb[0].mxu0 %v1572
      %v1617 = vpop.f32.mrb[0].mxu0
      %v1618 = vadd.f32 0.0, %v1617
      %v1619 = vpop.f32.mrb[0].mxu0
      %v1620 = vadd.f32 0.0, %v1619
      %v1621 = vpop.f32.mrb[0].mxu0
      %v1622 = vpop.f32.mrb[0].mxu0
      %1623 = vdwg.mxu0
      %1624 = vmatprep.subr.bf16.mxu0 0
      %1625 = vmatpush1.bf16.msra.mxu0 %v1581
      %1626 = vmatprep.subr.bf16.mxu0 0
      %1627 = vmatpush1.bf16.msra.mxu0 0
      %1628 = vmatprep.subr.bf16.mxu0 0
      %1629 = vmatpush1.bf16.msra.mxu0 0
      %1630 = vmatprep.subr.bf16.mxu0 0
      %1631 = vmatpush1.bf16.msra.mxu0 0
      %1632 = vmatprep.subr.bf16.mxu0 0
      %1633 = vmatpush1.bf16.msra.mxu0 0
      %1634 = vmatprep.subr.bf16.mxu0 0
      %1635 = vmatpush1.bf16.msra.mxu0 0
      %1636 = vmatprep.subr.bf16.mxu0 0
      %1637 = vmatpush1.bf16.msra.mxu0 0
      %1638 = vmatprep.subr.bf16.mxu0 0
      %1639 = vmatpush1.bf16.msra.mxu0 0
      %1640 = vmatprep.subr.bf16.mxu0 0
      %1641 = vmatpush1.bf16.msra.mxu0 0
      %1642 = vmatprep.subr.bf16.mxu0 0
      %1643 = vmatpush1.bf16.msra.mxu0 0
      %1644 = vmatprep.subr.bf16.mxu0 0
      %1645 = vmatpush1.bf16.msra.mxu0 0
      %1646 = vmatprep.subr.bf16.mxu0 0
      %1647 = vmatpush1.bf16.msra.mxu0 0
      %1648 = vmatprep.subr.bf16.mxu0 0
      %1649 = vmatpush1.bf16.msra.mxu0 0
      %1650 = vmatprep.subr.bf16.mxu0 0
      %1651 = vmatpush1.bf16.msra.mxu0 0
      %1652 = vmatprep.subr.bf16.mxu0 0
      %1653 = vmatpush1.bf16.msra.mxu0 0
      %1654 = vmatprep.subr.bf16.mxu0 0
      %1655 = vmatpush1.bf16.msra.mxu0 0
      %1656 = vmatprep.mubr.bf16.mxu0 0
      %1657 = vmatmul.mubr.bf16.gmra.mrb[0].mxu0 %v1572
      %v1658 = vpop.f32.mrb[0].mxu0
      %v1659 = vadd.f32 0.0, %v1658
      %v1660 = vpop.f32.mrb[0].mxu0
      %v1661 = vpop.f32.mrb[0].mxu0
      %v1662 = vpop.f32.mrb[0].mxu0
      %1663 = vdwg.mxu0
      %v1665 = vsel %vm546, %v1552, 0
      %v1668 = vsel %vm550, %v1553, 0
      %v1671 = vsel %vm550, %v1554, 0
      %v1674 = vsel %vm550, %v1555, 0
      %1676 = vmatprep.subr.bf16.mxu0 %v1671
      %1677 = vmatpush1.bf16.msra.mxu0 %v1668
      %1678 = vmatprep.subr.bf16.mxu0 0
      %1679 = vmatpush1.bf16.msra.mxu0 0
      %1680 = vmatprep.subr.bf16.mxu0 0
      %1681 = vmatpush1.bf16.msra.mxu0 0
      %1682 = vmatprep.subr.bf16.mxu0 0
      %1683 = vmatpush1.bf16.msra.mxu0 0
      %1684 = vmatprep.subr.bf16.mxu0 0
      %1685 = vmatpush1.bf16.msra.mxu0 0
      %1686 = vmatprep.subr.bf16.mxu0 0
      %1687 = vmatpush1.bf16.msra.mxu0 0
      %1688 = vmatprep.subr.bf16.mxu0 0
      %1689 = vmatpush1.bf16.msra.mxu0 0
      %1690 = vmatprep.subr.bf16.mxu0 0
      %1691 = vmatpush1.bf16.msra.mxu0 0
      %1692 = vmatprep.subr.bf16.mxu0 0
      %1693 = vmatpush1.bf16.msra.mxu0 0
      %1694 = vmatprep.subr.bf16.mxu0 0
      %1695 = vmatpush1.bf16.msra.mxu0 0
      %1696 = vmatprep.subr.bf16.mxu0 0
      %1697 = vmatpush1.bf16.msra.mxu0 0
      %1698 = vmatprep.subr.bf16.mxu0 0
      %1699 = vmatpush1.bf16.msra.mxu0 0
      %1700 = vmatprep.subr.bf16.mxu0 0
      %1701 = vmatpush1.bf16.msra.mxu0 0
      %1702 = vmatprep.subr.bf16.mxu0 0
      %1703 = vmatpush1.bf16.msra.mxu0 0
      %1704 = vmatprep.subr.bf16.mxu0 0
      %1705 = vmatpush1.bf16.msra.mxu0 0
      %1706 = vmatprep.subr.bf16.mxu0 0
      %1707 = vmatpush1.bf16.msra.mxu0 0
      %1708 = vmatprep.mubr.bf16.mxu0 0
      %1709 = vmatmul.mubr.bf16.gmra.mrb[0].mxu0 %v1665
      %v1710 = vpop.f32.mrb[0].mxu0
      %v1711 = vadd.f32 %v1618, %v1710
      %v1712 = vpop.f32.mrb[0].mxu0
      %v1713 = vadd.f32 %v1620, %v1712
      %v1714 = vpop.f32.mrb[0].mxu0
      %v1715 = vpop.f32.mrb[0].mxu0
      %1716 = vdwg.mxu0
      %1717 = vmatprep.subr.bf16.mxu0 0
      %1718 = vmatpush1.bf16.msra.mxu0 %v1674
      %1719 = vmatprep.subr.bf16.mxu0 0
      %1720 = vmatpush1.bf16.msra.mxu0 0
      %1721 = vmatprep.subr.bf16.mxu0 0
      %1722 = vmatpush1.bf16.msra.mxu0 0
      %1723 = vmatprep.subr.bf16.mxu0 0
      %1724 = vmatpush1.bf16.msra.mxu0 0
      %1725 = vmatprep.subr.bf16.mxu0 0
      %1726 = vmatpush1.bf16.msra.mxu0 0
      %1727 = vmatprep.subr.bf16.mxu0 0
      %1728 = vmatpush1.bf16.msra.mxu0 0
      %1729 = vmatprep.subr.bf16.mxu0 0
      %1730 = vmatpush1.bf16.msra.mxu0 0
      %1731 = vmatprep.subr.bf16.mxu0 0
      %1732 = vmatpush1.bf16.msra.mxu0 0
      %1733 = vmatprep.subr.bf16.mxu0 0
      %1734 = vmatpush1.bf16.msra.mxu0 0
      %1735 = vmatprep.subr.bf16.mxu0 0
      %1736 = vmatpush1.bf16.msra.mxu0 0
      %1737 = vmatprep.subr.bf16.mxu0 0
      %1738 = vmatpush1.bf16.msra.mxu0 0
      %1739 = vmatprep.subr.bf16.mxu0 0
      %1740 = vmatpush1.bf16.msra.mxu0 0
      %1741 = vmatprep.subr.bf16.mxu0 0
      %1742 = vmatpush1.bf16.msra.mxu0 0
      %1743 = vmatprep.subr.bf16.mxu0 0
      %1744 = vmatpush1.bf16.msra.mxu0 0
      %1745 = vmatprep.subr.bf16.mxu0 0
      %1746 = vmatpush1.bf16.msra.mxu0 0
      %1747 = vmatprep.subr.bf16.mxu0 0
      %1748 = vmatpush1.bf16.msra.mxu0 0
      %1749 = vmatprep.mubr.bf16.mxu0 0
      %1750 = vmatmul.mubr.bf16.gmra.mrb[0].mxu0 %v1665
      %v1751 = vpop.f32.mrb[0].mxu0
      %v1752 = vadd.f32 %v1659, %v1751
      %v1753 = vpop.f32.mrb[0].mxu0
      %v1754 = vpop.f32.mrb[0].mxu0
      %v1755 = vpop.f32.mrb[0].mxu0
      %1756 = vdwg.mxu0
      %1757 = vrot.lane.b32.xlu0 %v1539, 17
      %v1758 = vpop.permute.xlu0 %1757
      %1759 = vrot.lane.b32.xlu0 %v1540, 17
      %v1760 = vpop.permute.xlu0 %1759
      %1761 = vrot.lane.b32.xlu0 %v1541, 17
      %v1762 = vpop.permute.xlu0 %1761
      %vm1763 = vcmp.lt.s32.totalorder %v536, 17
      %v1764 = vsel %vm1763, %v1760, %v1762
      %v1765 = vsel %vm1763, %v1758, %v1760
      %v1766 = vsel %vm1763, %v1762, %v1758
      %s1767 = scalar_lea.vmem %s3, 8
      %v1768 = vld [vmem:[%s1767] sm:$0xf]
      %v1769 = vpack.c.bf16 %v1766, %v1766
      %v1770 = vpack.c.bf16 %v1765, %v1765
      %v1771 = vpack.c.bf16 %v1764, %v1764
      %v1773 = vsel %vm546, %v1768, 0
      %v1776 = vsel %vm550, %v1769, 0
      %v1779 = vsel %vm550, %v1770, 0
      %v1782 = vsel %vm550, %v1771, 0
      %1784 = vmatprep.subr.bf16.mxu0 %v1779
      %1785 = vmatpush1.bf16.msra.mxu0 %v1776
      %1786 = vmatprep.subr.bf16.mxu0 0
      %1787 = vmatpush1.bf16.msra.mxu0 0
      %1788 = vmatprep.subr.bf16.mxu0 0
      %1789 = vmatpush1.bf16.msra.mxu0 0
      %1790 = vmatprep.subr.bf16.mxu0 0
      %1791 = vmatpush1.bf16.msra.mxu0 0
      %1792 = vmatprep.subr.bf16.mxu0 0
      %1793 = vmatpush1.bf16.msra.mxu0 0
      %1794 = vmatprep.subr.bf16.mxu0 0
      %1795 = vmatpush1.bf16.msra.mxu0 0
      %1796 = vmatprep.subr.bf16.mxu0 0
      %1797 = vmatpush1.bf16.msra.mxu0 0
      %1798 = vmatprep.subr.bf16.mxu0 0
      %1799 = vmatpush1.bf16.msra.mxu0 0
      %1800 = vmatprep.subr.bf16.mxu0 0
      %1801 = vmatpush1.bf16.msra.mxu0 0
      %1802 = vmatprep.subr.bf16.mxu0 0
      %1803 = vmatpush1.bf16.msra.mxu0 0
      %1804 = vmatprep.subr.bf16.mxu0 0
      %1805 = vmatpush1.bf16.msra.mxu0 0
      %1806 = vmatprep.subr.bf16.mxu0 0
      %1807 = vmatpush1.bf16.msra.mxu0 0
      %1808 = vmatprep.subr.bf16.mxu0 0
      %1809 = vmatpush1.bf16.msra.mxu0 0
      %1810 = vmatprep.subr.bf16.mxu0 0
      %1811 = vmatpush1.bf16.msra.mxu0 0
      %1812 = vmatprep.subr.bf16.mxu0 0
      %1813 = vmatpush1.bf16.msra.mxu0 0
      %1814 = vmatprep.subr.bf16.mxu0 0
      %1815 = vmatpush1.bf16.msra.mxu0 0
      %1816 = vmatprep.mubr.bf16.mxu0 0
      %1817 = vmatmul.mubr.bf16.gmra.mrb[0].mxu0 %v1773
      %v1818 = vpop.f32.mrb[0].mxu0
      %v1819 = vadd.f32 0.0, %v1818
      %v1820 = vpop.f32.mrb[0].mxu0
      %v1821 = vadd.f32 0.0, %v1820
      %v1822 = vpop.f32.mrb[0].mxu0
      %v1823 = vpop.f32.mrb[0].mxu0
      %1824 = vdwg.mxu0
      %1825 = vmatprep.subr.bf16.mxu0 0
      %1826 = vmatpush1.bf16.msra.mxu0 %v1782
      %1827 = vmatprep.subr.bf16.mxu0 0
      %1828 = vmatpush1.bf16.msra.mxu0 0
      %1829 = vmatprep.subr.bf16.mxu0 0
      %1830 = vmatpush1.bf16.msra.mxu0 0
      %1831 = vmatprep.subr.bf16.mxu0 0
      %1832 = vmatpush1.bf16.msra.mxu0 0
      %1833 = vmatprep.subr.bf16.mxu0 0
      %1834 = vmatpush1.bf16.msra.mxu0 0
      %1835 = vmatprep.subr.bf16.mxu0 0
      %1836 = vmatpush1.bf16.msra.mxu0 0
      %1837 = vmatprep.subr.bf16.mxu0 0
      %1838 = vmatpush1.bf16.msra.mxu0 0
      %1839 = vmatprep.subr.bf16.mxu0 0
      %1840 = vmatpush1.bf16.msra.mxu0 0
      %1841 = vmatprep.subr.bf16.mxu0 0
      %1842 = vmatpush1.bf16.msra.mxu0 0
      %1843 = vmatprep.subr.bf16.mxu0 0
      %1844 = vmatpush1.bf16.msra.mxu0 0
      %1845 = vmatprep.subr.bf16.mxu0 0
      %1846 = vmatpush1.bf16.msra.mxu0 0
      %1847 = vmatprep.subr.bf16.mxu0 0
      %1848 = vmatpush1.bf16.msra.mxu0 0
      %1849 = vmatprep.subr.bf16.mxu0 0
      %1850 = vmatpush1.bf16.msra.mxu0 0
      %1851 = vmatprep.subr.bf16.mxu0 0
      %1852 = vmatpush1.bf16.msra.mxu0 0
      %1853 = vmatprep.subr.bf16.mxu0 0
      %1854 = vmatpush1.bf16.msra.mxu0 0
      %1855 = vmatprep.subr.bf16.mxu0 0
      %1856 = vmatpush1.bf16.msra.mxu0 0
      %1857 = vmatprep.mubr.bf16.mxu0 0
      %1858 = vmatmul.mubr.bf16.gmra.mrb[0].mxu0 %v1773
      %v1859 = vpop.f32.mrb[0].mxu0
      %v1860 = vadd.f32 0.0, %v1859
      %v1861 = vpop.f32.mrb[0].mxu0
      %v1862 = vpop.f32.mrb[0].mxu0
      %v1863 = vpop.f32.mrb[0].mxu0
      %1864 = vdwg.mxu0
      %v1865 = vadd.f32 %v1711, %v1819
      %v1866 = vadd.f32 %v1713, %v1821
      %v1867 = vadd.f32 %v1752, %v1860
      %1868 = vrot.lane.b32.xlu0 %v1539, 1
      %v1869 = vpop.permute.xlu0 %1868
      %1870 = vrot.lane.b32.xlu0 %v1540, 1
      %v1871 = vpop.permute.xlu0 %1870
      %1872 = vrot.lane.b32.xlu0 %v1541, 1
      %v1873 = vpop.permute.xlu0 %1872
      %vm1874 = vcmp.lt.s32.totalorder %v536, 1
      %v1875 = vsel %vm1874, %v1871, %v1873
      %v1876 = vsel %vm1874, %v1869, %v1871
      %v1877 = vsel %vm1874, %v1873, %v1869
      %s1878 = scalar_lea.vmem %s3, 12
      %v1879 = vld [vmem:[%s1878] sm:$0xf]
      %v1880 = vpack.c.bf16 %v1877, %v1877
      %v1881 = vpack.c.bf16 %v1876, %v1876
      %v1882 = vpack.c.bf16 %v1875, %v1875
      %v1884 = vsel %vm546, %v1879, 0
      %v1887 = vsel %vm550, %v1880, 0
      %v1890 = vsel %vm550, %v1881, 0
      %v1893 = vsel %vm550, %v1882, 0
      %1895 = vmatprep.subr.bf16.mxu0 %v1890
      %1896 = vmatpush1.bf16.msra.mxu0 %v1887
      %1897 = vmatprep.subr.bf16.mxu0 0
      %1898 = vmatpush1.bf16.msra.mxu0 0
      %1899 = vmatprep.subr.bf16.mxu0 0
      %1900 = vmatpush1.bf16.msra.mxu0 0
      %1901 = vmatprep.subr.bf16.mxu0 0
      %1902 = vmatpush1.bf16.msra.mxu0 0
      %1903 = vmatprep.subr.bf16.mxu0 0
      %1904 = vmatpush1.bf16.msra.mxu0 0
      %1905 = vmatprep.subr.bf16.mxu0 0
      %1906 = vmatpush1.bf16.msra.mxu0 0
      %1907 = vmatprep.subr.bf16.mxu0 0
      %1908 = vmatpush1.bf16.msra.mxu0 0
      %1909 = vmatprep.subr.bf16.mxu0 0
      %1910 = vmatpush1.bf16.msra.mxu0 0
      %1911 = vmatprep.subr.bf16.mxu0 0
      %1912 = vmatpush1.bf16.msra.mxu0 0
      %1913 = vmatprep.subr.bf16.mxu0 0
      %1914 = vmatpush1.bf16.msra.mxu0 0
      %1915 = vmatprep.subr.bf16.mxu0 0
      %1916 = vmatpush1.bf16.msra.mxu0 0
      %1917 = vmatprep.subr.bf16.mxu0 0
      %1918 = vmatpush1.bf16.msra.mxu0 0
      %1919 = vmatprep.subr.bf16.mxu0 0
      %1920 = vmatpush1.bf16.msra.mxu0 0
      %1921 = vmatprep.subr.bf16.mxu0 0
      %1922 = vmatpush1.bf16.msra.mxu0 0
      %1923 = vmatprep.subr.bf16.mxu0 0
      %1924 = vmatpush1.bf16.msra.mxu0 0
      %1925 = vmatprep.subr.bf16.mxu0 0
      %1926 = vmatpush1.bf16.msra.mxu0 0
      %1927 = vmatprep.mubr.bf16.mxu0 0
      %1928 = vmatmul.mubr.bf16.gmra.mrb[0].mxu0 %v1884
      %v1929 = vpop.f32.mrb[0].mxu0
      %v1930 = vadd.f32 0.0, %v1929
      %v1931 = vpop.f32.mrb[0].mxu0
      %v1932 = vadd.f32 0.0, %v1931
      %v1933 = vpop.f32.mrb[0].mxu0
      %v1934 = vpop.f32.mrb[0].mxu0
      %1935 = vdwg.mxu0
      %1936 = vmatprep.subr.bf16.mxu0 0
      %1937 = vmatpush1.bf16.msra.mxu0 %v1893
      %1938 = vmatprep.subr.bf16.mxu0 0
      %1939 = vmatpush1.bf16.msra.mxu0 0
      %1940 = vmatprep.subr.bf16.mxu0 0
      %1941 = vmatpush1.bf16.msra.mxu0 0
      %1942 = vmatprep.subr.bf16.mxu0 0
      %1943 = vmatpush1.bf16.msra.mxu0 0
      %1944 = vmatprep.subr.bf16.mxu0 0
      %1945 = vmatpush1.bf16.msra.mxu0 0
      %1946 = vmatprep.subr.bf16.mxu0 0
      %1947 = vmatpush1.bf16.msra.mxu0 0
      %1948 = vmatprep.subr.bf16.mxu0 0
      %1949 = vmatpush1.bf16.msra.mxu0 0
      %1950 = vmatprep.subr.bf16.mxu0 0
      %1951 = vmatpush1.bf16.msra.mxu0 0
      %1952 = vmatprep.subr.bf16.mxu0 0
      %1953 = vmatpush1.bf16.msra.mxu0 0
      %1954 = vmatprep.subr.bf16.mxu0 0
      %1955 = vmatpush1.bf16.msra.mxu0 0
      %1956 = vmatprep.subr.bf16.mxu0 0
      %1957 = vmatpush1.bf16.msra.mxu0 0
      %1958 = vmatprep.subr.bf16.mxu0 0
      %1959 = vmatpush1.bf16.msra.mxu0 0
      %1960 = vmatprep.subr.bf16.mxu0 0
      %1961 = vmatpush1.bf16.msra.mxu0 0
      %1962 = vmatprep.subr.bf16.mxu0 0
      %1963 = vmatpush1.bf16.msra.mxu0 0
      %1964 = vmatprep.subr.bf16.mxu0 0
      %1965 = vmatpush1.bf16.msra.mxu0 0
      %1966 = vmatprep.subr.bf16.mxu0 0
      %1967 = vmatpush1.bf16.msra.mxu0 0
      %1968 = vmatprep.mubr.bf16.mxu0 0
      %1969 = vmatmul.mubr.bf16.gmra.mrb[0].mxu0 %v1884
      %v1970 = vpop.f32.mrb[0].mxu0
      %v1971 = vadd.f32 0.0, %v1970
      %v1972 = vpop.f32.mrb[0].mxu0
      %v1973 = vpop.f32.mrb[0].mxu0
      %v1974 = vpop.f32.mrb[0].mxu0
      %1975 = vdwg.mxu0
      %v1976 = vadd.f32 %v1865, %v1930
      %v1977 = vadd.f32 %v1866, %v1932
      %v1978 = vadd.f32 %v1867, %v1971
      %s1979 = scalar_lea.vmem %s3, 16
      %v1980 = vld [vmem:[%s1979] sm:$0xf]
      %v1981 = vpack.c.bf16 %v1539, %v1539
      %v1982 = vpack.c.bf16 %v1540, %v1540
      %v1983 = vpack.c.bf16 %v1541, %v1541
      %v1985 = vsel %vm546, %v1980, 0
      %v1988 = vsel %vm550, %v1981, 0
      %v1991 = vsel %vm550, %v1982, 0
      %v1994 = vsel %vm550, %v1983, 0
      %1996 = vmatprep.subr.bf16.mxu0 %v1991
      %1997 = vmatpush1.bf16.msra.mxu0 %v1988
      %1998 = vmatprep.subr.bf16.mxu0 0
      %1999 = vmatpush1.bf16.msra.mxu0 0
      %2000 = vmatprep.subr.bf16.mxu0 0
      %2001 = vmatpush1.bf16.msra.mxu0 0
      %2002 = vmatprep.subr.bf16.mxu0 0
      %2003 = vmatpush1.bf16.msra.mxu0 0
      %2004 = vmatprep.subr.bf16.mxu0 0
      %2005 = vmatpush1.bf16.msra.mxu0 0
      %2006 = vmatprep.subr.bf16.mxu0 0
      %2007 = vmatpush1.bf16.msra.mxu0 0
      %2008 = vmatprep.subr.bf16.mxu0 0
      %2009 = vmatpush1.bf16.msra.mxu0 0
      %2010 = vmatprep.subr.bf16.mxu0 0
      %2011 = vmatpush1.bf16.msra.mxu0 0
      %2012 = vmatprep.subr.bf16.mxu0 0
      %2013 = vmatpush1.bf16.msra.mxu0 0
      %2014 = vmatprep.subr.bf16.mxu0 0
      %2015 = vmatpush1.bf16.msra.mxu0 0
      %2016 = vmatprep.subr.bf16.mxu0 0
      %2017 = vmatpush1.bf16.msra.mxu0 0
      %2018 = vmatprep.subr.bf16.mxu0 0
      %2019 = vmatpush1.bf16.msra.mxu0 0
      %2020 = vmatprep.subr.bf16.mxu0 0
      %2021 = vmatpush1.bf16.msra.mxu0 0
      %2022 = vmatprep.subr.bf16.mxu0 0
      %2023 = vmatpush1.bf16.msra.mxu0 0
      %2024 = vmatprep.subr.bf16.mxu0 0
      %2025 = vmatpush1.bf16.msra.mxu0 0
      %2026 = vmatprep.subr.bf16.mxu0 0
      %2027 = vmatpush1.bf16.msra.mxu0 0
      %2028 = vmatprep.mubr.bf16.mxu0 0
      %2029 = vmatmul.mubr.bf16.gmra.mrb[0].mxu0 %v1985
      %v2030 = vpop.f32.mrb[0].mxu0
      %v2031 = vadd.f32 0.0, %v2030
      %v2032 = vpop.f32.mrb[0].mxu0
      %v2033 = vadd.f32 0.0, %v2032
      %v2034 = vpop.f32.mrb[0].mxu0
      %v2035 = vpop.f32.mrb[0].mxu0
      %2036 = vdwg.mxu0
      %2037 = vmatprep.subr.bf16.mxu0 0
      %2038 = vmatpush1.bf16.msra.mxu0 %v1994
      %2039 = vmatprep.subr.bf16.mxu0 0
      %2040 = vmatpush1.bf16.msra.mxu0 0
      %2041 = vmatprep.subr.bf16.mxu0 0
      %2042 = vmatpush1.bf16.msra.mxu0 0
      %2043 = vmatprep.subr.bf16.mxu0 0
      %2044 = vmatpush1.bf16.msra.mxu0 0
      %2045 = vmatprep.subr.bf16.mxu0 0
      %2046 = vmatpush1.bf16.msra.mxu0 0
      %2047 = vmatprep.subr.bf16.mxu0 0
      %2048 = vmatpush1.bf16.msra.mxu0 0
      %2049 = vmatprep.subr.bf16.mxu0 0
      %2050 = vmatpush1.bf16.msra.mxu0 0
      %2051 = vmatprep.subr.bf16.mxu0 0
      %2052 = vmatpush1.bf16.msra.mxu0 0
      %2053 = vmatprep.subr.bf16.mxu0 0
      %2054 = vmatpush1.bf16.msra.mxu0 0
      %2055 = vmatprep.subr.bf16.mxu0 0
      %2056 = vmatpush1.bf16.msra.mxu0 0
      %2057 = vmatprep.subr.bf16.mxu0 0
      %2058 = vmatpush1.bf16.msra.mxu0 0
      %2059 = vmatprep.subr.bf16.mxu0 0
      %2060 = vmatpush1.bf16.msra.mxu0 0
      %2061 = vmatprep.subr.bf16.mxu0 0
      %2062 = vmatpush1.bf16.msra.mxu0 0
      %2063 = vmatprep.subr.bf16.mxu0 0
      %2064 = vmatpush1.bf16.msra.mxu0 0
      %2065 = vmatprep.subr.bf16.mxu0 0
      %2066 = vmatpush1.bf16.msra.mxu0 0
      %2067 = vmatprep.subr.bf16.mxu0 0
      %2068 = vmatpush1.bf16.msra.mxu0 0
      %2069 = vmatprep.mubr.bf16.mxu0 0
      %2070 = vmatmul.mubr.bf16.gmra.mrb[0].mxu0 %v1985
      %v2071 = vpop.f32.mrb[0].mxu0
      %v2072 = vadd.f32 0.0, %v2071
      %v2073 = vpop.f32.mrb[0].mxu0
      %v2074 = vpop.f32.mrb[0].mxu0
      %v2075 = vpop.f32.mrb[0].mxu0
      %2076 = vdwg.mxu0
      %v2077 = vadd.f32 %v1976, %v2031
      %v2078 = vadd.f32 %v1977, %v2033
      %v2079 = vadd.f32 %v1978, %v2072
      %2080 = vrot.lane.b32.xlu0 %v1539, 127
      %v2081 = vpop.permute.xlu0 %2080
      %2082 = vrot.lane.b32.xlu0 %v1540, 127
      %v2083 = vpop.permute.xlu0 %2082
      %2084 = vrot.lane.b32.xlu0 %v1541, 127
      %v2085 = vpop.permute.xlu0 %2084
      %v2086 = vsel %vm537, %v2083, %v2085
      %v2087 = vsel %vm537, %v2081, %v2083
      %v2088 = vsel %vm537, %v2085, %v2081
      %s2089 = scalar_lea.vmem %s3, 20
      %v2090 = vld [vmem:[%s2089] sm:$0xf]
      %v2091 = vpack.c.bf16 %v2087, %v2087
      %v2092 = vpack.c.bf16 %v2086, %v2086
      %v2093 = vpack.c.bf16 %v2088, %v2088
      %v2095 = vsel %vm546, %v2090, 0
      %v2098 = vsel %vm550, %v2091, 0
      %v2101 = vsel %vm550, %v2092, 0
      %v2104 = vsel %vm550, %v2093, 0
      %2106 = vmatprep.subr.bf16.mxu0 %v2101
      %2107 = vmatpush1.bf16.msra.mxu0 %v2098
      %2108 = vmatprep.subr.bf16.mxu0 0
      %2109 = vmatpush1.bf16.msra.mxu0 0
      %2110 = vmatprep.subr.bf16.mxu0 0
      %2111 = vmatpush1.bf16.msra.mxu0 0
      %2112 = vmatprep.subr.bf16.mxu0 0
      %2113 = vmatpush1.bf16.msra.mxu0 0
      %2114 = vmatprep.subr.bf16.mxu0 0
      %2115 = vmatpush1.bf16.msra.mxu0 0
      %2116 = vmatprep.subr.bf16.mxu0 0
      %2117 = vmatpush1.bf16.msra.mxu0 0
      %2118 = vmatprep.subr.bf16.mxu0 0
      %2119 = vmatpush1.bf16.msra.mxu0 0
      %2120 = vmatprep.subr.bf16.mxu0 0
      %2121 = vmatpush1.bf16.msra.mxu0 0
      %2122 = vmatprep.subr.bf16.mxu0 0
      %2123 = vmatpush1.bf16.msra.mxu0 0
      %2124 = vmatprep.subr.bf16.mxu0 0
      %2125 = vmatpush1.bf16.msra.mxu0 0
      %2126 = vmatprep.subr.bf16.mxu0 0
      %2127 = vmatpush1.bf16.msra.mxu0 0
      %2128 = vmatprep.subr.bf16.mxu0 0
      %2129 = vmatpush1.bf16.msra.mxu0 0
      %2130 = vmatprep.subr.bf16.mxu0 0
      %2131 = vmatpush1.bf16.msra.mxu0 0
      %2132 = vmatprep.subr.bf16.mxu0 0
      %2133 = vmatpush1.bf16.msra.mxu0 0
      %2134 = vmatprep.subr.bf16.mxu0 0
      %2135 = vmatpush1.bf16.msra.mxu0 0
      %2136 = vmatprep.subr.bf16.mxu0 0
      %2137 = vmatpush1.bf16.msra.mxu0 0
      %2138 = vmatprep.mubr.bf16.mxu0 0
      %2139 = vmatmul.mubr.bf16.gmra.mrb[0].mxu0 %v2095
      %v2140 = vpop.f32.mrb[0].mxu0
      %v2141 = vadd.f32 0.0, %v2140
      %v2142 = vpop.f32.mrb[0].mxu0
      %v2143 = vadd.f32 0.0, %v2142
      %v2144 = vpop.f32.mrb[0].mxu0
      %v2145 = vpop.f32.mrb[0].mxu0
      %2146 = vdwg.mxu0
      %2147 = vmatprep.subr.bf16.mxu0 0
      %2148 = vmatpush1.bf16.msra.mxu0 %v2104
      %2149 = vmatprep.subr.bf16.mxu0 0
      %2150 = vmatpush1.bf16.msra.mxu0 0
      %2151 = vmatprep.subr.bf16.mxu0 0
      %2152 = vmatpush1.bf16.msra.mxu0 0
      %2153 = vmatprep.subr.bf16.mxu0 0
      %2154 = vmatpush1.bf16.msra.mxu0 0
      %2155 = vmatprep.subr.bf16.mxu0 0
      %2156 = vmatpush1.bf16.msra.mxu0 0
      %2157 = vmatprep.subr.bf16.mxu0 0
      %2158 = vmatpush1.bf16.msra.mxu0 0
      %2159 = vmatprep.subr.bf16.mxu0 0
      %2160 = vmatpush1.bf16.msra.mxu0 0
      %2161 = vmatprep.subr.bf16.mxu0 0
      %2162 = vmatpush1.bf16.msra.mxu0 0
      %2163 = vmatprep.subr.bf16.mxu0 0
      %2164 = vmatpush1.bf16.msra.mxu0 0
      %2165 = vmatprep.subr.bf16.mxu0 0
      %2166 = vmatpush1.bf16.msra.mxu0 0
      %2167 = vmatprep.subr.bf16.mxu0 0
      %2168 = vmatpush1.bf16.msra.mxu0 0
      %2169 = vmatprep.subr.bf16.mxu0 0
      %2170 = vmatpush1.bf16.msra.mxu0 0
      %2171 = vmatprep.subr.bf16.mxu0 0
      %2172 = vmatpush1.bf16.msra.mxu0 0
      %2173 = vmatprep.subr.bf16.mxu0 0
      %2174 = vmatpush1.bf16.msra.mxu0 0
      %2175 = vmatprep.subr.bf16.mxu0 0
      %2176 = vmatpush1.bf16.msra.mxu0 0
      %2177 = vmatprep.subr.bf16.mxu0 0
      %2178 = vmatpush1.bf16.msra.mxu0 0
      %2179 = vmatprep.mubr.bf16.mxu0 0
      %2180 = vmatmul.mubr.bf16.gmra.mrb[0].mxu0 %v2095
      %v2181 = vpop.f32.mrb[0].mxu0
      %v2182 = vadd.f32 0.0, %v2181
      %v2183 = vpop.f32.mrb[0].mxu0
      %v2184 = vpop.f32.mrb[0].mxu0
      %v2185 = vpop.f32.mrb[0].mxu0
      %2186 = vdwg.mxu0
      %v2187 = vadd.f32 %v2077, %v2141
      %v2188 = vadd.f32 %v2078, %v2143
      %v2189 = vadd.f32 %v2079, %v2182
      %2190 = vrot.lane.b32.xlu0 %v1539, 111
      %v2191 = vpop.permute.xlu0 %2190
      %2192 = vrot.lane.b32.xlu0 %v1540, 111
      %v2193 = vpop.permute.xlu0 %2192
      %2194 = vrot.lane.b32.xlu0 %v1541, 111
      %v2195 = vpop.permute.xlu0 %2194
      %vm2196 = vcmp.lt.s32.totalorder %v536, 111
      %v2197 = vsel %vm2196, %v2193, %v2195
      %v2198 = vsel %vm2196, %v2191, %v2193
      %v2199 = vsel %vm2196, %v2195, %v2191
      %s2200 = scalar_lea.vmem %s3, 24
      %v2201 = vld [vmem:[%s2200] sm:$0xf]
      %v2202 = vpack.c.bf16 %v2198, %v2198
      %v2203 = vpack.c.bf16 %v2197, %v2197
      %v2204 = vpack.c.bf16 %v2199, %v2199
      %v2206 = vsel %vm546, %v2201, 0
      %v2209 = vsel %vm550, %v2202, 0
      %v2212 = vsel %vm550, %v2203, 0
      %v2215 = vsel %vm550, %v2204, 0
      %2217 = vmatprep.subr.bf16.mxu0 %v2212
      %2218 = vmatpush1.bf16.msra.mxu0 %v2209
      %2219 = vmatprep.subr.bf16.mxu0 0
      %2220 = vmatpush1.bf16.msra.mxu0 0
      %2221 = vmatprep.subr.bf16.mxu0 0
      %2222 = vmatpush1.bf16.msra.mxu0 0
      %2223 = vmatprep.subr.bf16.mxu0 0
      %2224 = vmatpush1.bf16.msra.mxu0 0
      %2225 = vmatprep.subr.bf16.mxu0 0
      %2226 = vmatpush1.bf16.msra.mxu0 0
      %2227 = vmatprep.subr.bf16.mxu0 0
      %2228 = vmatpush1.bf16.msra.mxu0 0
      %2229 = vmatprep.subr.bf16.mxu0 0
      %2230 = vmatpush1.bf16.msra.mxu0 0
      %2231 = vmatprep.subr.bf16.mxu0 0
      %2232 = vmatpush1.bf16.msra.mxu0 0
      %2233 = vmatprep.subr.bf16.mxu0 0
      %2234 = vmatpush1.bf16.msra.mxu0 0
      %2235 = vmatprep.subr.bf16.mxu0 0
      %2236 = vmatpush1.bf16.msra.mxu0 0
      %2237 = vmatprep.subr.bf16.mxu0 0
      %2238 = vmatpush1.bf16.msra.mxu0 0
      %2239 = vmatprep.subr.bf16.mxu0 0
      %2240 = vmatpush1.bf16.msra.mxu0 0
      %2241 = vmatprep.subr.bf16.mxu0 0
      %2242 = vmatpush1.bf16.msra.mxu0 0
      %2243 = vmatprep.subr.bf16.mxu0 0
      %2244 = vmatpush1.bf16.msra.mxu0 0
      %2245 = vmatprep.subr.bf16.mxu0 0
      %2246 = vmatpush1.bf16.msra.mxu0 0
      %2247 = vmatprep.subr.bf16.mxu0 0
      %2248 = vmatpush1.bf16.msra.mxu0 0
      %2249 = vmatprep.mubr.bf16.mxu0 0
      %2250 = vmatmul.mubr.bf16.gmra.mrb[0].mxu0 %v2206
      %v2251 = vpop.f32.mrb[0].mxu0
      %v2252 = vadd.f32 0.0, %v2251
      %v2253 = vpop.f32.mrb[0].mxu0
      %v2254 = vadd.f32 0.0, %v2253
      %v2255 = vpop.f32.mrb[0].mxu0
      %v2256 = vpop.f32.mrb[0].mxu0
      %2257 = vdwg.mxu0
      %2258 = vmatprep.subr.bf16.mxu0 0
      %2259 = vmatpush1.bf16.msra.mxu0 %v2215
      %2260 = vmatprep.subr.bf16.mxu0 0
      %2261 = vmatpush1.bf16.msra.mxu0 0
      %2262 = vmatprep.subr.bf16.mxu0 0
      %2263 = vmatpush1.bf16.msra.mxu0 0
      %2264 = vmatprep.subr.bf16.mxu0 0
      %2265 = vmatpush1.bf16.msra.mxu0 0
      %2266 = vmatprep.subr.bf16.mxu0 0
      %2267 = vmatpush1.bf16.msra.mxu0 0
      %2268 = vmatprep.subr.bf16.mxu0 0
      %2269 = vmatpush1.bf16.msra.mxu0 0
      %2270 = vmatprep.subr.bf16.mxu0 0
      %2271 = vmatpush1.bf16.msra.mxu0 0
      %2272 = vmatprep.subr.bf16.mxu0 0
      %2273 = vmatpush1.bf16.msra.mxu0 0
      %2274 = vmatprep.subr.bf16.mxu0 0
      %2275 = vmatpush1.bf16.msra.mxu0 0
      %2276 = vmatprep.subr.bf16.mxu0 0
      %2277 = vmatpush1.bf16.msra.mxu0 0
      %2278 = vmatprep.subr.bf16.mxu0 0
      %2279 = vmatpush1.bf16.msra.mxu0 0
      %2280 = vmatprep.subr.bf16.mxu0 0
      %2281 = vmatpush1.bf16.msra.mxu0 0
      %2282 = vmatprep.subr.bf16.mxu0 0
      %2283 = vmatpush1.bf16.msra.mxu0 0
      %2284 = vmatprep.subr.bf16.mxu0 0
      %2285 = vmatpush1.bf16.msra.mxu0 0
      %2286 = vmatprep.subr.bf16.mxu0 0
      %2287 = vmatpush1.bf16.msra.mxu0 0
      %2288 = vmatprep.subr.bf16.mxu0 0
      %2289 = vmatpush1.bf16.msra.mxu0 0
      %2290 = vmatprep.mubr.bf16.mxu0 0
      %2291 = vmatmul.mubr.bf16.gmra.mrb[0].mxu0 %v2206
      %v2292 = vpop.f32.mrb[0].mxu0
      %v2293 = vadd.f32 0.0, %v2292
      %v2294 = vpop.f32.mrb[0].mxu0
      %v2295 = vpop.f32.mrb[0].mxu0
      %v2296 = vpop.f32.mrb[0].mxu0
      %2297 = vdwg.mxu0
      %v2298 = vadd.f32 %v2187, %v2252
      %v2299 = vadd.f32 %v2188, %v2254
      %v2300 = vadd.f32 %v2189, %v2293
      %2301 = vrot.lane.b32.xlu0 %v1539, 110
      %v2302 = vpop.permute.xlu0 %2301
      %2303 = vrot.lane.b32.xlu0 %v1540, 110
      %v2304 = vpop.permute.xlu0 %2303
      %2305 = vrot.lane.b32.xlu0 %v1541, 110
      %v2306 = vpop.permute.xlu0 %2305
      %v2307 = vsel %vm851, %v2304, %v2306
      %v2308 = vsel %vm851, %v2302, %v2304
      %v2309 = vsel %vm851, %v2306, %v2302
      %s2310 = scalar_lea.vmem %s3, 28
      %v2311 = vld [vmem:[%s2310] sm:$0xf]
      %v2312 = vpack.c.bf16 %v2308, %v2308
      %v2313 = vpack.c.bf16 %v2307, %v2307
      %v2314 = vpack.c.bf16 %v2309, %v2309
      %v2316 = vsel %vm546, %v2311, 0
      %v2319 = vsel %vm550, %v2312, 0
      %v2322 = vsel %vm550, %v2313, 0
      %v2325 = vsel %vm550, %v2314, 0
      %2327 = vmatprep.subr.bf16.mxu0 %v2322
      %2328 = vmatpush1.bf16.msra.mxu0 %v2319
      %2329 = vmatprep.subr.bf16.mxu0 0
      %2330 = vmatpush1.bf16.msra.mxu0 0
      %2331 = vmatprep.subr.bf16.mxu0 0
      %2332 = vmatpush1.bf16.msra.mxu0 0
      %2333 = vmatprep.subr.bf16.mxu0 0
      %2334 = vmatpush1.bf16.msra.mxu0 0
      %2335 = vmatprep.subr.bf16.mxu0 0
      %2336 = vmatpush1.bf16.msra.mxu0 0
      %2337 = vmatprep.subr.bf16.mxu0 0
      %2338 = vmatpush1.bf16.msra.mxu0 0
      %2339 = vmatprep.subr.bf16.mxu0 0
      %2340 = vmatpush1.bf16.msra.mxu0 0
      %2341 = vmatprep.subr.bf16.mxu0 0
      %2342 = vmatpush1.bf16.msra.mxu0 0
      %2343 = vmatprep.subr.bf16.mxu0 0
      %2344 = vmatpush1.bf16.msra.mxu0 0
      %2345 = vmatprep.subr.bf16.mxu0 0
      %2346 = vmatpush1.bf16.msra.mxu0 0
      %2347 = vmatprep.subr.bf16.mxu0 0
      %2348 = vmatpush1.bf16.msra.mxu0 0
      %2349 = vmatprep.subr.bf16.mxu0 0
      %2350 = vmatpush1.bf16.msra.mxu0 0
      %2351 = vmatprep.subr.bf16.mxu0 0
      %2352 = vmatpush1.bf16.msra.mxu0 0
      %2353 = vmatprep.subr.bf16.mxu0 0
      %2354 = vmatpush1.bf16.msra.mxu0 0
      %2355 = vmatprep.subr.bf16.mxu0 0
      %2356 = vmatpush1.bf16.msra.mxu0 0
      %2357 = vmatprep.subr.bf16.mxu0 0
      %2358 = vmatpush1.bf16.msra.mxu0 0
      %2359 = vmatprep.mubr.bf16.mxu0 0
      %2360 = vmatmul.mubr.bf16.gmra.mrb[0].mxu0 %v2316
      %v2361 = vpop.f32.mrb[0].mxu0
      %v2362 = vadd.f32 0.0, %v2361
      %v2363 = vpop.f32.mrb[0].mxu0
      %v2364 = vadd.f32 0.0, %v2363
      %v2365 = vpop.f32.mrb[0].mxu0
      %v2366 = vpop.f32.mrb[0].mxu0
      %2367 = vdwg.mxu0
      %2368 = vmatprep.subr.bf16.mxu0 0
      %2369 = vmatpush1.bf16.msra.mxu0 %v2325
      %2370 = vmatprep.subr.bf16.mxu0 0
      %2371 = vmatpush1.bf16.msra.mxu0 0
      %2372 = vmatprep.subr.bf16.mxu0 0
      %2373 = vmatpush1.bf16.msra.mxu0 0
      %2374 = vmatprep.subr.bf16.mxu0 0
      %2375 = vmatpush1.bf16.msra.mxu0 0
      %2376 = vmatprep.subr.bf16.mxu0 0
      %2377 = vmatpush1.bf16.msra.mxu0 0
      %2378 = vmatprep.subr.bf16.mxu0 0
      %2379 = vmatpush1.bf16.msra.mxu0 0
      %2380 = vmatprep.subr.bf16.mxu0 0
      %2381 = vmatpush1.bf16.msra.mxu0 0
      %2382 = vmatprep.subr.bf16.mxu0 0
      %2383 = vmatpush1.bf16.msra.mxu0 0
      %2384 = vmatprep.subr.bf16.mxu0 0
      %2385 = vmatpush1.bf16.msra.mxu0 0
      %2386 = vmatprep.subr.bf16.mxu0 0
      %2387 = vmatpush1.bf16.msra.mxu0 0
      %2388 = vmatprep.subr.bf16.mxu0 0
      %2389 = vmatpush1.bf16.msra.mxu0 0
      %2390 = vmatprep.subr.bf16.mxu0 0
      %2391 = vmatpush1.bf16.msra.mxu0 0
      %2392 = vmatprep.subr.bf16.mxu0 0
      %2393 = vmatpush1.bf16.msra.mxu0 0
      %2394 = vmatprep.subr.bf16.mxu0 0
      %2395 = vmatpush1.bf16.msra.mxu0 0
      %2396 = vmatprep.subr.bf16.mxu0 0
      %2397 = vmatpush1.bf16.msra.mxu0 0
      %2398 = vmatprep.subr.bf16.mxu0 0
      %2399 = vmatpush1.bf16.msra.mxu0 0
      %2400 = vmatprep.mubr.bf16.mxu0 0
      %2401 = vmatmul.mubr.bf16.gmra.mrb[0].mxu0 %v2316
      %v2402 = vpop.f32.mrb[0].mxu0
      %v2403 = vadd.f32 0.0, %v2402
      %v2404 = vpop.f32.mrb[0].mxu0
      %v2405 = vpop.f32.mrb[0].mxu0
      %v2406 = vpop.f32.mrb[0].mxu0
      %2407 = vdwg.mxu0
      %v2408 = vadd.f32 %v2298, %v2362
      %v2409 = vadd.f32 %v2299, %v2364
      %v2410 = vadd.f32 %v2300, %v2403
      %2411 = vrot.lane.b32.xlu0 %v1539, 109
      %v2412 = vpop.permute.xlu0 %2411
      %2413 = vrot.lane.b32.xlu0 %v1540, 109
      %v2414 = vpop.permute.xlu0 %2413
      %2415 = vrot.lane.b32.xlu0 %v1541, 109
      %v2416 = vpop.permute.xlu0 %2415
      %v2417 = vsel %vm962, %v2414, %v2416
      %v2418 = vsel %vm962, %v2412, %v2414
      %v2419 = vsel %vm962, %v2416, %v2412
      %s2420 = scalar_lea.vmem %s3, 32
      %v2421 = vld [vmem:[%s2420] sm:$0xf]
      %v2422 = vpack.c.bf16 %v2418, %v2418
      %v2423 = vpack.c.bf16 %v2417, %v2417
      %v2424 = vpack.c.bf16 %v2419, %v2419
      %v2426 = vsel %vm546, %v2421, 0
      %v2429 = vsel %vm550, %v2422, 0
      %v2432 = vsel %vm550, %v2423, 0
      %v2435 = vsel %vm550, %v2424, 0
      %2437 = vmatprep.subr.bf16.mxu0 %v2432
      %2438 = vmatpush1.bf16.msra.mxu0 %v2429
      %2439 = vmatprep.subr.bf16.mxu0 0
      %2440 = vmatpush1.bf16.msra.mxu0 0
      %2441 = vmatprep.subr.bf16.mxu0 0
      %2442 = vmatpush1.bf16.msra.mxu0 0
      %2443 = vmatprep.subr.bf16.mxu0 0
      %2444 = vmatpush1.bf16.msra.mxu0 0
      %2445 = vmatprep.subr.bf16.mxu0 0
      %2446 = vmatpush1.bf16.msra.mxu0 0
      %2447 = vmatprep.subr.bf16.mxu0 0
      %2448 = vmatpush1.bf16.msra.mxu0 0
      %2449 = vmatprep.subr.bf16.mxu0 0
      %2450 = vmatpush1.bf16.msra.mxu0 0
      %2451 = vmatprep.subr.bf16.mxu0 0
      %2452 = vmatpush1.bf16.msra.mxu0 0
      %2453 = vmatprep.subr.bf16.mxu0 0
      %2454 = vmatpush1.bf16.msra.mxu0 0
      %2455 = vmatprep.subr.bf16.mxu0 0
      %2456 = vmatpush1.bf16.msra.mxu0 0
      %2457 = vmatprep.subr.bf16.mxu0 0
      %2458 = vmatpush1.bf16.msra.mxu0 0
      %2459 = vmatprep.subr.bf16.mxu0 0
      %2460 = vmatpush1.bf16.msra.mxu0 0
      %2461 = vmatprep.subr.bf16.mxu0 0
      %2462 = vmatpush1.bf16.msra.mxu0 0
      %2463 = vmatprep.subr.bf16.mxu0 0
      %2464 = vmatpush1.bf16.msra.mxu0 0
      %2465 = vmatprep.subr.bf16.mxu0 0
      %2466 = vmatpush1.bf16.msra.mxu0 0
      %2467 = vmatprep.subr.bf16.mxu0 0
      %2468 = vmatpush1.bf16.msra.mxu0 0
      %2469 = vmatprep.mubr.bf16.mxu0 0
      %2470 = vmatmul.mubr.bf16.gmra.mrb[0].mxu0 %v2426
      %v2471 = vpop.f32.mrb[0].mxu0
      %v2472 = vadd.f32 0.0, %v2471
      %v2473 = vpop.f32.mrb[0].mxu0
      %v2474 = vadd.f32 0.0, %v2473
      %v2475 = vpop.f32.mrb[0].mxu0
      %v2476 = vpop.f32.mrb[0].mxu0
      %2477 = vdwg.mxu0
      %2478 = vmatprep.subr.bf16.mxu0 0
      %2479 = vmatpush1.bf16.msra.mxu0 %v2435
      %2480 = vmatprep.subr.bf16.mxu0 0
      %2481 = vmatpush1.bf16.msra.mxu0 0
      %2482 = vmatprep.subr.bf16.mxu0 0
      %2483 = vmatpush1.bf16.msra.mxu0 0
      %2484 = vmatprep.subr.bf16.mxu0 0
      %2485 = vmatpush1.bf16.msra.mxu0 0
      %2486 = vmatprep.subr.bf16.mxu0 0
      %2487 = vmatpush1.bf16.msra.mxu0 0
      %2488 = vmatprep.subr.bf16.mxu0 0
      %2489 = vmatpush1.bf16.msra.mxu0 0
      %2490 = vmatprep.subr.bf16.mxu0 0
      %2491 = vmatpush1.bf16.msra.mxu0 0
      %2492 = vmatprep.subr.bf16.mxu0 0
      %2493 = vmatpush1.bf16.msra.mxu0 0
      %2494 = vmatprep.subr.bf16.mxu0 0
      %2495 = vmatpush1.bf16.msra.mxu0 0
      %2496 = vmatprep.subr.bf16.mxu0 0
      %2497 = vmatpush1.bf16.msra.mxu0 0
      %2498 = vmatprep.subr.bf16.mxu0 0
      %2499 = vmatpush1.bf16.msra.mxu0 0
      %2500 = vmatprep.subr.bf16.mxu0 0
      %2501 = vmatpush1.bf16.msra.mxu0 0
      %2502 = vmatprep.subr.bf16.mxu0 0
      %2503 = vmatpush1.bf16.msra.mxu0 0
      %2504 = vmatprep.subr.bf16.mxu0 0
      %2505 = vmatpush1.bf16.msra.mxu0 0
      %2506 = vmatprep.subr.bf16.mxu0 0
      %2507 = vmatpush1.bf16.msra.mxu0 0
      %2508 = vmatprep.subr.bf16.mxu0 0
      %2509 = vmatpush1.bf16.msra.mxu0 0
      %2510 = vmatprep.mubr.bf16.mxu0 0
      %2511 = vmatmul.mubr.bf16.gmra.mrb[0].mxu0 %v2426
      %v2512 = vpop.f32.mrb[0].mxu0
      %v2513 = vadd.f32 0.0, %v2512
      %v2514 = vpop.f32.mrb[0].mxu0
      %v2515 = vpop.f32.mrb[0].mxu0
      %v2516 = vpop.f32.mrb[0].mxu0
      %2517 = vdwg.mxu0
      %v2518 = vadd.f32 %v2408, %v2472
      %v2519 = vadd.f32 %v2409, %v2474
      %v2520 = vadd.f32 %v2410, %v2513
      %v2521 = vld [vmem:[%s4] sm:$0xff]
      %2523 = vset.pattern.permute.xlu0 0
      %2524 = vperm.xlu0 %2523, %v2521
      %v2525 = vpop.permute.xlu0 %2524
      %v2527 = vadd.f32 %v2518, %v2525
      %v2528 = vadd.f32 %v2519, %v2525
      %v2529 = vadd.f32 %v2520, %v2525
      %v2530 = vmax.f32 %v2527, 0.0
      %v2531 = vmax.f32 %v2528, 0.0
      %v2532 = vmax.f32 %v2529, 0.0
      %2533 = vst [vmem:[%s509] sm:$0xff] %v2530
      %2534 = vst [vmem:[%s509 + $0x8] sm:$0xff] %v2531
      %2535 = vst [vmem:[%s509 + $0x10] sm:$0xff] %v2532
      %2536 = vrot.lane.b32.xlu0 %v2530, 127
      %v2537 = vpop.permute.xlu0 %2536
      %2538 = vrot.lane.b32.xlu0 %v2531, 127
      %v2539 = vpop.permute.xlu0 %2538
      %2540 = vrot.lane.b32.xlu0 %v2532, 127
      %v2541 = vpop.permute.xlu0 %2540
      %v2542 = vsel %vm537, %v2539, %v2541
      %v2543 = vsel %vm537, %v2537, %v2539
      %v2544 = vsel %vm537, %v2541, %v2537
      %v2545 = vmax.f32 %v2530, %v2543
      %v2546 = vmax.f32 %v2531, %v2542
      %v2547 = vmax.f32 %v2532, %v2544
      %2548 = vrot.lane.b32.xlu0 %v2545, 110
      %v2549 = vpop.permute.xlu0 %2548
      %2550 = vrot.lane.b32.xlu0 %v2546, 110
      %v2551 = vpop.permute.xlu0 %2550
      %2552 = vrot.lane.b32.xlu0 %v2547, 110
      %v2553 = vpop.permute.xlu0 %2552
      %v2554 = vsel %vm851, %v2551, %v2553
      %v2555 = vsel %vm851, %v2549, %v2551
      %v2556 = vsel %vm851, %v2553, %v2549
      %v2557 = vmax.f32 %v2545, %v2555
      %v2558 = vmax.f32 %v2546, %v2554
      %v2559 = vmax.f32 %v2547, %v2556
      %v2560 = vpack.c.bf16 %v2557, %v2557
      %v2561 = vpack.c.bf16 %v2558, %v2558
      %v2562 = vpack.c.bf16 %v2559, %v2559
      %v2563 = vld [vmem:[%s6] sm:$0xf]
      %v2564 = vld [vmem:[%s6 + $0x4] sm:$0xf]
      %v2565 = vld [vmem:[%s6 + $0x8] sm:$0xf]
      %v2566 = vld [vmem:[%s6 + $0xc] sm:$0xf]
      %v2567 = vld [vmem:[%s6 + $0x10] sm:$0xf]
      %v2568 = vld [vmem:[%s6 + $0x14] sm:$0xf]
      %v2569 = vld [vmem:[%s6 + $0x18] sm:$0xf]
      %v2570 = vld [vmem:[%s6 + $0x1c] sm:$0xf]
      %v2571 = vld [vmem:[%s6 + $0x20] sm:$0xf]
      %v2572 = vld [vmem:[%s6 + $0x24] sm:$0xf]
      %v2573 = vld [vmem:[%s6 + $0x28] sm:$0xf]
      %v2574 = vld [vmem:[%s6 + $0x2c] sm:$0xf]
      %v2575 = vld [vmem:[%s6 + $0x30] sm:$0xf]
      %v2576 = vld [vmem:[%s6 + $0x34] sm:$0xf]
      %v2577 = vld [vmem:[%s6 + $0x38] sm:$0xf]
      %v2578 = vld [vmem:[%s6 + $0x3c] sm:$0xf]
      %v2579 = vld [vmem:[%s6 + $0x40] sm:$0xf]
      %v2580 = vld [vmem:[%s6 + $0x44] sm:$0xf]
      %v2581 = vld [vmem:[%s6 + $0x48] sm:$0xf]
      %v2582 = vld [vmem:[%s6 + $0x4c] sm:$0xf]
      %v2583 = vld [vmem:[%s6 + $0x50] sm:$0xf]
      %v2584 = vld [vmem:[%s6 + $0x54] sm:$0xf]
      %v2585 = vld [vmem:[%s6 + $0x58] sm:$0xf]
      %v2586 = vld [vmem:[%s6 + $0x5c] sm:$0xf]
      %v2587 = vld [vmem:[%s6 + $0x60] sm:$0xf]
      %v2588 = vld [vmem:[%s6 + $0x64] sm:$0xf]
      %v2589 = vld [vmem:[%s6 + $0x68] sm:$0xf]
      %v2590 = vld [vmem:[%s6 + $0x6c] sm:$0xf]
      %v2591 = vld [vmem:[%s6 + $0x70] sm:$0xf]
      %v2592 = vld [vmem:[%s6 + $0x74] sm:$0xf]
      %v2593 = vld [vmem:[%s6 + $0x78] sm:$0xf]
      %v2594 = vld [vmem:[%s6 + $0x7c] sm:$0xf]
      %v2595 = vld [vmem:[%s6 + $0x80] sm:$0xf]
      %v2596 = vld [vmem:[%s6 + $0x84] sm:$0xf]
      %v2597 = vld [vmem:[%s6 + $0x88] sm:$0xf]
      %v2598 = vld [vmem:[%s6 + $0x8c] sm:$0xf]
      %v2599 = vld [vmem:[%s6 + $0x90] sm:$0xf]
      %v2600 = vld [vmem:[%s6 + $0x94] sm:$0xf]
      %v2601 = vld [vmem:[%s6 + $0x98] sm:$0xf]
      %v2602 = vld [vmem:[%s6 + $0x9c] sm:$0xf]
      %v2603 = vld [vmem:[%s6 + $0xa0] sm:$0xf]
      %v2604 = vld [vmem:[%s6 + $0xa4] sm:$0xf]
      %v2605 = vld [vmem:[%s6 + $0xa8] sm:$0xf]
      %v2606 = vld [vmem:[%s6 + $0xac] sm:$0xf]
      %v2607 = vld [vmem:[%s6 + $0xb0] sm:$0xf]
      %v2608 = vld [vmem:[%s6 + $0xb4] sm:$0xf]
      %v2609 = vld [vmem:[%s6 + $0xb8] sm:$0xf]
      %v2610 = vld [vmem:[%s6 + $0xbc] sm:$0xf]
      %v2659 = vunpack.c.l.b16 %v2563
      %v2660 = vunpack.c.l.b16 %v2564
      %v2661 = vunpack.c.l.b16 %v2565
      %v2662 = vunpack.c.l.b16 %v2566
      %v2663 = vunpack.c.l.b16 %v2567
      %v2664 = vunpack.c.l.b16 %v2568
      %v2665 = vunpack.c.l.b16 %v2569
      %v2666 = vunpack.c.l.b16 %v2570
      %v2667 = vunpack.c.l.b16 %v2571
      %v2668 = vunpack.c.l.b16 %v2572
      %v2669 = vunpack.c.l.b16 %v2573
      %v2670 = vunpack.c.l.b16 %v2574
      %v2671 = vunpack.c.l.b16 %v2575
      %v2672 = vunpack.c.l.b16 %v2576
      %v2673 = vunpack.c.l.b16 %v2577
      %v2674 = vunpack.c.l.b16 %v2578
      %v2675 = vunpack.c.l.b16 %v2579
      %v2676 = vunpack.c.l.b16 %v2580
      %v2677 = vunpack.c.l.b16 %v2581
      %v2678 = vunpack.c.l.b16 %v2582
      %v2679 = vunpack.c.l.b16 %v2583
      %v2680 = vunpack.c.l.b16 %v2584
      %v2681 = vunpack.c.l.b16 %v2585
      %v2682 = vunpack.c.l.b16 %v2586
      %v2683 = vunpack.c.l.b16 %v2587
      %v2684 = vunpack.c.l.b16 %v2588
      %v2685 = vunpack.c.l.b16 %v2589
      %v2686 = vunpack.c.l.b16 %v2590
      %v2687 = vunpack.c.l.b16 %v2591
      %v2688 = vunpack.c.l.b16 %v2592
      %v2689 = vunpack.c.l.b16 %v2593
      %v2690 = vunpack.c.l.b16 %v2594
      %v2691 = vunpack.c.l.b16 %v2595
      %v2692 = vunpack.c.l.b16 %v2596
      %v2693 = vunpack.c.l.b16 %v2597
      %v2694 = vunpack.c.l.b16 %v2598
      %v2695 = vunpack.c.l.b16 %v2599
      %v2696 = vunpack.c.l.b16 %v2600
      %v2697 = vunpack.c.l.b16 %v2601
      %v2698 = vunpack.c.l.b16 %v2602
      %v2699 = vunpack.c.l.b16 %v2603
      %v2700 = vunpack.c.l.b16 %v2604
      %v2701 = vunpack.c.l.b16 %v2605
      %v2702 = vunpack.c.l.b16 %v2606
      %v2703 = vunpack.c.l.b16 %v2607
      %v2704 = vunpack.c.l.b16 %v2608
      %v2705 = vunpack.c.l.b16 %v2609
      %v2706 = vunpack.c.l.b16 %v2610
      %v2707 = vpack.c.b16 %v2660, %v2659
      %v2708 = vpack.c.b16 %v2662, %v2661
      %v2709 = vpack.c.b16 %v2664, %v2663
      %v2710 = vpack.c.b16 %v2666, %v2665
      %v2711 = vpack.c.b16 %v2668, %v2667
      %v2712 = vpack.c.b16 %v2670, %v2669
      %v2713 = vpack.c.b16 %v2672, %v2671
      %v2714 = vpack.c.b16 %v2674, %v2673
      %v2715 = vpack.c.b16 %v2676, %v2675
      %v2716 = vpack.c.b16 %v2678, %v2677
      %v2717 = vpack.c.b16 %v2680, %v2679
      %v2718 = vpack.c.b16 %v2682, %v2681
      %v2719 = vpack.c.b16 %v2684, %v2683
      %v2720 = vpack.c.b16 %v2686, %v2685
      %v2721 = vpack.c.b16 %v2688, %v2687
      %v2722 = vpack.c.b16 %v2690, %v2689
      %v2723 = vpack.c.b16 %v2692, %v2691
      %v2724 = vpack.c.b16 %v2694, %v2693
      %v2725 = vpack.c.b16 %v2696, %v2695
      %v2726 = vpack.c.b16 %v2698, %v2697
      %v2727 = vpack.c.b16 %v2700, %v2699
      %v2728 = vpack.c.b16 %v2702, %v2701
      %v2729 = vpack.c.b16 %v2704, %v2703
      %v2730 = vpack.c.b16 %v2706, %v2705
      %2755 = vmatprep.subr.bf16.mxu0 0
      %2756 = vmatpush1.bf16.msra.mxu0 %v2707
      %2757 = vmatprep.subr.bf16.mxu0 0
      %2758 = vmatpush1.bf16.msra.mxu0 %v2708
      %2759 = vmatprep.subr.bf16.mxu0 0
      %2760 = vmatpush1.bf16.msra.mxu0 %v2709
      %2761 = vmatprep.subr.bf16.mxu0 0
      %2762 = vmatpush1.bf16.msra.mxu0 %v2710
      %2763 = vmatprep.subr.bf16.mxu0 0
      %2764 = vmatpush1.bf16.msra.mxu0 %v2711
      %2765 = vmatprep.subr.bf16.mxu0 0
      %2766 = vmatpush1.bf16.msra.mxu0 %v2712
      %2767 = vmatprep.subr.bf16.mxu0 0
      %2768 = vmatpush1.bf16.msra.mxu0 %v2713
      %2769 = vmatprep.subr.bf16.mxu0 0
      %2770 = vmatpush1.bf16.msra.mxu0 %v2714
      %2771 = vmatprep.subr.bf16.mxu0 0
      %2772 = vmatpush1.bf16.msra.mxu0 %v2715
      %2773 = vmatprep.subr.bf16.mxu0 0
      %2774 = vmatpush1.bf16.msra.mxu0 %v2716
      %2775 = vmatprep.subr.bf16.mxu0 0
      %2776 = vmatpush1.bf16.msra.mxu0 %v2717
      %2777 = vmatprep.subr.bf16.mxu0 0
      %2778 = vmatpush1.bf16.msra.mxu0 %v2718
      %2779 = vmatprep.subr.bf16.mxu0 0
      %2780 = vmatpush1.bf16.msra.mxu0 %v2719
      %2781 = vmatprep.subr.bf16.mxu0 0
      %2782 = vmatpush1.bf16.msra.mxu0 %v2720
      %2783 = vmatprep.subr.bf16.mxu0 0
      %2784 = vmatpush1.bf16.msra.mxu0 %v2721
      %2785 = vmatprep.subr.bf16.mxu0 0
      %2786 = vmatpush1.bf16.msra.mxu0 %v2722
      %2787 = vmatprep.mubr.bf16.mxu0 %v2561
      %2788 = vmatmul.mubr.bf16.gmra.mrb[0].mxu0 %v2560
      %v2789 = vpop.f32.mrb[0].mxu0
      %v2790 = vadd.f32 0.0, %v2789
      %v2791 = vpop.f32.mrb[0].mxu0
      %v2792 = vpop.f32.mrb[0].mxu0
      %v2793 = vpop.f32.mrb[0].mxu0
      %2794 = vdwg.mxu0
      %2795 = vmatprep.subr.bf16.mxu0 0
      %2796 = vmatpush1.bf16.msra.mxu0 %v2723
      %2797 = vmatprep.subr.bf16.mxu0 0
      %2798 = vmatpush1.bf16.msra.mxu0 %v2724
      %2799 = vmatprep.subr.bf16.mxu0 0
      %2800 = vmatpush1.bf16.msra.mxu0 %v2725
      %2801 = vmatprep.subr.bf16.mxu0 0
      %2802 = vmatpush1.bf16.msra.mxu0 %v2726
      %2803 = vmatprep.subr.bf16.mxu0 0
      %2804 = vmatpush1.bf16.msra.mxu0 %v2727
      %2805 = vmatprep.subr.bf16.mxu0 0
      %2806 = vmatpush1.bf16.msra.mxu0 %v2728
      %2807 = vmatprep.subr.bf16.mxu0 0
      %2808 = vmatpush1.bf16.msra.mxu0 %v2729
      %2809 = vmatprep.subr.bf16.mxu0 0
      %2810 = vmatpush1.bf16.msra.mxu0 %v2730
      %2811 = vmatprep.subr.bf16.mxu0 0
      %2812 = vmatpush1.bf16.msra.mxu0 0
      %2813 = vmatprep.subr.bf16.mxu0 0
      %2814 = vmatpush1.bf16.msra.mxu0 0
      %2815 = vmatprep.subr.bf16.mxu0 0
      %2816 = vmatpush1.bf16.msra.mxu0 0
      %2817 = vmatprep.subr.bf16.mxu0 0
      %2818 = vmatpush1.bf16.msra.mxu0 0
      %2819 = vmatprep.subr.bf16.mxu0 0
      %2820 = vmatpush1.bf16.msra.mxu0 0
      %2821 = vmatprep.subr.bf16.mxu0 0
      %2822 = vmatpush1.bf16.msra.mxu0 0
      %2823 = vmatprep.subr.bf16.mxu0 0
      %2824 = vmatpush1.bf16.msra.mxu0 0
      %2825 = vmatprep.subr.bf16.mxu0 0
      %2826 = vmatpush1.bf16.msra.mxu0 0
      %2827 = vmatprep.mubr.bf16.mxu0 0
      %2828 = vmatmul.mubr.bf16.gmra.mrb[0].mxu0 %v2562
      %v2829 = vpop.f32.mrb[0].mxu0
      %v2830 = vadd.f32 %v2790, %v2829
      %v2831 = vpop.f32.mrb[0].mxu0
      %v2832 = vpop.f32.mrb[0].mxu0
      %v2833 = vpop.f32.mrb[0].mxu0
      %2834 = vdwg.mxu0
      %v2835 = vld [vmem:[%s11] sm:$0x1]
      %v2836 = vld [vmem:[%s7] sm:$0xf]
      %v2837 = vld [vmem:[%s7 + $0x4] sm:$0xf]
      %v2838 = vpack.c.bf16 %v2830, %v2830
      %2839 = vrot.lane.b32.xlu0 %v2830, 127
      %v2840 = vpop.permute.xlu0 %2839
      %s2841 = scalar_lea.vmem %s7, 8
      %v2842 = vld [vmem:[%s2841] sm:$0xf]
      %v2843 = vld [vmem:[%s2841 + $0x4] sm:$0xf]
      %v2844 = vpack.c.bf16 %v2840, %v2840
      %v2847 = vunpack.c.l.b16 %v2842
      %v2848 = vunpack.c.l.b16 %v2843
      %v2849 = vpack.c.b16 %v2848, %v2847
      %v2851 = vsel %vm546, %v2849, 0
      %v2854 = vsel %vm550, %v2844, 0
      %2856 = vmatprep.subr.bf16.mxu0 0
      %2857 = vmatpush1.bf16.msra.mxu0 %v2854
      %2858 = vmatprep.subr.bf16.mxu0 0
      %2859 = vmatpush1.bf16.msra.mxu0 0
      %2860 = vmatprep.subr.bf16.mxu0 0
      %2861 = vmatpush1.bf16.msra.mxu0 0
      %2862 = vmatprep.subr.bf16.mxu0 0
      %2863 = vmatpush1.bf16.msra.mxu0 0
      %2864 = vmatprep.subr.bf16.mxu0 0
      %2865 = vmatpush1.bf16.msra.mxu0 0
      %2866 = vmatprep.subr.bf16.mxu0 0
      %2867 = vmatpush1.bf16.msra.mxu0 0
      %2868 = vmatprep.subr.bf16.mxu0 0
      %2869 = vmatpush1.bf16.msra.mxu0 0
      %2870 = vmatprep.subr.bf16.mxu0 0
      %2871 = vmatpush1.bf16.msra.mxu0 0
      %2872 = vmatprep.subr.bf16.mxu0 0
      %2873 = vmatpush1.bf16.msra.mxu0 0
      %2874 = vmatprep.subr.bf16.mxu0 0
      %2875 = vmatpush1.bf16.msra.mxu0 0
      %2876 = vmatprep.subr.bf16.mxu0 0
      %2877 = vmatpush1.bf16.msra.mxu0 0
      %2878 = vmatprep.subr.bf16.mxu0 0
      %2879 = vmatpush1.bf16.msra.mxu0 0
      %2880 = vmatprep.subr.bf16.mxu0 0
      %2881 = vmatpush1.bf16.msra.mxu0 0
      %2882 = vmatprep.subr.bf16.mxu0 0
      %2883 = vmatpush1.bf16.msra.mxu0 0
      %2884 = vmatprep.subr.bf16.mxu0 0
      %2885 = vmatpush1.bf16.msra.mxu0 0
      %2886 = vmatprep.subr.bf16.mxu0 0
      %2887 = vmatpush1.bf16.msra.mxu0 0
      %2888 = vmatprep.mubr.bf16.mxu0 0
      %2889 = vmatmul.mubr.bf16.gmra.mrb[0].mxu0 %v2851
      %v2890 = vpop.f32.mrb[0].mxu0
      %v2891 = vadd.f32 0.0, %v2890
      %v2892 = vpop.f32.mrb[0].mxu0
      %v2893 = vpop.f32.mrb[0].mxu0
      %v2894 = vadd.f32 0.0, %v2893
      %v2895 = vpop.f32.mrb[0].mxu0
      %2896 = vdwg.mxu0
      %v2899 = vunpack.c.l.b16 %v2836
      %v2900 = vunpack.c.l.b16 %v2837
      %v2901 = vpack.c.b16 %v2900, %v2899
      %v2903 = vsel %vm546, %v2901, 0
      %v2906 = vsel %vm550, %v2838, 0
      %2908 = vmatprep.subr.bf16.mxu0 0
      %2909 = vmatpush1.bf16.msra.mxu0 %v2906
      %2910 = vmatprep.subr.bf16.mxu0 0
      %2911 = vmatpush1.bf16.msra.mxu0 0
      %2912 = vmatprep.subr.bf16.mxu0 0
      %2913 = vmatpush1.bf16.msra.mxu0 0
      %2914 = vmatprep.subr.bf16.mxu0 0
      %2915 = vmatpush1.bf16.msra.mxu0 0
      %2916 = vmatprep.subr.bf16.mxu0 0
      %2917 = vmatpush1.bf16.msra.mxu0 0
      %2918 = vmatprep.subr.bf16.mxu0 0
      %2919 = vmatpush1.bf16.msra.mxu0 0
      %2920 = vmatprep.subr.bf16.mxu0 0
      %2921 = vmatpush1.bf16.msra.mxu0 0
      %2922 = vmatprep.subr.bf16.mxu0 0
      %2923 = vmatpush1.bf16.msra.mxu0 0
      %2924 = vmatprep.subr.bf16.mxu0 0
      %2925 = vmatpush1.bf16.msra.mxu0 0
      %2926 = vmatprep.subr.bf16.mxu0 0
      %2927 = vmatpush1.bf16.msra.mxu0 0
      %2928 = vmatprep.subr.bf16.mxu0 0
      %2929 = vmatpush1.bf16.msra.mxu0 0
      %2930 = vmatprep.subr.bf16.mxu0 0
      %2931 = vmatpush1.bf16.msra.mxu0 0
      %2932 = vmatprep.subr.bf16.mxu0 0
      %2933 = vmatpush1.bf16.msra.mxu0 0
      %2934 = vmatprep.subr.bf16.mxu0 0
      %2935 = vmatpush1.bf16.msra.mxu0 0
      %2936 = vmatprep.subr.bf16.mxu0 0
      %2937 = vmatpush1.bf16.msra.mxu0 0
      %2938 = vmatprep.subr.bf16.mxu0 0
      %2939 = vmatpush1.bf16.msra.mxu0 0
      %2940 = vmatprep.mubr.bf16.mxu0 0
      %2941 = vmatmul.mubr.bf16.gmra.mrb[0].mxu0 %v2903
      %v2942 = vpop.f32.mrb[0].mxu0
      %v2943 = vadd.f32 %v2891, %v2942
      %v2944 = vpop.f32.mrb[0].mxu0
      %v2945 = vpop.f32.mrb[0].mxu0
      %v2946 = vadd.f32 %v2894, %v2945
      %v2947 = vpop.f32.mrb[0].mxu0
      %2948 = vdwg.mxu0
      %2949 = vrot.lane.b32.xlu0 %v2830, 126
      %v2950 = vpop.permute.xlu0 %2949
      %s2951 = scalar_lea.vmem %s7, 16
      %v2952 = vld [vmem:[%s2951] sm:$0xf]
      %v2953 = vld [vmem:[%s2951 + $0x4] sm:$0xf]
      %v2954 = vpack.c.bf16 %v2950, %v2950
      %v2957 = vunpack.c.l.b16 %v2952
      %v2958 = vunpack.c.l.b16 %v2953
      %v2959 = vpack.c.b16 %v2958, %v2957
      %v2961 = vsel %vm546, %v2959, 0
      %v2964 = vsel %vm550, %v2954, 0
      %2966 = vmatprep.subr.bf16.mxu0 0
      %2967 = vmatpush1.bf16.msra.mxu0 %v2964
      %2968 = vmatprep.subr.bf16.mxu0 0
      %2969 = vmatpush1.bf16.msra.mxu0 0
      %2970 = vmatprep.subr.bf16.mxu0 0
      %2971 = vmatpush1.bf16.msra.mxu0 0
      %2972 = vmatprep.subr.bf16.mxu0 0
      %2973 = vmatpush1.bf16.msra.mxu0 0
      %2974 = vmatprep.subr.bf16.mxu0 0
      %2975 = vmatpush1.bf16.msra.mxu0 0
      %2976 = vmatprep.subr.bf16.mxu0 0
      %2977 = vmatpush1.bf16.msra.mxu0 0
      %2978 = vmatprep.subr.bf16.mxu0 0
      %2979 = vmatpush1.bf16.msra.mxu0 0
      %2980 = vmatprep.subr.bf16.mxu0 0
      %2981 = vmatpush1.bf16.msra.mxu0 0
      %2982 = vmatprep.subr.bf16.mxu0 0
      %2983 = vmatpush1.bf16.msra.mxu0 0
      %2984 = vmatprep.subr.bf16.mxu0 0
      %2985 = vmatpush1.bf16.msra.mxu0 0
      %2986 = vmatprep.subr.bf16.mxu0 0
      %2987 = vmatpush1.bf16.msra.mxu0 0
      %2988 = vmatprep.subr.bf16.mxu0 0
      %2989 = vmatpush1.bf16.msra.mxu0 0
      %2990 = vmatprep.subr.bf16.mxu0 0
      %2991 = vmatpush1.bf16.msra.mxu0 0
      %2992 = vmatprep.subr.bf16.mxu0 0
      %2993 = vmatpush1.bf16.msra.mxu0 0
      %2994 = vmatprep.subr.bf16.mxu0 0
      %2995 = vmatpush1.bf16.msra.mxu0 0
      %2996 = vmatprep.subr.bf16.mxu0 0
      %2997 = vmatpush1.bf16.msra.mxu0 0
      %2998 = vmatprep.mubr.bf16.mxu0 0
      %2999 = vmatmul.mubr.bf16.gmra.mrb[0].mxu0 %v2961
      %v3000 = vpop.f32.mrb[0].mxu0
      %v3001 = vadd.f32 0.0, %v3000
      %v3002 = vpop.f32.mrb[0].mxu0
      %v3003 = vpop.f32.mrb[0].mxu0
      %v3004 = vadd.f32 0.0, %v3003
      %v3005 = vpop.f32.mrb[0].mxu0
      %3006 = vdwg.mxu0
      %v3007 = vadd.f32 %v2943, %v3001
      %v3008 = vadd.f32 %v2946, %v3004
      %3009 = vrot.lane.b32.xlu0 %v2830, 118
      %v3010 = vpop.permute.xlu0 %3009
      %s3011 = scalar_lea.vmem %s7, 24
      %v3012 = vld [vmem:[%s3011] sm:$0xf]
      %v3013 = vld [vmem:[%s3011 + $0x4] sm:$0xf]
      %v3014 = vpack.c.bf16 %v3010, %v3010
      %v3017 = vunpack.c.l.b16 %v3012
      %v3018 = vunpack.c.l.b16 %v3013
      %v3019 = vpack.c.b16 %v3018, %v3017
      %v3021 = vsel %vm546, %v3019, 0
      %v3024 = vsel %vm550, %v3014, 0
      %3026 = vmatprep.subr.bf16.mxu0 0
      %3027 = vmatpush1.bf16.msra.mxu0 %v3024
      %3028 = vmatprep.subr.bf16.mxu0 0
      %3029 = vmatpush1.bf16.msra.mxu0 0
      %3030 = vmatprep.subr.bf16.mxu0 0
      %3031 = vmatpush1.bf16.msra.mxu0 0
      %3032 = vmatprep.subr.bf16.mxu0 0
      %3033 = vmatpush1.bf16.msra.mxu0 0
      %3034 = vmatprep.subr.bf16.mxu0 0
      %3035 = vmatpush1.bf16.msra.mxu0 0
      %3036 = vmatprep.subr.bf16.mxu0 0
      %3037 = vmatpush1.bf16.msra.mxu0 0
      %3038 = vmatprep.subr.bf16.mxu0 0
      %3039 = vmatpush1.bf16.msra.mxu0 0
      %3040 = vmatprep.subr.bf16.mxu0 0
      %3041 = vmatpush1.bf16.msra.mxu0 0
      %3042 = vmatprep.subr.bf16.mxu0 0
      %3043 = vmatpush1.bf16.msra.mxu0 0
      %3044 = vmatprep.subr.bf16.mxu0 0
      %3045 = vmatpush1.bf16.msra.mxu0 0
      %3046 = vmatprep.subr.bf16.mxu0 0
      %3047 = vmatpush1.bf16.msra.mxu0 0
      %3048 = vmatprep.subr.bf16.mxu0 0
      %3049 = vmatpush1.bf16.msra.mxu0 0
      %3050 = vmatprep.subr.bf16.mxu0 0
      %3051 = vmatpush1.bf16.msra.mxu0 0
      %3052 = vmatprep.subr.bf16.mxu0 0
      %3053 = vmatpush1.bf16.msra.mxu0 0
      %3054 = vmatprep.subr.bf16.mxu0 0
      %3055 = vmatpush1.bf16.msra.mxu0 0
      %3056 = vmatprep.subr.bf16.mxu0 0
      %3057 = vmatpush1.bf16.msra.mxu0 0
      %3058 = vmatprep.mubr.bf16.mxu0 0
      %3059 = vmatmul.mubr.bf16.gmra.mrb[0].mxu0 %v3021
      %v3060 = vpop.f32.mrb[0].mxu0
      %v3061 = vadd.f32 0.0, %v3060
      %v3062 = vpop.f32.mrb[0].mxu0
      %v3063 = vpop.f32.mrb[0].mxu0
      %v3064 = vadd.f32 0.0, %v3063
      %v3065 = vpop.f32.mrb[0].mxu0
      %3066 = vdwg.mxu0
      %v3067 = vadd.f32 %v3007, %v3061
      %v3068 = vadd.f32 %v3008, %v3064
      %3069 = vrot.lane.b32.xlu0 %v2830, 117
      %v3070 = vpop.permute.xlu0 %3069
      %s3071 = scalar_lea.vmem %s7, 32
      %v3072 = vld [vmem:[%s3071] sm:$0xf]
      %v3073 = vld [vmem:[%s3071 + $0x4] sm:$0xf]
      %v3074 = vpack.c.bf16 %v3070, %v3070
      %v3077 = vunpack.c.l.b16 %v3072
      %v3078 = vunpack.c.l.b16 %v3073
      %v3079 = vpack.c.b16 %v3078, %v3077
      %v3081 = vsel %vm546, %v3079, 0
      %v3084 = vsel %vm550, %v3074, 0
      %3086 = vmatprep.subr.bf16.mxu0 0
      %3087 = vmatpush1.bf16.msra.mxu0 %v3084
      %3088 = vmatprep.subr.bf16.mxu0 0
      %3089 = vmatpush1.bf16.msra.mxu0 0
      %3090 = vmatprep.subr.bf16.mxu0 0
      %3091 = vmatpush1.bf16.msra.mxu0 0
      %3092 = vmatprep.subr.bf16.mxu0 0
      %3093 = vmatpush1.bf16.msra.mxu0 0
      %3094 = vmatprep.subr.bf16.mxu0 0
      %3095 = vmatpush1.bf16.msra.mxu0 0
      %3096 = vmatprep.subr.bf16.mxu0 0
      %3097 = vmatpush1.bf16.msra.mxu0 0
      %3098 = vmatprep.subr.bf16.mxu0 0
      %3099 = vmatpush1.bf16.msra.mxu0 0
      %3100 = vmatprep.subr.bf16.mxu0 0
      %3101 = vmatpush1.bf16.msra.mxu0 0
      %3102 = vmatprep.subr.bf16.mxu0 0
      %3103 = vmatpush1.bf16.msra.mxu0 0
      %3104 = vmatprep.subr.bf16.mxu0 0
      %3105 = vmatpush1.bf16.msra.mxu0 0
      %3106 = vmatprep.subr.bf16.mxu0 0
      %3107 = vmatpush1.bf16.msra.mxu0 0
      %3108 = vmatprep.subr.bf16.mxu0 0
      %3109 = vmatpush1.bf16.msra.mxu0 0
      %3110 = vmatprep.subr.bf16.mxu0 0
      %3111 = vmatpush1.bf16.msra.mxu0 0
      %3112 = vmatprep.subr.bf16.mxu0 0
      %3113 = vmatpush1.bf16.msra.mxu0 0
      %3114 = vmatprep.subr.bf16.mxu0 0
      %3115 = vmatpush1.bf16.msra.mxu0 0
      %3116 = vmatprep.subr.bf16.mxu0 0
      %3117 = vmatpush1.bf16.msra.mxu0 0
      %3118 = vmatprep.mubr.bf16.mxu0 0
      %3119 = vmatmul.mubr.bf16.gmra.mrb[0].mxu0 %v3081
      %v3120 = vpop.f32.mrb[0].mxu0
      %v3121 = vadd.f32 0.0, %v3120
      %v3122 = vpop.f32.mrb[0].mxu0
      %v3123 = vpop.f32.mrb[0].mxu0
      %v3124 = vadd.f32 0.0, %v3123
      %v3125 = vpop.f32.mrb[0].mxu0
      %3126 = vdwg.mxu0
      %v3127 = vadd.f32 %v3067, %v3121
      %v3128 = vadd.f32 %v3068, %v3124
      %3129 = vrot.lane.b32.xlu0 %v2830, 116
      %v3130 = vpop.permute.xlu0 %3129
      %s3131 = scalar_lea.vmem %s7, 40
      %v3132 = vld [vmem:[%s3131] sm:$0xf]
      %v3133 = vld [vmem:[%s3131 + $0x4] sm:$0xf]
      %v3134 = vpack.c.bf16 %v3130, %v3130
      %v3137 = vunpack.c.l.b16 %v3132
      %v3138 = vunpack.c.l.b16 %v3133
      %v3139 = vpack.c.b16 %v3138, %v3137
      %v3141 = vsel %vm546, %v3139, 0
      %v3144 = vsel %vm550, %v3134, 0
      %3146 = vmatprep.subr.bf16.mxu0 0
      %3147 = vmatpush1.bf16.msra.mxu0 %v3144
      %3148 = vmatprep.subr.bf16.mxu0 0
      %3149 = vmatpush1.bf16.msra.mxu0 0
      %3150 = vmatprep.subr.bf16.mxu0 0
      %3151 = vmatpush1.bf16.msra.mxu0 0
      %3152 = vmatprep.subr.bf16.mxu0 0
      %3153 = vmatpush1.bf16.msra.mxu0 0
      %3154 = vmatprep.subr.bf16.mxu0 0
      %3155 = vmatpush1.bf16.msra.mxu0 0
      %3156 = vmatprep.subr.bf16.mxu0 0
      %3157 = vmatpush1.bf16.msra.mxu0 0
      %3158 = vmatprep.subr.bf16.mxu0 0
      %3159 = vmatpush1.bf16.msra.mxu0 0
      %3160 = vmatprep.subr.bf16.mxu0 0
      %3161 = vmatpush1.bf16.msra.mxu0 0
      %3162 = vmatprep.subr.bf16.mxu0 0
      %3163 = vmatpush1.bf16.msra.mxu0 0
      %3164 = vmatprep.subr.bf16.mxu0 0
      %3165 = vmatpush1.bf16.msra.mxu0 0
      %3166 = vmatprep.subr.bf16.mxu0 0
      %3167 = vmatpush1.bf16.msra.mxu0 0
      %3168 = vmatprep.subr.bf16.mxu0 0
      %3169 = vmatpush1.bf16.msra.mxu0 0
      %3170 = vmatprep.subr.bf16.mxu0 0
      %3171 = vmatpush1.bf16.msra.mxu0 0
      %3172 = vmatprep.subr.bf16.mxu0 0
      %3173 = vmatpush1.bf16.msra.mxu0 0
      %3174 = vmatprep.subr.bf16.mxu0 0
      %3175 = vmatpush1.bf16.msra.mxu0 0
      %3176 = vmatprep.subr.bf16.mxu0 0
      %3177 = vmatpush1.bf16.msra.mxu0 0
      %3178 = vmatprep.mubr.bf16.mxu0 0
      %3179 = vmatmul.mubr.bf16.gmra.mrb[0].mxu0 %v3141
      %v3180 = vpop.f32.mrb[0].mxu0
      %v3181 = vadd.f32 0.0, %v3180
      %v3182 = vpop.f32.mrb[0].mxu0
      %v3183 = vpop.f32.mrb[0].mxu0
      %v3184 = vadd.f32 0.0, %v3183
      %v3185 = vpop.f32.mrb[0].mxu0
      %3186 = vdwg.mxu0
      %v3187 = vadd.f32 %v3127, %v3181
      %v3188 = vadd.f32 %v3128, %v3184
      %3189 = vrot.lane.b32.xlu0 %v2830, 108
      %v3190 = vpop.permute.xlu0 %3189
      %s3191 = scalar_lea.vmem %s7, 48
      %v3192 = vld [vmem:[%s3191] sm:$0xf]
      %v3193 = vld [vmem:[%s3191 + $0x4] sm:$0xf]
      %v3194 = vpack.c.bf16 %v3190, %v3190
      %v3197 = vunpack.c.l.b16 %v3192
      %v3198 = vunpack.c.l.b16 %v3193
      %v3199 = vpack.c.b16 %v3198, %v3197
      %v3201 = vsel %vm546, %v3199, 0
      %v3204 = vsel %vm550, %v3194, 0
      %3206 = vmatprep.subr.bf16.mxu0 0
      %3207 = vmatpush1.bf16.msra.mxu0 %v3204
      %3208 = vmatprep.subr.bf16.mxu0 0
      %3209 = vmatpush1.bf16.msra.mxu0 0
      %3210 = vmatprep.subr.bf16.mxu0 0
      %3211 = vmatpush1.bf16.msra.mxu0 0
      %3212 = vmatprep.subr.bf16.mxu0 0
      %3213 = vmatpush1.bf16.msra.mxu0 0
      %3214 = vmatprep.subr.bf16.mxu0 0
      %3215 = vmatpush1.bf16.msra.mxu0 0
      %3216 = vmatprep.subr.bf16.mxu0 0
      %3217 = vmatpush1.bf16.msra.mxu0 0
      %3218 = vmatprep.subr.bf16.mxu0 0
      %3219 = vmatpush1.bf16.msra.mxu0 0
      %3220 = vmatprep.subr.bf16.mxu0 0
      %3221 = vmatpush1.bf16.msra.mxu0 0
      %3222 = vmatprep.subr.bf16.mxu0 0
      %3223 = vmatpush1.bf16.msra.mxu0 0
      %3224 = vmatprep.subr.bf16.mxu0 0
      %3225 = vmatpush1.bf16.msra.mxu0 0
      %3226 = vmatprep.subr.bf16.mxu0 0
      %3227 = vmatpush1.bf16.msra.mxu0 0
      %3228 = vmatprep.subr.bf16.mxu0 0
      %3229 = vmatpush1.bf16.msra.mxu0 0
      %3230 = vmatprep.subr.bf16.mxu0 0
      %3231 = vmatpush1.bf16.msra.mxu0 0
      %3232 = vmatprep.subr.bf16.mxu0 0
      %3233 = vmatpush1.bf16.msra.mxu0 0
      %3234 = vmatprep.subr.bf16.mxu0 0
      %3235 = vmatpush1.bf16.msra.mxu0 0
      %3236 = vmatprep.subr.bf16.mxu0 0
      %3237 = vmatpush1.bf16.msra.mxu0 0
      %3238 = vmatprep.mubr.bf16.mxu0 0
      %3239 = vmatmul.mubr.bf16.gmra.mrb[0].mxu0 %v3201
      %v3240 = vpop.f32.mrb[0].mxu0
      %v3241 = vadd.f32 0.0, %v3240
      %v3242 = vpop.f32.mrb[0].mxu0
      %v3243 = vpop.f32.mrb[0].mxu0
      %v3244 = vadd.f32 0.0, %v3243
      %v3245 = vpop.f32.mrb[0].mxu0
      %3246 = vdwg.mxu0
      %v3247 = vadd.f32 %v3187, %v3241
      %v3248 = vadd.f32 %v3188, %v3244
      %3249 = vrot.lane.b32.xlu0 %v2830, 107
      %v3250 = vpop.permute.xlu0 %3249
      %s3251 = scalar_lea.vmem %s7, 56
      %v3252 = vld [vmem:[%s3251] sm:$0xf]
      %v3253 = vld [vmem:[%s3251 + $0x4] sm:$0xf]
      %v3254 = vpack.c.bf16 %v3250, %v3250
      %v3257 = vunpack.c.l.b16 %v3252
      %v3258 = vunpack.c.l.b16 %v3253
      %v3259 = vpack.c.b16 %v3258, %v3257
      %v3261 = vsel %vm546, %v3259, 0
      %v3264 = vsel %vm550, %v3254, 0
      %3266 = vmatprep.subr.bf16.mxu0 0
      %3267 = vmatpush1.bf16.msra.mxu0 %v3264
      %3268 = vmatprep.subr.bf16.mxu0 0
      %3269 = vmatpush1.bf16.msra.mxu0 0
      %3270 = vmatprep.subr.bf16.mxu0 0
      %3271 = vmatpush1.bf16.msra.mxu0 0
      %3272 = vmatprep.subr.bf16.mxu0 0
      %3273 = vmatpush1.bf16.msra.mxu0 0
      %3274 = vmatprep.subr.bf16.mxu0 0
      %3275 = vmatpush1.bf16.msra.mxu0 0
      %3276 = vmatprep.subr.bf16.mxu0 0
      %3277 = vmatpush1.bf16.msra.mxu0 0
      %3278 = vmatprep.subr.bf16.mxu0 0
      %3279 = vmatpush1.bf16.msra.mxu0 0
      %3280 = vmatprep.subr.bf16.mxu0 0
      %3281 = vmatpush1.bf16.msra.mxu0 0
      %3282 = vmatprep.subr.bf16.mxu0 0
      %3283 = vmatpush1.bf16.msra.mxu0 0
      %3284 = vmatprep.subr.bf16.mxu0 0
      %3285 = vmatpush1.bf16.msra.mxu0 0
      %3286 = vmatprep.subr.bf16.mxu0 0
      %3287 = vmatpush1.bf16.msra.mxu0 0
      %3288 = vmatprep.subr.bf16.mxu0 0
      %3289 = vmatpush1.bf16.msra.mxu0 0
      %3290 = vmatprep.subr.bf16.mxu0 0
      %3291 = vmatpush1.bf16.msra.mxu0 0
      %3292 = vmatprep.subr.bf16.mxu0 0
      %3293 = vmatpush1.bf16.msra.mxu0 0
      %3294 = vmatprep.subr.bf16.mxu0 0
      %3295 = vmatpush1.bf16.msra.mxu0 0
      %3296 = vmatprep.subr.bf16.mxu0 0
      %3297 = vmatpush1.bf16.msra.mxu0 0
      %3298 = vmatprep.mubr.bf16.mxu0 0
      %3299 = vmatmul.mubr.bf16.gmra.mrb[0].mxu0 %v3261
      %v3300 = vpop.f32.mrb[0].mxu0
      %v3301 = vadd.f32 0.0, %v3300
      %v3302 = vpop.f32.mrb[0].mxu0
      %v3303 = vpop.f32.mrb[0].mxu0
      %v3304 = vadd.f32 0.0, %v3303
      %v3305 = vpop.f32.mrb[0].mxu0
      %3306 = vdwg.mxu0
      %v3307 = vadd.f32 %v3247, %v3301
      %v3308 = vadd.f32 %v3248, %v3304
      %3309 = vrot.lane.b32.xlu0 %v2830, 106
      %v3310 = vpop.permute.xlu0 %3309
      %s3311 = scalar_lea.vmem %s7, 64
      %v3312 = vld [vmem:[%s3311] sm:$0xf]
      %v3313 = vld [vmem:[%s3311 + $0x4] sm:$0xf]
      %v3314 = vpack.c.bf16 %v3310, %v3310
      %v3317 = vunpack.c.l.b16 %v3312
      %v3318 = vunpack.c.l.b16 %v3313
      %v3319 = vpack.c.b16 %v3318, %v3317
      %v3321 = vsel %vm546, %v3319, 0
      %v3324 = vsel %vm550, %v3314, 0
      %3326 = vmatprep.subr.bf16.mxu0 0
      %3327 = vmatpush1.bf16.msra.mxu0 %v3324
      %3328 = vmatprep.subr.bf16.mxu0 0
      %3329 = vmatpush1.bf16.msra.mxu0 0
      %3330 = vmatprep.subr.bf16.mxu0 0
      %3331 = vmatpush1.bf16.msra.mxu0 0
      %3332 = vmatprep.subr.bf16.mxu0 0
      %3333 = vmatpush1.bf16.msra.mxu0 0
      %3334 = vmatprep.subr.bf16.mxu0 0
      %3335 = vmatpush1.bf16.msra.mxu0 0
      %3336 = vmatprep.subr.bf16.mxu0 0
      %3337 = vmatpush1.bf16.msra.mxu0 0
      %3338 = vmatprep.subr.bf16.mxu0 0
      %3339 = vmatpush1.bf16.msra.mxu0 0
      %3340 = vmatprep.subr.bf16.mxu0 0
      %3341 = vmatpush1.bf16.msra.mxu0 0
      %3342 = vmatprep.subr.bf16.mxu0 0
      %3343 = vmatpush1.bf16.msra.mxu0 0
      %3344 = vmatprep.subr.bf16.mxu0 0
      %3345 = vmatpush1.bf16.msra.mxu0 0
      %3346 = vmatprep.subr.bf16.mxu0 0
      %3347 = vmatpush1.bf16.msra.mxu0 0
      %3348 = vmatprep.subr.bf16.mxu0 0
      %3349 = vmatpush1.bf16.msra.mxu0 0
      %3350 = vmatprep.subr.bf16.mxu0 0
      %3351 = vmatpush1.bf16.msra.mxu0 0
      %3352 = vmatprep.subr.bf16.mxu0 0
      %3353 = vmatpush1.bf16.msra.mxu0 0
      %3354 = vmatprep.subr.bf16.mxu0 0
      %3355 = vmatpush1.bf16.msra.mxu0 0
      %3356 = vmatprep.subr.bf16.mxu0 0
      %3357 = vmatpush1.bf16.msra.mxu0 0
      %3358 = vmatprep.mubr.bf16.mxu0 0
      %3359 = vmatmul.mubr.bf16.gmra.mrb[0].mxu0 %v3321
      %v3360 = vpop.f32.mrb[0].mxu0
      %v3361 = vadd.f32 0.0, %v3360
      %v3362 = vpop.f32.mrb[0].mxu0
      %v3363 = vpop.f32.mrb[0].mxu0
      %v3364 = vadd.f32 0.0, %v3363
      %v3365 = vpop.f32.mrb[0].mxu0
      %3366 = vdwg.mxu0
      %v3367 = vadd.f32 %v3307, %v3361
      %v3368 = vadd.f32 %v3308, %v3364
      %v3369 = vld [vmem:[%s8] sm:$0xff]
      %v3370 = vld [vmem:[%s8 + $0x8] sm:$0xff]
      %3372 = vset.pattern.permute.xlu0 0
      %3373 = vperm.xlu0 %3372, %v3369
      %v3374 = vpop.permute.xlu0 %3373
      %3377 = vset.pattern.permute.xlu0 0
      %3378 = vperm.xlu0 %3377, %v3370
      %v3379 = vpop.permute.xlu0 %3378
      %v3381 = vadd.f32 %v3367, %v3374
      %v3382 = vadd.f32 %v3368, %v3379
      %v3383 = vmax.f32 %v3381, 0.0
      %v3384 = vmax.f32 %v3382, 0.0
      %v3386 = vlaneseq
      %v3387 = vshrl.u32 %v3386, 7
      %v3388 = vsub.s32 0, %v3387
      %v3389 = vrot.slane %v2835, %v3388
      %v3391 = vmul.f32 %v3383, %v3389
      %v3392 = vmul.f32 %v3384, %v3389
      %3393 = vrot.lane.b32.xlu0 %v3391, 11
      %v3394 = vpop.permute.xlu0 %3393
      %3395 = vrot.lane.b32.xlu0 %v3392, 11
      %v3396 = vpop.permute.xlu0 %3395
      %v3397 = vld [vmem:[%s9] sm:$0xf]
      %v3398 = vld [vmem:[%s9 + $0x4] sm:$0xf]
      %v3399 = vpack.c.bf16 %v3396, %v3394
      %3400 = vrot.lane.b32.xlu0 %v3391, 10
      %v3401 = vpop.permute.xlu0 %3400
      %3402 = vrot.lane.b32.xlu0 %v3392, 10
      %v3403 = vpop.permute.xlu0 %3402
      %s3404 = scalar_lea.vmem %s9, 8
      %v3405 = vld [vmem:[%s3404] sm:$0xf]
      %v3406 = vld [vmem:[%s3404 + $0x4] sm:$0xf]
      %v3407 = vpack.c.bf16 %v3403, %v3401
      %v3410 = vunpack.c.l.b16 %v3405
      %v3411 = vunpack.c.l.b16 %v3406
      %v3412 = vpack.c.b16 %v3411, %v3410
      %vm3413 = vcmask 130048
      %v3415 = vsel %vm3413, %v3412, 0
      %3417 = vmatprep.subr.bf16.mxu0 0
      %3418 = vmatpush1.bf16.msra.mxu0 %v3407
      %3419 = vmatprep.subr.bf16.mxu0 0
      %3420 = vmatpush1.bf16.msra.mxu0 0
      %3421 = vmatprep.subr.bf16.mxu0 0
      %3422 = vmatpush1.bf16.msra.mxu0 0
      %3423 = vmatprep.subr.bf16.mxu0 0
      %3424 = vmatpush1.bf16.msra.mxu0 0
      %3425 = vmatprep.subr.bf16.mxu0 0
      %3426 = vmatpush1.bf16.msra.mxu0 0
      %3427 = vmatprep.subr.bf16.mxu0 0
      %3428 = vmatpush1.bf16.msra.mxu0 0
      %3429 = vmatprep.subr.bf16.mxu0 0
      %3430 = vmatpush1.bf16.msra.mxu0 0
      %3431 = vmatprep.subr.bf16.mxu0 0
      %3432 = vmatpush1.bf16.msra.mxu0 0
      %3433 = vmatprep.subr.bf16.mxu0 0
      %3434 = vmatpush1.bf16.msra.mxu0 0
      %3435 = vmatprep.subr.bf16.mxu0 0
      %3436 = vmatpush1.bf16.msra.mxu0 0
      %3437 = vmatprep.subr.bf16.mxu0 0
      %3438 = vmatpush1.bf16.msra.mxu0 0
      %3439 = vmatprep.subr.bf16.mxu0 0
      %3440 = vmatpush1.bf16.msra.mxu0 0
      %3441 = vmatprep.subr.bf16.mxu0 0
      %3442 = vmatpush1.bf16.msra.mxu0 0
      %3443 = vmatprep.subr.bf16.mxu0 0
      %3444 = vmatpush1.bf16.msra.mxu0 0
      %3445 = vmatprep.subr.bf16.mxu0 0
      %3446 = vmatpush1.bf16.msra.mxu0 0
      %3447 = vmatprep.subr.bf16.mxu0 0
      %3448 = vmatpush1.bf16.msra.mxu0 0
      %3449 = vmatprep.mubr.bf16.mxu0 0
      %3450 = vmatmul.mubr.bf16.gmra.mrb[0].mxu0 %v3415
      %v3451 = vpop.f32.mrb[0].mxu0
      %v3452 = vadd.f32 0.0, %v3451
      %v3453 = vpop.f32.mrb[0].mxu0
      %v3454 = vpop.f32.mrb[0].mxu0
      %v3455 = vadd.f32 0.0, %v3454
      %v3456 = vpop.f32.mrb[0].mxu0
      %3457 = vdwg.mxu0
      %v3460 = vunpack.c.l.b16 %v3397
      %v3461 = vunpack.c.l.b16 %v3398
      %v3462 = vpack.c.b16 %v3461, %v3460
      %v3464 = vsel %vm3413, %v3462, 0
      %3466 = vmatprep.subr.bf16.mxu0 0
      %3467 = vmatpush1.bf16.msra.mxu0 %v3399
      %3468 = vmatprep.subr.bf16.mxu0 0
      %3469 = vmatpush1.bf16.msra.mxu0 0
      %3470 = vmatprep.subr.bf16.mxu0 0
      %3471 = vmatpush1.bf16.msra.mxu0 0
      %3472 = vmatprep.subr.bf16.mxu0 0
      %3473 = vmatpush1.bf16.msra.mxu0 0
      %3474 = vmatprep.subr.bf16.mxu0 0
      %3475 = vmatpush1.bf16.msra.mxu0 0
      %3476 = vmatprep.subr.bf16.mxu0 0
      %3477 = vmatpush1.bf16.msra.mxu0 0
      %3478 = vmatprep.subr.bf16.mxu0 0
      %3479 = vmatpush1.bf16.msra.mxu0 0
      %3480 = vmatprep.subr.bf16.mxu0 0
      %3481 = vmatpush1.bf16.msra.mxu0 0
      %3482 = vmatprep.subr.bf16.mxu0 0
      %3483 = vmatpush1.bf16.msra.mxu0 0
      %3484 = vmatprep.subr.bf16.mxu0 0
      %3485 = vmatpush1.bf16.msra.mxu0 0
      %3486 = vmatprep.subr.bf16.mxu0 0
      %3487 = vmatpush1.bf16.msra.mxu0 0
      %3488 = vmatprep.subr.bf16.mxu0 0
      %3489 = vmatpush1.bf16.msra.mxu0 0
      %3490 = vmatprep.subr.bf16.mxu0 0
      %3491 = vmatpush1.bf16.msra.mxu0 0
      %3492 = vmatprep.subr.bf16.mxu0 0
      %3493 = vmatpush1.bf16.msra.mxu0 0
      %3494 = vmatprep.subr.bf16.mxu0 0
      %3495 = vmatpush1.bf16.msra.mxu0 0
      %3496 = vmatprep.subr.bf16.mxu0 0
      %3497 = vmatpush1.bf16.msra.mxu0 0
      %3498 = vmatprep.mubr.bf16.mxu0 0
      %3499 = vmatmul.mubr.bf16.gmra.mrb[0].mxu0 %v3464
      %v3500 = vpop.f32.mrb[0].mxu0
      %v3501 = vadd.f32 %v3452, %v3500
      %v3502 = vpop.f32.mrb[0].mxu0
      %v3503 = vpop.f32.mrb[0].mxu0
      %v3504 = vadd.f32 %v3455, %v3503
      %v3505 = vpop.f32.mrb[0].mxu0
      %3506 = vdwg.mxu0
      %3507 = vrot.lane.b32.xlu0 %v3391, 9
      %v3508 = vpop.permute.xlu0 %3507
      %3509 = vrot.lane.b32.xlu0 %v3392, 9
      %v3510 = vpop.permute.xlu0 %3509
      %s3511 = scalar_lea.vmem %s9, 16
      %v3512 = vld [vmem:[%s3511] sm:$0xf]
      %v3513 = vld [vmem:[%s3511 + $0x4] sm:$0xf]
      %v3514 = vpack.c.bf16 %v3510, %v3508
      %v3517 = vunpack.c.l.b16 %v3512
      %v3518 = vunpack.c.l.b16 %v3513
      %v3519 = vpack.c.b16 %v3518, %v3517
      %v3521 = vsel %vm3413, %v3519, 0
      %3523 = vmatprep.subr.bf16.mxu0 0
      %3524 = vmatpush1.bf16.msra.mxu0 %v3514
      %3525 = vmatprep.subr.bf16.mxu0 0
      %3526 = vmatpush1.bf16.msra.mxu0 0
      %3527 = vmatprep.subr.bf16.mxu0 0
      %3528 = vmatpush1.bf16.msra.mxu0 0
      %3529 = vmatprep.subr.bf16.mxu0 0
      %3530 = vmatpush1.bf16.msra.mxu0 0
      %3531 = vmatprep.subr.bf16.mxu0 0
      %3532 = vmatpush1.bf16.msra.mxu0 0
      %3533 = vmatprep.subr.bf16.mxu0 0
      %3534 = vmatpush1.bf16.msra.mxu0 0
      %3535 = vmatprep.subr.bf16.mxu0 0
      %3536 = vmatpush1.bf16.msra.mxu0 0
      %3537 = vmatprep.subr.bf16.mxu0 0
      %3538 = vmatpush1.bf16.msra.mxu0 0
      %3539 = vmatprep.subr.bf16.mxu0 0
      %3540 = vmatpush1.bf16.msra.mxu0 0
      %3541 = vmatprep.subr.bf16.mxu0 0
      %3542 = vmatpush1.bf16.msra.mxu0 0
      %3543 = vmatprep.subr.bf16.mxu0 0
      %3544 = vmatpush1.bf16.msra.mxu0 0
      %3545 = vmatprep.subr.bf16.mxu0 0
      %3546 = vmatpush1.bf16.msra.mxu0 0
      %3547 = vmatprep.subr.bf16.mxu0 0
      %3548 = vmatpush1.bf16.msra.mxu0 0
      %3549 = vmatprep.subr.bf16.mxu0 0
      %3550 = vmatpush1.bf16.msra.mxu0 0
      %3551 = vmatprep.subr.bf16.mxu0 0
      %3552 = vmatpush1.bf16.msra.mxu0 0
      %3553 = vmatprep.subr.bf16.mxu0 0
      %3554 = vmatpush1.bf16.msra.mxu0 0
      %3555 = vmatprep.mubr.bf16.mxu0 0
      %3556 = vmatmul.mubr.bf16.gmra.mrb[0].mxu0 %v3521
      %v3557 = vpop.f32.mrb[0].mxu0
      %v3558 = vadd.f32 0.0, %v3557
      %v3559 = vpop.f32.mrb[0].mxu0
      %v3560 = vpop.f32.mrb[0].mxu0
      %v3561 = vadd.f32 0.0, %v3560
      %v3562 = vpop.f32.mrb[0].mxu0
      %3563 = vdwg.mxu0
      %v3564 = vadd.f32 %v3501, %v3558
      %v3565 = vadd.f32 %v3504, %v3561
      %3566 = vrot.lane.b32.xlu0 %v3391, 1
      %v3567 = vpop.permute.xlu0 %3566
      %3568 = vrot.lane.b32.xlu0 %v3392, 1
      %v3569 = vpop.permute.xlu0 %3568
      %s3570 = scalar_lea.vmem %s9, 24
      %v3571 = vld [vmem:[%s3570] sm:$0xf]
      %v3572 = vld [vmem:[%s3570 + $0x4] sm:$0xf]
      %v3573 = vpack.c.bf16 %v3569, %v3567
      %v3576 = vunpack.c.l.b16 %v3571
      %v3577 = vunpack.c.l.b16 %v3572
      %v3578 = vpack.c.b16 %v3577, %v3576
      %v3580 = vsel %vm3413, %v3578, 0
      %3582 = vmatprep.subr.bf16.mxu0 0
      %3583 = vmatpush1.bf16.msra.mxu0 %v3573
      %3584 = vmatprep.subr.bf16.mxu0 0
      %3585 = vmatpush1.bf16.msra.mxu0 0
      %3586 = vmatprep.subr.bf16.mxu0 0
      %3587 = vmatpush1.bf16.msra.mxu0 0
      %3588 = vmatprep.subr.bf16.mxu0 0
      %3589 = vmatpush1.bf16.msra.mxu0 0
      %3590 = vmatprep.subr.bf16.mxu0 0
      %3591 = vmatpush1.bf16.msra.mxu0 0
      %3592 = vmatprep.subr.bf16.mxu0 0
      %3593 = vmatpush1.bf16.msra.mxu0 0
      %3594 = vmatprep.subr.bf16.mxu0 0
      %3595 = vmatpush1.bf16.msra.mxu0 0
      %3596 = vmatprep.subr.bf16.mxu0 0
      %3597 = vmatpush1.bf16.msra.mxu0 0
      %3598 = vmatprep.subr.bf16.mxu0 0
      %3599 = vmatpush1.bf16.msra.mxu0 0
      %3600 = vmatprep.subr.bf16.mxu0 0
      %3601 = vmatpush1.bf16.msra.mxu0 0
      %3602 = vmatprep.subr.bf16.mxu0 0
      %3603 = vmatpush1.bf16.msra.mxu0 0
      %3604 = vmatprep.subr.bf16.mxu0 0
      %3605 = vmatpush1.bf16.msra.mxu0 0
      %3606 = vmatprep.subr.bf16.mxu0 0
      %3607 = vmatpush1.bf16.msra.mxu0 0
      %3608 = vmatprep.subr.bf16.mxu0 0
      %3609 = vmatpush1.bf16.msra.mxu0 0
      %3610 = vmatprep.subr.bf16.mxu0 0
      %3611 = vmatpush1.bf16.msra.mxu0 0
      %3612 = vmatprep.subr.bf16.mxu0 0
      %3613 = vmatpush1.bf16.msra.mxu0 0
      %3614 = vmatprep.mubr.bf16.mxu0 0
      %3615 = vmatmul.mubr.bf16.gmra.mrb[0].mxu0 %v3580
      %v3616 = vpop.f32.mrb[0].mxu0
      %v3617 = vadd.f32 0.0, %v3616
      %v3618 = vpop.f32.mrb[0].mxu0
      %v3619 = vpop.f32.mrb[0].mxu0
      %v3620 = vadd.f32 0.0, %v3619
      %v3621 = vpop.f32.mrb[0].mxu0
      %3622 = vdwg.mxu0
      %v3623 = vadd.f32 %v3564, %v3617
      %v3624 = vadd.f32 %v3565, %v3620
      %s3625 = scalar_lea.vmem %s9, 32
      %v3626 = vld [vmem:[%s3625] sm:$0xf]
      %v3627 = vld [vmem:[%s3625 + $0x4] sm:$0xf]
      %v3628 = vpack.c.bf16 %v3392, %v3391
      %v3631 = vunpack.c.l.b16 %v3626
      %v3632 = vunpack.c.l.b16 %v3627
      %v3633 = vpack.c.b16 %v3632, %v3631
      %v3635 = vsel %vm3413, %v3633, 0
      %3637 = vmatprep.subr.bf16.mxu0 0
      %3638 = vmatpush1.bf16.msra.mxu0 %v3628
      %3639 = vmatprep.subr.bf16.mxu0 0
      %3640 = vmatpush1.bf16.msra.mxu0 0
      %3641 = vmatprep.subr.bf16.mxu0 0
      %3642 = vmatpush1.bf16.msra.mxu0 0
      %3643 = vmatprep.subr.bf16.mxu0 0
      %3644 = vmatpush1.bf16.msra.mxu0 0
      %3645 = vmatprep.subr.bf16.mxu0 0
      %3646 = vmatpush1.bf16.msra.mxu0 0
      %3647 = vmatprep.subr.bf16.mxu0 0
      %3648 = vmatpush1.bf16.msra.mxu0 0
      %3649 = vmatprep.subr.bf16.mxu0 0
      %3650 = vmatpush1.bf16.msra.mxu0 0
      %3651 = vmatprep.subr.bf16.mxu0 0
      %3652 = vmatpush1.bf16.msra.mxu0 0
      %3653 = vmatprep.subr.bf16.mxu0 0
      %3654 = vmatpush1.bf16.msra.mxu0 0
      %3655 = vmatprep.subr.bf16.mxu0 0
      %3656 = vmatpush1.bf16.msra.mxu0 0
      %3657 = vmatprep.subr.bf16.mxu0 0
      %3658 = vmatpush1.bf16.msra.mxu0 0
      %3659 = vmatprep.subr.bf16.mxu0 0
      %3660 = vmatpush1.bf16.msra.mxu0 0
      %3661 = vmatprep.subr.bf16.mxu0 0
      %3662 = vmatpush1.bf16.msra.mxu0 0
      %3663 = vmatprep.subr.bf16.mxu0 0
      %3664 = vmatpush1.bf16.msra.mxu0 0
      %3665 = vmatprep.subr.bf16.mxu0 0
      %3666 = vmatpush1.bf16.msra.mxu0 0
      %3667 = vmatprep.subr.bf16.mxu0 0
      %3668 = vmatpush1.bf16.msra.mxu0 0
      %3669 = vmatprep.mubr.bf16.mxu0 0
      %3670 = vmatmul.mubr.bf16.gmra.mrb[0].mxu0 %v3635
      %v3671 = vpop.f32.mrb[0].mxu0
      %v3672 = vadd.f32 0.0, %v3671
      %v3673 = vpop.f32.mrb[0].mxu0
      %v3674 = vpop.f32.mrb[0].mxu0
      %v3675 = vadd.f32 0.0, %v3674
      %v3676 = vpop.f32.mrb[0].mxu0
      %3677 = vdwg.mxu0
      %v3678 = vadd.f32 %v3623, %v3672
      %v3679 = vadd.f32 %v3624, %v3675
      %3680 = vrot.lane.b32.xlu0 %v3391, 127
      %v3681 = vpop.permute.xlu0 %3680
      %3682 = vrot.lane.b32.xlu0 %v3392, 127
      %v3683 = vpop.permute.xlu0 %3682
      %s3684 = scalar_lea.vmem %s9, 40
      %v3685 = vld [vmem:[%s3684] sm:$0xf]
      %v3686 = vld [vmem:[%s3684 + $0x4] sm:$0xf]
      %v3687 = vpack.c.bf16 %v3683, %v3681
      %v3690 = vunpack.c.l.b16 %v3685
      %v3691 = vunpack.c.l.b16 %v3686
      %v3692 = vpack.c.b16 %v3691, %v3690
      %v3694 = vsel %vm3413, %v3692, 0
      %3696 = vmatprep.subr.bf16.mxu0 0
      %3697 = vmatpush1.bf16.msra.mxu0 %v3687
      %3698 = vmatprep.subr.bf16.mxu0 0
      %3699 = vmatpush1.bf16.msra.mxu0 0
      %3700 = vmatprep.subr.bf16.mxu0 0
      %3701 = vmatpush1.bf16.msra.mxu0 0
      %3702 = vmatprep.subr.bf16.mxu0 0
      %3703 = vmatpush1.bf16.msra.mxu0 0
      %3704 = vmatprep.subr.bf16.mxu0 0
      %3705 = vmatpush1.bf16.msra.mxu0 0
      %3706 = vmatprep.subr.bf16.mxu0 0
      %3707 = vmatpush1.bf16.msra.mxu0 0
      %3708 = vmatprep.subr.bf16.mxu0 0
      %3709 = vmatpush1.bf16.msra.mxu0 0
      %3710 = vmatprep.subr.bf16.mxu0 0
      %3711 = vmatpush1.bf16.msra.mxu0 0
      %3712 = vmatprep.subr.bf16.mxu0 0
      %3713 = vmatpush1.bf16.msra.mxu0 0
      %3714 = vmatprep.subr.bf16.mxu0 0
      %3715 = vmatpush1.bf16.msra.mxu0 0
      %3716 = vmatprep.subr.bf16.mxu0 0
      %3717 = vmatpush1.bf16.msra.mxu0 0
      %3718 = vmatprep.subr.bf16.mxu0 0
      %3719 = vmatpush1.bf16.msra.mxu0 0
      %3720 = vmatprep.subr.bf16.mxu0 0
      %3721 = vmatpush1.bf16.msra.mxu0 0
      %3722 = vmatprep.subr.bf16.mxu0 0
      %3723 = vmatpush1.bf16.msra.mxu0 0
      %3724 = vmatprep.subr.bf16.mxu0 0
      %3725 = vmatpush1.bf16.msra.mxu0 0
      %3726 = vmatprep.subr.bf16.mxu0 0
      %3727 = vmatpush1.bf16.msra.mxu0 0
      %3728 = vmatprep.mubr.bf16.mxu0 0
      %3729 = vmatmul.mubr.bf16.gmra.mrb[0].mxu0 %v3694
      %v3730 = vpop.f32.mrb[0].mxu0
      %v3731 = vadd.f32 0.0, %v3730
      %v3732 = vpop.f32.mrb[0].mxu0
      %v3733 = vpop.f32.mrb[0].mxu0
      %v3734 = vadd.f32 0.0, %v3733
      %v3735 = vpop.f32.mrb[0].mxu0
      %3736 = vdwg.mxu0
      %v3737 = vadd.f32 %v3678, %v3731
      %v3738 = vadd.f32 %v3679, %v3734
      %3739 = vrot.lane.b32.xlu0 %v3391, 119
      %v3740 = vpop.permute.xlu0 %3739
      %3741 = vrot.lane.b32.xlu0 %v3392, 119
      %v3742 = vpop.permute.xlu0 %3741
      %s3743 = scalar_lea.vmem %s9, 48
      %v3744 = vld [vmem:[%s3743] sm:$0xf]
      %v3745 = vld [vmem:[%s3743 + $0x4] sm:$0xf]
      %v3746 = vpack.c.bf16 %v3742, %v3740
      %v3749 = vunpack.c.l.b16 %v3744
      %v3750 = vunpack.c.l.b16 %v3745
      %v3751 = vpack.c.b16 %v3750, %v3749
      %v3753 = vsel %vm3413, %v3751, 0
      %3755 = vmatprep.subr.bf16.mxu0 0
      %3756 = vmatpush1.bf16.msra.mxu0 %v3746
      %3757 = vmatprep.subr.bf16.mxu0 0
      %3758 = vmatpush1.bf16.msra.mxu0 0
      %3759 = vmatprep.subr.bf16.mxu0 0
      %3760 = vmatpush1.bf16.msra.mxu0 0
      %3761 = vmatprep.subr.bf16.mxu0 0
      %3762 = vmatpush1.bf16.msra.mxu0 0
      %3763 = vmatprep.subr.bf16.mxu0 0
      %3764 = vmatpush1.bf16.msra.mxu0 0
      %3765 = vmatprep.subr.bf16.mxu0 0
      %3766 = vmatpush1.bf16.msra.mxu0 0
      %3767 = vmatprep.subr.bf16.mxu0 0
      %3768 = vmatpush1.bf16.msra.mxu0 0
      %3769 = vmatprep.subr.bf16.mxu0 0
      %3770 = vmatpush1.bf16.msra.mxu0 0
      %3771 = vmatprep.subr.bf16.mxu0 0
      %3772 = vmatpush1.bf16.msra.mxu0 0
      %3773 = vmatprep.subr.bf16.mxu0 0
      %3774 = vmatpush1.bf16.msra.mxu0 0
      %3775 = vmatprep.subr.bf16.mxu0 0
      %3776 = vmatpush1.bf16.msra.mxu0 0
      %3777 = vmatprep.subr.bf16.mxu0 0
      %3778 = vmatpush1.bf16.msra.mxu0 0
      %3779 = vmatprep.subr.bf16.mxu0 0
      %3780 = vmatpush1.bf16.msra.mxu0 0
      %3781 = vmatprep.subr.bf16.mxu0 0
      %3782 = vmatpush1.bf16.msra.mxu0 0
      %3783 = vmatprep.subr.bf16.mxu0 0
      %3784 = vmatpush1.bf16.msra.mxu0 0
      %3785 = vmatprep.subr.bf16.mxu0 0
      %3786 = vmatpush1.bf16.msra.mxu0 0
      %3787 = vmatprep.mubr.bf16.mxu0 0
      %3788 = vmatmul.mubr.bf16.gmra.mrb[0].mxu0 %v3753
      %v3789 = vpop.f32.mrb[0].mxu0
      %v3790 = vadd.f32 0.0, %v3789
      %v3791 = vpop.f32.mrb[0].mxu0
      %v3792 = vpop.f32.mrb[0].mxu0
      %v3793 = vadd.f32 0.0, %v3792
      %v3794 = vpop.f32.mrb[0].mxu0
      %3795 = vdwg.mxu0
      %v3796 = vadd.f32 %v3737, %v3790
      %v3797 = vadd.f32 %v3738, %v3793
      %3798 = vrot.lane.b32.xlu0 %v3391, 118
      %v3799 = vpop.permute.xlu0 %3798
      %3800 = vrot.lane.b32.xlu0 %v3392, 118
      %v3801 = vpop.permute.xlu0 %3800
      %s3802 = scalar_lea.vmem %s9, 56
      %v3803 = vld [vmem:[%s3802] sm:$0xf]
      %v3804 = vld [vmem:[%s3802 + $0x4] sm:$0xf]
      %v3805 = vpack.c.bf16 %v3801, %v3799
      %v3808 = vunpack.c.l.b16 %v3803
      %v3809 = vunpack.c.l.b16 %v3804
      %v3810 = vpack.c.b16 %v3809, %v3808
      %v3812 = vsel %vm3413, %v3810, 0
      %3814 = vmatprep.subr.bf16.mxu0 0
      %3815 = vmatpush1.bf16.msra.mxu0 %v3805
      %3816 = vmatprep.subr.bf16.mxu0 0
      %3817 = vmatpush1.bf16.msra.mxu0 0
      %3818 = vmatprep.subr.bf16.mxu0 0
      %3819 = vmatpush1.bf16.msra.mxu0 0
      %3820 = vmatprep.subr.bf16.mxu0 0
      %3821 = vmatpush1.bf16.msra.mxu0 0
      %3822 = vmatprep.subr.bf16.mxu0 0
      %3823 = vmatpush1.bf16.msra.mxu0 0
      %3824 = vmatprep.subr.bf16.mxu0 0
      %3825 = vmatpush1.bf16.msra.mxu0 0
      %3826 = vmatprep.subr.bf16.mxu0 0
      %3827 = vmatpush1.bf16.msra.mxu0 0
      %3828 = vmatprep.subr.bf16.mxu0 0
      %3829 = vmatpush1.bf16.msra.mxu0 0
      %3830 = vmatprep.subr.bf16.mxu0 0
      %3831 = vmatpush1.bf16.msra.mxu0 0
      %3832 = vmatprep.subr.bf16.mxu0 0
      %3833 = vmatpush1.bf16.msra.mxu0 0
      %3834 = vmatprep.subr.bf16.mxu0 0
      %3835 = vmatpush1.bf16.msra.mxu0 0
      %3836 = vmatprep.subr.bf16.mxu0 0
      %3837 = vmatpush1.bf16.msra.mxu0 0
      %3838 = vmatprep.subr.bf16.mxu0 0
      %3839 = vmatpush1.bf16.msra.mxu0 0
      %3840 = vmatprep.subr.bf16.mxu0 0
      %3841 = vmatpush1.bf16.msra.mxu0 0
      %3842 = vmatprep.subr.bf16.mxu0 0
      %3843 = vmatpush1.bf16.msra.mxu0 0
      %3844 = vmatprep.subr.bf16.mxu0 0
      %3845 = vmatpush1.bf16.msra.mxu0 0
      %3846 = vmatprep.mubr.bf16.mxu0 0
      %3847 = vmatmul.mubr.bf16.gmra.mrb[0].mxu0 %v3812
      %v3848 = vpop.f32.mrb[0].mxu0
      %v3849 = vadd.f32 0.0, %v3848
      %v3850 = vpop.f32.mrb[0].mxu0
      %v3851 = vpop.f32.mrb[0].mxu0
      %v3852 = vadd.f32 0.0, %v3851
      %v3853 = vpop.f32.mrb[0].mxu0
      %3854 = vdwg.mxu0
      %v3855 = vadd.f32 %v3796, %v3849
      %v3856 = vadd.f32 %v3797, %v3852
      %3857 = vrot.lane.b32.xlu0 %v3391, 117
      %v3858 = vpop.permute.xlu0 %3857
      %3859 = vrot.lane.b32.xlu0 %v3392, 117
      %v3860 = vpop.permute.xlu0 %3859
      %s3861 = scalar_lea.vmem %s9, 64
      %v3862 = vld [vmem:[%s3861] sm:$0xf]
      %v3863 = vld [vmem:[%s3861 + $0x4] sm:$0xf]
      %v3864 = vpack.c.bf16 %v3860, %v3858
      %v3867 = vunpack.c.l.b16 %v3862
      %v3868 = vunpack.c.l.b16 %v3863
      %v3869 = vpack.c.b16 %v3868, %v3867
      %v3871 = vsel %vm3413, %v3869, 0
      %3873 = vmatprep.subr.bf16.mxu0 0
      %3874 = vmatpush1.bf16.msra.mxu0 %v3864
      %3875 = vmatprep.subr.bf16.mxu0 0
      %3876 = vmatpush1.bf16.msra.mxu0 0
      %3877 = vmatprep.subr.bf16.mxu0 0
      %3878 = vmatpush1.bf16.msra.mxu0 0
      %3879 = vmatprep.subr.bf16.mxu0 0
      %3880 = vmatpush1.bf16.msra.mxu0 0
      %3881 = vmatprep.subr.bf16.mxu0 0
      %3882 = vmatpush1.bf16.msra.mxu0 0
      %3883 = vmatprep.subr.bf16.mxu0 0
      %3884 = vmatpush1.bf16.msra.mxu0 0
      %3885 = vmatprep.subr.bf16.mxu0 0
      %3886 = vmatpush1.bf16.msra.mxu0 0
      %3887 = vmatprep.subr.bf16.mxu0 0
      %3888 = vmatpush1.bf16.msra.mxu0 0
      %3889 = vmatprep.subr.bf16.mxu0 0
      %3890 = vmatpush1.bf16.msra.mxu0 0
      %3891 = vmatprep.subr.bf16.mxu0 0
      %3892 = vmatpush1.bf16.msra.mxu0 0
      %3893 = vmatprep.subr.bf16.mxu0 0
      %3894 = vmatpush1.bf16.msra.mxu0 0
      %3895 = vmatprep.subr.bf16.mxu0 0
      %3896 = vmatpush1.bf16.msra.mxu0 0
      %3897 = vmatprep.subr.bf16.mxu0 0
      %3898 = vmatpush1.bf16.msra.mxu0 0
      %3899 = vmatprep.subr.bf16.mxu0 0
      %3900 = vmatpush1.bf16.msra.mxu0 0
      %3901 = vmatprep.subr.bf16.mxu0 0
      %3902 = vmatpush1.bf16.msra.mxu0 0
      %3903 = vmatprep.subr.bf16.mxu0 0
      %3904 = vmatpush1.bf16.msra.mxu0 0
      %3905 = vmatprep.mubr.bf16.mxu0 0
      %3906 = vmatmul.mubr.bf16.gmra.mrb[0].mxu0 %v3871
      %v3907 = vpop.f32.mrb[0].mxu0
      %v3908 = vadd.f32 0.0, %v3907
      %v3909 = vpop.f32.mrb[0].mxu0
      %v3910 = vpop.f32.mrb[0].mxu0
      %v3911 = vadd.f32 0.0, %v3910
      %v3912 = vpop.f32.mrb[0].mxu0
      %3913 = vdwg.mxu0
      %v3914 = vadd.f32 %v3855, %v3908
      %v3915 = vadd.f32 %v3856, %v3911
      %v3916 = vld [vmem:[%s10] sm:$0xff]
      %v3917 = vld [vmem:[%s10 + $0x8] sm:$0xff]
      %3919 = vset.pattern.permute.xlu0 0
      %3920 = vperm.xlu0 %3919, %v3916
      %v3921 = vpop.permute.xlu0 %3920
      %3924 = vset.pattern.permute.xlu0 0
      %3925 = vperm.xlu0 %3924, %v3917
      %v3926 = vpop.permute.xlu0 %3925
      %v3928 = vadd.f32 %v3914, %v3921
      %v3929 = vadd.f32 %v3915, %v3926
      %v3930 = vmax.f32 %v3928, 0.0
      %v3931 = vmax.f32 %v3929, 0.0
      %3932 = vst [vmem:[%s514] sm:$0xff] %v3930
      %3933 = vst [vmem:[%s514 + $0x8] sm:$0xff] %v3931
      %3934 = vrot.lane.b32.xlu0 %v3930, 127
      %v3935 = vpop.permute.xlu0 %3934
      %3936 = vrot.lane.b32.xlu0 %v3931, 127
      %v3937 = vpop.permute.xlu0 %3936
      %v3938 = vmax.f32 %v3930, %v3935
      %v3939 = vmax.f32 %v3931, %v3937
      %3940 = vrot.lane.b32.xlu0 %v3938, 118
      %v3941 = vpop.permute.xlu0 %3940
      %3942 = vrot.lane.b32.xlu0 %v3939, 118
      %v3943 = vpop.permute.xlu0 %3942
      %v3944 = vmax.f32 %v3938, %v3941
      %v3945 = vmax.f32 %v3939, %v3943
      %v3946 = vpack.c.bf16 %v3945, %v3944
      %v3947 = vld [vmem:[%s12] sm:$0xf]
      %v3948 = vld [vmem:[%s12 + $0x4] sm:$0xf]
      %v3949 = vld [vmem:[%s12 + $0x8] sm:$0xf]
      %v3950 = vld [vmem:[%s12 + $0xc] sm:$0xf]
      %v3951 = vld [vmem:[%s12 + $0x10] sm:$0xf]
      %v3952 = vld [vmem:[%s12 + $0x14] sm:$0xf]
      %v3953 = vld [vmem:[%s12 + $0x18] sm:$0xf]
      %v3954 = vld [vmem:[%s12 + $0x1c] sm:$0xf]
      %v3955 = vld [vmem:[%s12 + $0x20] sm:$0xf]
      %v3956 = vld [vmem:[%s12 + $0x24] sm:$0xf]
      %v3957 = vld [vmem:[%s12 + $0x28] sm:$0xf]
      %v3958 = vld [vmem:[%s12 + $0x2c] sm:$0xf]
      %v3959 = vld [vmem:[%s12 + $0x30] sm:$0xf]
      %v3960 = vld [vmem:[%s12 + $0x34] sm:$0xf]
      %v3961 = vld [vmem:[%s12 + $0x38] sm:$0xf]
      %v3962 = vld [vmem:[%s12 + $0x3c] sm:$0xf]
      %v3979 = vunpack.c.l.b16 %v3947
      %v3980 = vunpack.c.l.b16 %v3948
      %v3981 = vunpack.c.l.b16 %v3949
      %v3982 = vunpack.c.l.b16 %v3950
      %v3983 = vunpack.c.l.b16 %v3951
      %v3984 = vunpack.c.l.b16 %v3952
      %v3985 = vunpack.c.l.b16 %v3953
      %v3986 = vunpack.c.l.b16 %v3954
      %v3987 = vunpack.c.l.b16 %v3955
      %v3988 = vunpack.c.l.b16 %v3956
      %v3989 = vunpack.c.l.b16 %v3957
      %v3990 = vunpack.c.l.b16 %v3958
      %v3991 = vunpack.c.l.b16 %v3959
      %v3992 = vunpack.c.l.b16 %v3960
      %v3993 = vunpack.c.l.b16 %v3961
      %v3994 = vunpack.c.l.b16 %v3962
      %v3995 = vpack.c.b16 %v3980, %v3979
      %v3996 = vpack.c.b16 %v3982, %v3981
      %v3997 = vpack.c.b16 %v3984, %v3983
      %v3998 = vpack.c.b16 %v3986, %v3985
      %v3999 = vpack.c.b16 %v3988, %v3987
      %v4000 = vpack.c.b16 %v3990, %v3989
      %v4001 = vpack.c.b16 %v3992, %v3991
      %v4002 = vpack.c.b16 %v3994, %v3993
      %4011 = vmatprep.subr.bf16.mxu0 0
      %4012 = vmatpush1.bf16.msra.mxu0 %v3995
      %4013 = vmatprep.subr.bf16.mxu0 0
      %4014 = vmatpush1.bf16.msra.mxu0 %v3996
      %4015 = vmatprep.subr.bf16.mxu0 0
      %4016 = vmatpush1.bf16.msra.mxu0 %v3997
      %4017 = vmatprep.subr.bf16.mxu0 0
      %4018 = vmatpush1.bf16.msra.mxu0 %v3998
      %4019 = vmatprep.subr.bf16.mxu0 0
      %4020 = vmatpush1.bf16.msra.mxu0 %v3999
      %4021 = vmatprep.subr.bf16.mxu0 0
      %4022 = vmatpush1.bf16.msra.mxu0 %v4000
      %4023 = vmatprep.subr.bf16.mxu0 0
      %4024 = vmatpush1.bf16.msra.mxu0 %v4001
      %4025 = vmatprep.subr.bf16.mxu0 0
      %4026 = vmatpush1.bf16.msra.mxu0 %v4002
      %4027 = vmatprep.subr.bf16.mxu0 0
      %4028 = vmatpush1.bf16.msra.mxu0 0
      %4029 = vmatprep.subr.bf16.mxu0 0
      %4030 = vmatpush1.bf16.msra.mxu0 0
      %4031 = vmatprep.subr.bf16.mxu0 0
      %4032 = vmatpush1.bf16.msra.mxu0 0
      %4033 = vmatprep.subr.bf16.mxu0 0
      %4034 = vmatpush1.bf16.msra.mxu0 0
      %4035 = vmatprep.subr.bf16.mxu0 0
      %4036 = vmatpush1.bf16.msra.mxu0 0
      %4037 = vmatprep.subr.bf16.mxu0 0
      %4038 = vmatpush1.bf16.msra.mxu0 0
      %4039 = vmatprep.subr.bf16.mxu0 0
      %4040 = vmatpush1.bf16.msra.mxu0 0
      %4041 = vmatprep.subr.bf16.mxu0 0
      %4042 = vmatpush1.bf16.msra.mxu0 0
      %4043 = vmatprep.mubr.bf16.mxu0 0
      %4044 = vmatmul.mubr.bf16.gmra.mrb[0].mxu0 %v3946
      %v4045 = vpop.f32.mrb[0].mxu0
      %v4046 = vadd.f32 0.0, %v4045
      %v4047 = vpop.f32.mrb[0].mxu0
      %v4048 = vpop.f32.mrb[0].mxu0
      %v4049 = vadd.f32 0.0, %v4048
      %v4050 = vpop.f32.mrb[0].mxu0
      %4051 = vdwg.mxu0
      %4052 = vst.msk [vmem:[%s519] sm:$0xff] %vm3413, %v4046
      %4053 = vst.msk [vmem:[%s519 + $0x8] sm:$0xff] %vm3413, %v4049
      %p4054 = scmp.lt.s32.totalorder %s27, 1
      %s4055 = scalar_select %p4054, %s27, 1
      %s4056 = smul.addr %s4055, 3
      %s4057 = smul.addr %s4056, 8
      %s4058 = scalar_lea.vmem %s13, %s4057
      %p4059 = scmp.lt.s32.totalorder %s27, 1
      %s4060 = scalar_select %p4059, %s27, 1
      %s4061 = smul.addr %s4060, 2
      %s4062 = smul.addr %s4061, 8
      %s4063 = scalar_lea.vmem %s14, %s4062
      %p4064 = scmp.lt.s32.totalorder %s27, 1
      %s4065 = scalar_select %p4064, %s27, 1
      %s4066 = smul.addr %s4065, 2
      %s4067 = smul.addr %s4066, 8
      %s4068 = scalar_lea.vmem %s15, %s4067
      // Predicated region
      $region73: #{encoder_forward.1} parent=71 // pred_check
        %p4069 = pneg %p323
      $region74: #{encoder_forward.1} parent=71 // pred_check_branch
        %4071 = sbr.rel (%p4069) target = $region76
      $region75: #{encoder_forward.1} parent=71 // pred_region
        _
      $region76: #{encoder_forward.1} parent=71 // pred_fallthru
        _
      // Predicated region
      $region77: #{encoder_forward.1} parent=71 // pred_check
        %p4072 = pneg %p349
      $region78: #{encoder_forward.1} parent=71 // pred_check_branch
        %4074 = sbr.rel (%p4072) target = $region80
      $region79: #{encoder_forward.1} parent=71 // pred_region
        _
      $region80: #{encoder_forward.1} parent=71 // pred_fallthru
        _
      // Predicated region
      $region81: #{encoder_forward.1} parent=71 // pred_check
        %p4075 = pneg %p375
      $region82: #{encoder_forward.1} parent=71 // pred_check_branch
        %4077 = sbr.rel (%p4075) target = $region84
      $region83: #{encoder_forward.1} parent=71 // pred_region
        _
      $region84: #{encoder_forward.1} parent=71 // pred_fallthru
        _
    $region72: #{encoder_forward.1} parent=5 // pred_fallthru
      _
    %p4078 = scmp.le.s32.totalorder 2, %s22
    // Predicated region
    $region85: #{encoder_forward.1} parent=5 // pred_check
      %p4079 = pneg %p4078
    $region86: #{encoder_forward.1} parent=5 // pred_check_branch
      %4081 = sbr.rel (%p4079) target = $region88
    $region87: #{encoder_forward.1} parent=5 // pred_region
      %s4082 = ssub.s32 %s22, 2
      // Predicated region
      $region89: #{encoder_forward.1} parent=87 // pred_check
        %p4083 = pneg %p329
      $region90: #{encoder_forward.1} parent=87 // pred_check_branch
        %4085 = sbr.rel (%p4083) target = $region92
      $region91: #{encoder_forward.1} parent=87 // pred_region
        %p4086 = scmp.lt.s32.totalorder %s28, 1
        %s4087 = scalar_select %p4086, %s28, 1
        %s4088 = smul.addr %s4087, 3
        %s4089 = smul.addr %s4088, 8
        %s4090 = scalar_lea.vmem %s13, %s4089
      $region92: #{encoder_forward.1} parent=87 // pred_fallthru
        _
      // Predicated region
      $region93: #{encoder_forward.1} parent=87 // pred_check
        %p4091 = pneg %p355
      $region94: #{encoder_forward.1} parent=87 // pred_check_branch
        %4093 = sbr.rel (%p4091) target = $region96
      $region95: #{encoder_forward.1} parent=87 // pred_region
        %p4094 = scmp.lt.s32.totalorder %s28, 1
        %s4095 = scalar_select %p4094, %s28, 1
        %s4096 = smul.addr %s4095, 2
        %s4097 = smul.addr %s4096, 8
        %s4098 = scalar_lea.vmem %s14, %s4097
      $region96: #{encoder_forward.1} parent=87 // pred_fallthru
        _
      // Predicated region
      $region97: #{encoder_forward.1} parent=87 // pred_check
        %p4099 = pneg %p381
      $region98: #{encoder_forward.1} parent=87 // pred_check_branch
        %4101 = sbr.rel (%p4099) target = $region100
      $region99: #{encoder_forward.1} parent=87 // pred_region
        %p4102 = scmp.lt.s32.totalorder %s28, 1
        %s4103 = scalar_select %p4102, %s28, 1
        %s4104 = smul.addr %s4103, 2
        %s4105 = smul.addr %s4104, 8
        %s4106 = scalar_lea.vmem %s15, %s4105
      $region100: #{encoder_forward.1} parent=87 // pred_fallthru
        _
    $region88: #{encoder_forward.1} parent=5 // pred_fallthru
      _
  $region6: #{encoder_forward.1} parent=0 // loop_footer
    %s26 = sadd.s32 1, %s22
  $region7: #{encoder_forward.1} parent=0 // loop_footer_branch
    %21 = sbr.rel target = $region3
  $region8: #{encoder_forward.1} parent=0 // loop_exit
    _

</llo_original>
